<compile_context>
chip_gen: v7x
topology: tpu7x:2x2x1
jax: 0.10.0
libtpu: 0.0.40
codegen_flags: <defaults>
</compile_context>

<pallas_src>
import functools
import math

import jax
import jax.numpy as jnp
from jax.experimental import pallas as pl
from jax.experimental.pallas import tpu as pltpu


# ----------------------------------------------------------------------------
# Tiling helpers
# ----------------------------------------------------------------------------
def _tile(dim, target, align):
    """Largest multiple of `align` that divides `dim` and is <= target, else full dim."""
    if dim <= target:
        return dim
    t = (target // align) * align
    while t >= align:
        if dim % t == 0:
            return t
        t -= align
    return dim


def _group(bh, cap=8):
    """Number of (batch, head) pairs processed per attention grid step."""
    g = min(bh, cap)
    while bh % g:
        g -= 1
    return g


# ----------------------------------------------------------------------------
# Pallas kernels
# ----------------------------------------------------------------------------
def _linear_kernel(x_ref, w_ref, b_ref, o_ref, acc_ref, *, activation):
    """Tiled y = x @ w + b (optional ReLU). bf16 MXU operands, f32 accumulation."""
    @pl.when(pl.program_id(2) == 0)
    def _():
        acc_ref[...] = jnp.zeros_like(acc_ref)

    acc_ref[...] += jnp.dot(
        x_ref[...].astype(jnp.bfloat16),
        w_ref[...].astype(jnp.bfloat16),
        preferred_element_type=jnp.float32,
    )

    @pl.when(pl.program_id(2) == pl.num_programs(2) - 1)
    def _():
        y = acc_ref[...] + b_ref[...]
        if activation == "relu":
            y = jnp.maximum(y, 0.0)
        o_ref[...] = y.astype(o_ref.dtype)


def linear(x, w, b, activation=None):
    """x: (M, K) f32, w: (K, N) f32, b: (N,) f32 -> (M, N) f32."""
    M, K = x.shape
    Kw, N = w.shape
    assert K == Kw
    tm = _tile(M, 256, 8)
    tn = _tile(N, 512, 128)
    tk = _tile(K, 512, 128)
    kernel = functools.partial(_linear_kernel, activation=activation)
    return pl.pallas_call(
        kernel,
        out_shape=jax.ShapeDtypeStruct((M, N), jnp.float32),
        grid=(M // tm, N // tn, K // tk),
        in_specs=[
            pl.BlockSpec((tm, tk), lambda i, j, k: (i, k)),
            pl.BlockSpec((tk, tn), lambda i, j, k: (k, j)),
            pl.BlockSpec((1, tn), lambda i, j, k: (0, j)),
        ],
        out_specs=pl.BlockSpec((tm, tn), lambda i, j, k: (i, j)),
        scratch_shapes=[pltpu.VMEM((tm, tn), jnp.float32)],
        compiler_params=pltpu.CompilerParams(
            dimension_semantics=("parallel", "parallel", "arbitrary")),
    )(x, w, b.reshape(1, N))


def _linear_res_ln_kernel(x_ref, w_ref, b_ref, r_ref, g_ref, be_ref, o_ref, acc_ref):
    """o = LayerNorm(residual + x @ w + b); LN over full N (whole row in one block)."""
    @pl.when(pl.program_id(1) == 0)
    def _():
        acc_ref[...] = jnp.zeros_like(acc_ref)

    acc_ref[...] += jnp.dot(
        x_ref[...].astype(jnp.bfloat16),
        w_ref[...].astype(jnp.bfloat16),
        preferred_element_type=jnp.float32,
    )

    @pl.when(pl.program_id(1) == pl.num_programs(1) - 1)
    def _():
        y = acc_ref[...] + b_ref[...] + r_ref[...]
        mean = jnp.mean(y, axis=-1, keepdims=True)
        var = jnp.mean((y - mean) ** 2, axis=-1, keepdims=True)
        inv = jax.lax.rsqrt(var + 1e-5)
        o_ref[...] = ((y - mean) * inv * g_ref[...] + be_ref[...]).astype(o_ref.dtype)


def linear_res_ln(x, w, b, residual, gamma, beta):
    """Fused (x @ w + b + residual) -> LayerNorm.  x: (M, K), w: (K, N), residual: (M, N)."""
    M, K = x.shape
    Kw, N = w.shape
    assert K == Kw and residual.shape == (M, N)
    tm = _tile(M, 256, 8)
    tk = _tile(K, 512, 128)
    return pl.pallas_call(
        _linear_res_ln_kernel,
        out_shape=jax.ShapeDtypeStruct((M, N), jnp.float32),
        grid=(M // tm, K // tk),
        in_specs=[
            pl.BlockSpec((tm, tk), lambda i, k: (i, k)),
            pl.BlockSpec((tk, N), lambda i, k: (k, 0)),
            pl.BlockSpec((1, N), lambda i, k: (0, 0)),
            pl.BlockSpec((tm, N), lambda i, k: (i, 0)),
            pl.BlockSpec((1, N), lambda i, k: (0, 0)),
            pl.BlockSpec((1, N), lambda i, k: (0, 0)),
        ],
        out_specs=pl.BlockSpec((tm, N), lambda i, k: (i, 0)),
        scratch_shapes=[pltpu.VMEM((tm, N), jnp.float32)],
        compiler_params=pltpu.CompilerParams(
            dimension_semantics=("parallel", "arbitrary")),
    )(x, w, b.reshape(1, N), residual, gamma.reshape(1, N), beta.reshape(1, N))


def _layernorm_kernel(x_ref, g_ref, b_ref, o_ref):
    """Row-wise LayerNorm over last dim, eps=1e-5 (PyTorch default), f32 math."""
    x = x_ref[...].astype(jnp.float32)
    mean = jnp.mean(x, axis=-1, keepdims=True)
    var = jnp.mean((x - mean) ** 2, axis=-1, keepdims=True)
    inv = jax.lax.rsqrt(var + 1e-5)
    o_ref[...] = ((x - mean) * inv * g_ref[...] + b_ref[...]).astype(o_ref.dtype)


def layer_norm(x2d, gamma, beta):
    M, D = x2d.shape
    tm = _tile(M, 512, 8)
    return pl.pallas_call(
        _layernorm_kernel,
        out_shape=jax.ShapeDtypeStruct((M, D), jnp.float32),
        grid=(M // tm,),
        in_specs=[
            pl.BlockSpec((tm, D), lambda i: (i, 0)),
            pl.BlockSpec((1, D), lambda i: (0, 0)),
            pl.BlockSpec((1, D), lambda i: (0, 0)),
        ],
        out_specs=pl.BlockSpec((tm, D), lambda i: (i, 0)),
        compiler_params=pltpu.CompilerParams(dimension_semantics=("parallel",)),
    )(x2d, gamma.reshape(1, D), beta.reshape(1, D))


def _attn_kernel(q_ref, k_ref, v_ref, o_ref, *, causal, scale):
    """softmax(q k^T * scale [+ causal mask]) @ v for a group of (batch, head) pairs."""
    q = q_ref[...].astype(jnp.bfloat16)           # (G, Sq, Dh)
    k = k_ref[...].astype(jnp.bfloat16)           # (G, Sk, Dh)
    s = jnp.einsum("gqd,gkd->gqk", q, k, preferred_element_type=jnp.float32) * scale
    if causal:
        row = jax.lax.broadcasted_iota(jnp.int32, s.shape, 1)
        col = jax.lax.broadcasted_iota(jnp.int32, s.shape, 2)
        s = jnp.where(col <= row, s, -1e30)
    m = jnp.max(s, axis=-1, keepdims=True)
    p = jnp.exp(s - m)
    denom = jnp.sum(p, axis=-1, keepdims=True)
    o = jnp.einsum("gqk,gkd->gqd", p.astype(jnp.bfloat16), v_ref[...].astype(jnp.bfloat16),
                   preferred_element_type=jnp.float32)
    o_ref[...] = (o * pl.reciprocal(denom, approx=True)).astype(o_ref.dtype)


def attention(q, k, v, causal):
    """q: (BH, Sq, Dh), k/v: (BH, Sk, Dh) -> (BH, Sq, Dh)."""
    BH, Sq, Dh = q.shape
    Sk = k.shape[1]
    G = _group(BH, 8)
    kernel = functools.partial(_attn_kernel, causal=causal, scale=1.0 / math.sqrt(Dh))
    return pl.pallas_call(
        kernel,
        out_shape=jax.ShapeDtypeStruct((BH, Sq, Dh), jnp.float32),
        grid=(BH // G,),
        in_specs=[
            pl.BlockSpec((G, Sq, Dh), lambda g: (g, 0, 0)),
            pl.BlockSpec((G, Sk, Dh), lambda g: (g, 0, 0)),
            pl.BlockSpec((G, Sk, Dh), lambda g: (g, 0, 0)),
        ],
        out_specs=pl.BlockSpec((G, Sq, Dh), lambda g: (g, 0, 0)),
        compiler_params=pltpu.CompilerParams(dimension_semantics=("parallel",)),
    )(q, k, v)


# ----------------------------------------------------------------------------
# Transformer built from the kernels (glue in plain JAX)
# ----------------------------------------------------------------------------
def self_attention(x, p, nhead, causal):
    """x: (S, B, D) -> pre-output-projection attention result (S*B, D)."""
    S, B, D = x.shape
    Dh = D // nhead
    qkv = linear(x.reshape(S * B, D), p["wqkv"], p["bqkv"])          # fused QKV: (S*B, 3D)
    qkv = qkv.reshape(S, B, 3, nhead, Dh).transpose(2, 1, 3, 0, 4)   # (3, B, H, S, Dh)
    qkv = qkv.reshape(3, B * nhead, S, Dh)
    o = attention(qkv[0], qkv[1], qkv[2], causal=causal)             # (B*H, S, Dh)
    return o.reshape(B, nhead, S, Dh).transpose(2, 0, 1, 3).reshape(S * B, D)


def cross_attention(x, memory, p, nhead):
    """x: (Sq, B, D), memory: (Sk, B, D) -> pre-output-projection result (Sq*B, D)."""
    Sq, B, D = x.shape
    Sk = memory.shape[0]
    Dh = D // nhead
    q = linear(x.reshape(Sq * B, D), p["wqkv"][:, :D], p["bqkv"][:D])
    kv = linear(memory.reshape(Sk * B, D), p["wqkv"][:, D:], p["bqkv"][D:])  # fused KV
    q = q.reshape(Sq, B, nhead, Dh).transpose(1, 2, 0, 3).reshape(B * nhead, Sq, Dh)
    kv = kv.reshape(Sk, B, 2, nhead, Dh).transpose(2, 1, 3, 0, 4).reshape(2, B * nhead, Sk, Dh)
    o = attention(q, kv[0], kv[1], causal=False)
    return o.reshape(B, nhead, Sq, Dh).transpose(2, 0, 1, 3).reshape(Sq * B, D)


def encoder_layer(x, p, nhead):
    S, B, D = x.shape
    x2 = x.reshape(S * B, D)
    sa = self_attention(x, p["self_attn"], nhead, causal=False)
    # fused: out-proj + residual + LayerNorm1
    x2 = linear_res_ln(sa, p["self_attn"]["wo"], p["self_attn"]["bo"],
                       x2, p["ln1_g"], p["ln1_b"])
    h = linear(x2, p["w1"], p["b1"], activation="relu")
    # fused: FF 2nd linear + residual + LayerNorm2
    x2 = linear_res_ln(h, p["w2"], p["b2"], x2, p["ln2_g"], p["ln2_b"])
    return x2.reshape(S, B, D)


def decoder_layer(x, memory, p, nhead):
    S, B, D = x.shape
    x2 = x.reshape(S * B, D)
    sa = self_attention(x, p["self_attn"], nhead, causal=True)
    x2 = linear_res_ln(sa, p["self_attn"]["wo"], p["self_attn"]["bo"],
                       x2, p["ln1_g"], p["ln1_b"])
    ca = cross_attention(x2.reshape(S, B, D), memory, p["cross_attn"], nhead)
    x2 = linear_res_ln(ca, p["cross_attn"]["wo"], p["cross_attn"]["bo"],
                       x2, p["ln2_g"], p["ln2_b"])
    h = linear(x2, p["w1"], p["b1"], activation="relu")
    x2 = linear_res_ln(h, p["w2"], p["b2"], x2, p["ln3_g"], p["ln3_b"])
    return x2.reshape(S, B, D)


def tf_s2s_forward(params, inp, tgt, nhead):
    """inp: (B, S_in) int32 token ids, tgt: (B, S_tgt) int32 -> (B, 16, S_tgt) f32."""
    B, S_in = inp.shape
    S_tgt = tgt.shape[1]
    D = params["embedding"].shape[1]

    input2 = inp.T                                # (S_in, B)
    target2 = tgt.T                               # (S_tgt, B)

    src = params["embedding"][input2] + params["posembed"][jnp.arange(S_in)][:, None, :]
    tgt_e = params["embedding"][target2] + params["posembed"][jnp.arange(S_tgt)][:, None, :]

    # encoder
    x = src
    for lp in params["enc_layers"]:
        x = encoder_layer(x, lp, nhead)
    memory = layer_norm(x.reshape(-1, D), params["enc_norm_g"], params["enc_norm_b"]).reshape(x.shape)

    # decoder (causal self-attn mask built in-kernel)
    y = tgt_e
    for lp in params["dec_layers"]:
        y = decoder_layer(y, memory, lp, nhead)
    y = layer_norm(y.reshape(-1, D), params["dec_norm_g"], params["dec_norm_b"]).reshape(y.shape)

    # final fc: weight padded to N=128 for lane-dense stores; slice to 16 outside the kernel
    out = linear(y.reshape(S_tgt * B, D), params["fc_w"], params["fc_b"])   # (S_tgt*B, 128)
    out = out[:, :16].reshape(S_tgt, B, 16)
    return out.transpose(1, 2, 0)                 # (B, 16, S_tgt)  == .permute(1, 2, 0)


# ----------------------------------------------------------------------------
# Deterministic parameter init (synthetic weights, shapes per module __init__)
# ----------------------------------------------------------------------------
def _w(key, shape, scale=0.02):
    return scale * jax.random.normal(key, shape, jnp.float32)


def _init_mha(key, D):
    k1, k2 = jax.random.split(key, 2)
    return dict(wqkv=_w(k1, (D, 3 * D)), bqkv=jnp.zeros((3 * D,), jnp.float32),
                wo=_w(k2, (D, D)), bo=jnp.zeros((D,), jnp.float32))


def _ln(D):
    return jnp.ones((D,), jnp.float32), jnp.zeros((D,), jnp.float32)


def _init_encoder_layer(key, D, F):
    k1, k2, k3 = jax.random.split(key, 3)
    g1, b1 = _ln(D)
    g2, b2 = _ln(D)
    return dict(self_attn=_init_mha(k1, D),
                w1=_w(k2, (D, F)), b1=jnp.zeros((F,), jnp.float32),
                w2=_w(k3, (F, D)), b2=jnp.zeros((D,), jnp.float32),
                ln1_g=g1, ln1_b=b1, ln2_g=g2, ln2_b=b2)


def _init_decoder_layer(key, D, F):
    k1, k2, k3, k4 = jax.random.split(key, 4)
    g1, b1 = _ln(D)
    g2, b2 = _ln(D)
    g3, b3 = _ln(D)
    return dict(self_attn=_init_mha(k1, D),
                cross_attn=_init_mha(k2, D),
                w1=_w(k3, (D, F)), b1=jnp.zeros((F,), jnp.float32),
                w2=_w(k4, (F, D)), b2=jnp.zeros((D,), jnp.float32),
                ln1_g=g1, ln1_b=b1, ln2_g=g2, ln2_b=b2, ln3_g=g3, ln3_b=b3)


def init_params(key, model_size, maxlen, dim_ff, num_enc=3, num_dec=3, vocab=16):
    keys = jax.random.split(key, 3 + num_enc + num_dec)
    enc_g, enc_b = _ln(model_size)
    dec_g, dec_b = _ln(model_size)
    # fc weight zero-padded to 128 output columns (lane-dense store; slice to vocab outside)
    fc_w = jnp.zeros((model_size, 128), jnp.float32).at[:, :vocab].set(
        _w(keys[2], (model_size, vocab)))
    fc_b = jnp.zeros((128,), jnp.float32)
    return dict(
        embedding=_w(keys[0], (vocab, model_size), scale=1.0),
        posembed=_w(keys[1], (maxlen, model_size), scale=1.0),
        enc_layers=[_init_encoder_layer(keys[3 + i], model_size, dim_ff) for i in range(num_enc)],
        dec_layers=[_init_decoder_layer(keys[3 + num_enc + i], model_size, dim_ff) for i in range(num_dec)],
        enc_norm_g=enc_g, enc_norm_b=enc_b,
        dec_norm_g=dec_g, dec_norm_b=dec_b,
        fc_w=fc_w, fc_b=fc_b,
    )


# ----------------------------------------------------------------------------
if __name__ == "__main__":
    MODEL_SIZE = 32    # small test size (module default is 512)
    MAXLEN = 16        # small test size (module default is 128)
    NHEAD = 2
    DIM_FF = 64        # PyTorch nn.Transformer default dim_feedforward=2048; kept small here
    B, S_IN, S_TGT = 2, 8, 8

    key = jax.random.PRNGKey(0)
    pkey, ikey, tkey = jax.random.split(key, 3)

    params = init_params(pkey, MODEL_SIZE, MAXLEN, DIM_FF)
    inp = jax.random.randint(ikey, (B, S_IN), 0, 16, dtype=jnp.int32)
    tgt = jax.random.randint(tkey, (B, S_TGT), 0, 16, dtype=jnp.int32)

    fwd = jax.jit(functools.partial(tf_s2s_forward, nhead=NHEAD))
    out = jax.block_until_ready(fwd(params, inp, tgt))

    assert out.shape == (B, 16, S_TGT), out.shape
    assert out.dtype == jnp.float32
    assert bool(jnp.all(jnp.isfinite(out)))
    print("KERNEL_OK")
</pallas_src>

<mosaic_0001>
module attributes {stable_mosaic.version = 11 : i64} {
  func.func @_linear_kernel(%arg0: i32, %arg1: i32, %arg2: i32, %arg3: memref<16x32xf32, #tpu.memory_space<vmem>>, %arg4: memref<32x96xf32, #tpu.memory_space<vmem>>, %arg5: memref<1x96xf32, #tpu.memory_space<vmem>>, %arg6: memref<16x96xf32, #tpu.memory_space<vmem>>, %arg7: memref<16x96xf32, #tpu.memory_space<vmem>>) attributes {dimension_semantics = [#tpu.dimension_semantics<parallel>, #tpu.dimension_semantics<parallel>, #tpu.dimension_semantics<arbitrary>], iteration_bounds = array<i64: 1, 1, 1>, scalar_prefetch = 0 : i64, scratch_operands = 1 : i64, tpu.core_type = #tpu.core_type<tc>, window_params = [{transform_indices = @transform_0, window_bounds = array<i64: 16, 32>}, {transform_indices = @transform_1, window_bounds = array<i64: 32, 96>}, {transform_indices = @transform_2, window_bounds = array<i64: 1, 96>}, {transform_indices = @transform_3, window_bounds = array<i64: 16, 96>}]} {
    %c0_i32 = arith.constant 0 : i32
    %0 = arith.cmpi eq, %arg2, %c0_i32 : i32
    %1 = arith.extui %0 : i1 to i32
    %c0_i32_0 = arith.constant 0 : i32
    %2 = arith.cmpi ne, %1, %c0_i32_0 : i32
    scf.if %2 {
      %cst_10 = arith.constant 0.000000e+00 : f32
      %14 = vector.broadcast %cst_10 : f32 to vector<16x96xf32>
      %c0_11 = arith.constant 0 : index
      %c0_12 = arith.constant 0 : index
      %15 = vector.load %arg7[%c0_11, %c0_12] : memref<16x96xf32, #tpu.memory_space<vmem>>, vector<16x96xf32>
      tpu.vector_store %arg7[%c0_11, %c0_12], %14 {strides = array<i32>} : memref<16x96xf32, #tpu.memory_space<vmem>>, vector<16x96xf32>,
    } else {
    }
    %c0 = arith.constant 0 : index
    %c0_1 = arith.constant 0 : index
    %3 = vector.load %arg7[%c0, %c0_1] : memref<16x96xf32, #tpu.memory_space<vmem>>, vector<16x96xf32>
    %c0_2 = arith.constant 0 : index
    %c0_3 = arith.constant 0 : index
    %4 = vector.load %arg3[%c0_2, %c0_3] : memref<16x32xf32, #tpu.memory_space<vmem>>, vector<16x32xf32>
    %5 = arith.truncf %4 : vector<16x32xf32> to vector<16x32xbf16>
    %c0_4 = arith.constant 0 : index
    %c0_5 = arith.constant 0 : index
    %6 = vector.load %arg4[%c0_4, %c0_5] : memref<32x96xf32, #tpu.memory_space<vmem>>, vector<32x96xf32>
    %7 = arith.truncf %6 : vector<32x96xf32> to vector<32x96xbf16>
    %cst = arith.constant dense<0.000000e+00> : vector<16x96xf32>
    %8 = tpu.matmul %5, %7, %cst {dimension_numbers = #tpu.dot_dimension_numbers<[1], [0], [0], [1], [0, 0, 1, 1], [], []>} : vector<16x32xbf16>, vector<32x96xbf16>, vector<16x96xf32> -> vector<16x96xf32>
    %9 = arith.addf %3, %8 : vector<16x96xf32>
    %c0_6 = arith.constant 0 : index
    %c0_7 = arith.constant 0 : index
    %10 = vector.load %arg7[%c0_6, %c0_7] : memref<16x96xf32, #tpu.memory_space<vmem>>, vector<16x96xf32>
    tpu.vector_store %arg7[%c0_6, %c0_7], %9 {strides = array<i32>} : memref<16x96xf32, #tpu.memory_space<vmem>>, vector<16x96xf32>,
    %c0_i32_8 = arith.constant 0 : i32
    %11 = arith.cmpi eq, %arg2, %c0_i32_8 : i32
    %12 = arith.extui %11 : i1 to i32
    %c0_i32_9 = arith.constant 0 : i32
    %13 = arith.cmpi ne, %12, %c0_i32_9 : i32
    scf.if %13 {
      %c0_10 = arith.constant 0 : index
      %c0_11 = arith.constant 0 : index
      %14 = vector.load %arg7[%c0_10, %c0_11] : memref<16x96xf32, #tpu.memory_space<vmem>>, vector<16x96xf32>
      %c0_12 = arith.constant 0 : index
      %c0_13 = arith.constant 0 : index
      %15 = vector.load %arg5[%c0_12, %c0_13] : memref<1x96xf32, #tpu.memory_space<vmem>>, vector<1x96xf32>
      %16 = vector.broadcast %15 : vector<1x96xf32> to vector<16x96xf32>
      %17 = arith.addf %14, %16 : vector<16x96xf32>
      %c0_14 = arith.constant 0 : index
      %c0_15 = arith.constant 0 : index
      %18 = vector.load %arg6[%c0_14, %c0_15] : memref<16x96xf32, #tpu.memory_space<vmem>>, vector<16x96xf32>
      tpu.vector_store %arg6[%c0_14, %c0_15], %17 {strides = array<i32>} : memref<16x96xf32, #tpu.memory_space<vmem>>, vector<16x96xf32>,
    } else {
    }
    return
  }
  func.func @transform_0(%arg0: i32, %arg1: i32, %arg2: i32) -> (i32, i32) {
    %c0_i32 = arith.constant 0 : i32
    return %arg0, %arg2 : i32, i32
  }
  func.func @transform_1(%arg0: i32, %arg1: i32, %arg2: i32) -> (i32, i32) {
    %c0_i32 = arith.constant 0 : i32
    return %arg2, %arg1 : i32, i32
  }
  func.func @transform_2(%arg0: i32, %arg1: i32, %arg2: i32) -> (i32, i32) {
    %c0_i32 = arith.constant 0 : i32
    %c0_i32_0 = arith.constant 0 : i32
    return %c0_i32, %arg1 : i32, i32
  }
  func.func @transform_3(%arg0: i32, %arg1: i32, %arg2: i32) -> (i32, i32) {
    %c0_i32 = arith.constant 0 : i32
    return %arg0, %arg1 : i32, i32
  }
}

module attributes {stable_mosaic.version = 11 : i64} {
  func.func @_attn_kernel(%arg0: i32, %arg1: memref<4x8x16xf32, #tpu.memory_space<vmem>>, %arg2: memref<4x8x16xf32, #tpu.memory_space<vmem>>, %arg3: memref<4x8x16xf32, #tpu.memory_space<vmem>>, %arg4: memref<4x8x16xf32, #tpu.memory_space<vmem>>) attributes {dimension_semantics = [#tpu.dimension_semantics<parallel>], iteration_bounds = array<i64: 1>, scalar_prefetch = 0 : i64, scratch_operands = 0 : i64, tpu.core_type = #tpu.core_type<tc>, window_params = [{transform_indices = @transform_0, window_bounds = array<i64: 4, 8, 16>}, {transform_indices = @transform_1, window_bounds = array<i64: 4, 8, 16>}, {transform_indices = @transform_2, window_bounds = array<i64: 4, 8, 16>}, {transform_indices = @transform_3, window_bounds = array<i64: 4, 8, 16>}]} {
    %c0 = arith.constant 0 : index
    %c0_0 = arith.constant 0 : index
    %c0_1 = arith.constant 0 : index
    %0 = vector.load %arg1[%c0, %c0_0, %c0_1] : memref<4x8x16xf32, #tpu.memory_space<vmem>>, vector<4x8x16xf32>
    %1 = arith.truncf %0 : vector<4x8x16xf32> to vector<4x8x16xbf16>
    %c0_2 = arith.constant 0 : index
    %c0_3 = arith.constant 0 : index
    %c0_4 = arith.constant 0 : index
    %2 = vector.load %arg2[%c0_2, %c0_3, %c0_4] : memref<4x8x16xf32, #tpu.memory_space<vmem>>, vector<4x8x16xf32>
    %3 = arith.truncf %2 : vector<4x8x16xf32> to vector<4x8x16xbf16>
    "tpu.trace_start"() <{level = 10 : i32, message = "gqd,gkd->gqk"}> : () -> ()
    %cst = arith.constant dense<0.000000e+00> : vector<4x8x8xf32>
    %4 = tpu.matmul %1, %3, %cst {dimension_numbers = #tpu.dot_dimension_numbers<[2], [2], [1], [1], [0, 0, 0, 1, 1, 1], [0], [0]>} : vector<4x8x16xbf16>, vector<4x8x16xbf16>, vector<4x8x8xf32> -> vector<4x8x8xf32>
    "tpu.trace_stop"() : () -> ()
    %cst_5 = arith.constant 2.500000e-01 : f32
    %5 = vector.broadcast %cst_5 : f32 to vector<4x8x8xf32>
    %6 = arith.mulf %4, %5 : vector<4x8x8xf32>
    %7 = tpu.iota {dimensions = array<i32: 1>} : vector<4x8x8xi32>
    %8 = tpu.iota {dimensions = array<i32: 2>} : vector<4x8x8xi32>
    %9 = arith.cmpi sle, %8, %7 : vector<4x8x8xi32>
    %cst_6 = arith.constant -1.000000e+30 : f32
    %10 = vector.broadcast %cst_6 : f32 to vector<4x8x8xf32>
    %11 = arith.select %9, %6, %10 : vector<4x8x8xi1>, vector<4x8x8xf32>
    %cst_7 = arith.constant dense<0xFF800000> : vector<4x8xf32>
    %12 = vector.multi_reduction <maximumf>, %11, %cst_7 [2] : vector<4x8x8xf32> to vector<4x8xf32>
    %13 = vector.shape_cast %12 : vector<4x8xf32> to vector<4x8x1xf32>
    %14 = vector.broadcast %13 : vector<4x8x1xf32> to vector<4x8x8xf32>
    %15 = arith.subf %11, %14 : vector<4x8x8xf32>
    %16 = math.exp %15 : vector<4x8x8xf32>
    %cst_8 = arith.constant dense<0.000000e+00> : vector<4x8xf32>
    %17 = vector.multi_reduction <add>, %16, %cst_8 [2] : vector<4x8x8xf32> to vector<4x8xf32>
    %18 = vector.shape_cast %17 : vector<4x8xf32> to vector<4x8x1xf32>
    %19 = arith.truncf %16 : vector<4x8x8xf32> to vector<4x8x8xbf16>
    %c0_9 = arith.constant 0 : index
    %c0_10 = arith.constant 0 : index
    %c0_11 = arith.constant 0 : index
    %20 = vector.load %arg3[%c0_9, %c0_10, %c0_11] : memref<4x8x16xf32, #tpu.memory_space<vmem>>, vector<4x8x16xf32>
    %21 = arith.truncf %20 : vector<4x8x16xf32> to vector<4x8x16xbf16>
    "tpu.trace_start"() <{level = 10 : i32, message = "gqk,gkd->gqd"}> : () -> ()
    %cst_12 = arith.constant dense<0.000000e+00> : vector<4x8x16xf32>
    %22 = tpu.matmul %19, %21, %cst_12 {dimension_numbers = #tpu.dot_dimension_numbers<[2], [1], [1], [2], [0, 0, 0, 1, 1, 2], [0], [0]>} : vector<4x8x8xbf16>, vector<4x8x16xbf16>, vector<4x8x16xf32> -> vector<4x8x16xf32>
    "tpu.trace_stop"() : () -> ()
    %23 = tpu.reciprocal %18 {approx = true} : vector<4x8x1xf32> -> vector<4x8x1xf32>
    %24 = vector.broadcast %23 : vector<4x8x1xf32> to vector<4x8x16xf32>
    %25 = arith.mulf %22, %24 : vector<4x8x16xf32>
    %c0_13 = arith.constant 0 : index
    %c0_14 = arith.constant 0 : index
    %c0_15 = arith.constant 0 : index
    %26 = vector.load %arg4[%c0_13, %c0_14, %c0_15] : memref<4x8x16xf32, #tpu.memory_space<vmem>>, vector<4x8x16xf32>
    tpu.vector_store %arg4[%c0_13, %c0_14, %c0_15], %25 {strides = array<i32>} : memref<4x8x16xf32, #tpu.memory_space<vmem>>, vector<4x8x16xf32>,
    return
  }
  func.func @transform_0(%arg0: i32) -> (i32, i32, i32) {
    %c0_i32 = arith.constant 0 : i32
    %c0_i32_0 = arith.constant 0 : i32
    %c0_i32_1 = arith.constant 0 : i32
    return %arg0, %c0_i32, %c0_i32_0 : i32, i32, i32
  }
  func.func @transform_1(%arg0: i32) -> (i32, i32, i32) {
    %c0_i32 = arith.constant 0 : i32
    %c0_i32_0 = arith.constant 0 : i32
    %c0_i32_1 = arith.constant 0 : i32
    return %arg0, %c0_i32, %c0_i32_0 : i32, i32, i32
  }
  func.func @transform_2(%arg0: i32) -> (i32, i32, i32) {
    %c0_i32 = arith.constant 0 : i32
    %c0_i32_0 = arith.constant 0 : i32
    %c0_i32_1 = arith.constant 0 : i32
    return %arg0, %c0_i32, %c0_i32_0 : i32, i32, i32
  }
  func.func @transform_3(%arg0: i32) -> (i32, i32, i32) {
    %c0_i32 = arith.constant 0 : i32
    %c0_i32_0 = arith.constant 0 : i32
    %c0_i32_1 = arith.constant 0 : i32
    return %arg0, %c0_i32, %c0_i32_0 : i32, i32, i32
  }
}

module attributes {stable_mosaic.version = 11 : i64} {
  func.func @_linear_res_ln_kernel(%arg0: i32, %arg1: i32, %arg2: memref<16x32xf32, #tpu.memory_space<vmem>>, %arg3: memref<32x32xf32, #tpu.memory_space<vmem>>, %arg4: memref<1x32xf32, #tpu.memory_space<vmem>>, %arg5: memref<16x32xf32, #tpu.memory_space<vmem>>, %arg6: memref<1x32xf32, #tpu.memory_space<vmem>>, %arg7: memref<1x32xf32, #tpu.memory_space<vmem>>, %arg8: memref<16x32xf32, #tpu.memory_space<vmem>>, %arg9: memref<16x32xf32, #tpu.memory_space<vmem>>) attributes {dimension_semantics = [#tpu.dimension_semantics<parallel>, #tpu.dimension_semantics<arbitrary>], iteration_bounds = array<i64: 1, 1>, scalar_prefetch = 0 : i64, scratch_operands = 1 : i64, tpu.core_type = #tpu.core_type<tc>, window_params = [{transform_indices = @transform_0, window_bounds = array<i64: 16, 32>}, {transform_indices = @transform_1, window_bounds = array<i64: 32, 32>}, {pipeline_mode = #tpu.pipeline_mode<synchronous>, transform_indices = @transform_2, window_bounds = array<i64: 1, 32>}, {transform_indices = @transform_3, window_bounds = array<i64: 16, 32>}, {pipeline_mode = #tpu.pipeline_mode<synchronous>, transform_indices = @transform_4, window_bounds = array<i64: 1, 32>}, {pipeline_mode = #tpu.pipeline_mode<synchronous>, transform_indices = @transform_5, window_bounds = array<i64: 1, 32>}, {transform_indices = @transform_6, window_bounds = array<i64: 16, 32>}]} {
    %c0_i32 = arith.constant 0 : i32
    %0 = arith.cmpi eq, %arg1, %c0_i32 : i32
    %1 = arith.extui %0 : i1 to i32
    %c0_i32_0 = arith.constant 0 : i32
    %2 = arith.cmpi ne, %1, %c0_i32_0 : i32
    scf.if %2 {
      %cst_10 = arith.constant 0.000000e+00 : f32
      %14 = vector.broadcast %cst_10 : f32 to vector<16x32xf32>
      %c0_11 = arith.constant 0 : index
      %c0_12 = arith.constant 0 : index
      %15 = vector.load %arg9[%c0_11, %c0_12] : memref<16x32xf32, #tpu.memory_space<vmem>>, vector<16x32xf32>
      tpu.vector_store %arg9[%c0_11, %c0_12], %14 {strides = array<i32>} : memref<16x32xf32, #tpu.memory_space<vmem>>, vector<16x32xf32>,
    } else {
    }
    %c0 = arith.constant 0 : index
    %c0_1 = arith.constant 0 : index
    %3 = vector.load %arg9[%c0, %c0_1] : memref<16x32xf32, #tpu.memory_space<vmem>>, vector<16x32xf32>
    %c0_2 = arith.constant 0 : index
    %c0_3 = arith.constant 0 : index
    %4 = vector.load %arg2[%c0_2, %c0_3] : memref<16x32xf32, #tpu.memory_space<vmem>>, vector<16x32xf32>
    %5 = arith.truncf %4 : vector<16x32xf32> to vector<16x32xbf16>
    %c0_4 = arith.constant 0 : index
    %c0_5 = arith.constant 0 : index
    %6 = vector.load %arg3[%c0_4, %c0_5] : memref<32x32xf32, #tpu.memory_space<vmem>>, vector<32x32xf32>
    %7 = arith.truncf %6 : vector<32x32xf32> to vector<32x32xbf16>
    %cst = arith.constant dense<0.000000e+00> : vector<16x32xf32>
    %8 = tpu.matmul %5, %7, %cst {dimension_numbers = #tpu.dot_dimension_numbers<[1], [0], [0], [1], [0, 0, 1, 1], [], []>} : vector<16x32xbf16>, vector<32x32xbf16>, vector<16x32xf32> -> vector<16x32xf32>
    %9 = arith.addf %3, %8 : vector<16x32xf32>
    %c0_6 = arith.constant 0 : index
    %c0_7 = arith.constant 0 : index
    %10 = vector.load %arg9[%c0_6, %c0_7] : memref<16x32xf32, #tpu.memory_space<vmem>>, vector<16x32xf32>
    tpu.vector_store %arg9[%c0_6, %c0_7], %9 {strides = array<i32>} : memref<16x32xf32, #tpu.memory_space<vmem>>, vector<16x32xf32>,
    %c0_i32_8 = arith.constant 0 : i32
    %11 = arith.cmpi eq, %arg1, %c0_i32_8 : i32
    %12 = arith.extui %11 : i1 to i32
    %c0_i32_9 = arith.constant 0 : i32
    %13 = arith.cmpi ne, %12, %c0_i32_9 : i32
    scf.if %13 {
      %c0_10 = arith.constant 0 : index
      %c0_11 = arith.constant 0 : index
      %14 = vector.load %arg9[%c0_10, %c0_11] : memref<16x32xf32, #tpu.memory_space<vmem>>, vector<16x32xf32>
      %c0_12 = arith.constant 0 : index
      %c0_13 = arith.constant 0 : index
      %15 = vector.load %arg4[%c0_12, %c0_13] : memref<1x32xf32, #tpu.memory_space<vmem>>, vector<1x32xf32>
      %16 = vector.broadcast %15 : vector<1x32xf32> to vector<16x32xf32>
      %17 = arith.addf %14, %16 : vector<16x32xf32>
      %c0_14 = arith.constant 0 : index
      %c0_15 = arith.constant 0 : index
      %18 = vector.load %arg5[%c0_14, %c0_15] : memref<16x32xf32, #tpu.memory_space<vmem>>, vector<16x32xf32>
      %19 = arith.addf %17, %18 : vector<16x32xf32>
      %cst_16 = arith.constant dense<0.000000e+00> : vector<16xf32>
      %20 = vector.multi_reduction <add>, %19, %cst_16 [1] : vector<16x32xf32> to vector<16xf32>
      %21 = vector.shape_cast %20 : vector<16xf32> to vector<16x1xf32>
      %cst_17 = arith.constant 3.200000e+01 : f32
      %22 = vector.broadcast %cst_17 : f32 to vector<16x1xf32>
      %23 = arith.divf %21, %22 : vector<16x1xf32>
      %24 = vector.broadcast %23 : vector<16x1xf32> to vector<16x32xf32>
      %25 = arith.subf %19, %24 : vector<16x32xf32>
      %26 = arith.mulf %25, %25 : vector<16x32xf32>
      %cst_18 = arith.constant dense<0.000000e+00> : vector<16xf32>
      %27 = vector.multi_reduction <add>, %26, %cst_18 [1] : vector<16x32xf32> to vector<16xf32>
      %28 = vector.shape_cast %27 : vector<16xf32> to vector<16x1xf32>
      %cst_19 = arith.constant 3.200000e+01 : f32
      %29 = vector.broadcast %cst_19 : f32 to vector<16x1xf32>
      %30 = arith.divf %28, %29 : vector<16x1xf32>
      %cst_20 = arith.constant 9.99999974E-6 : f32
      %31 = vector.broadcast %cst_20 : f32 to vector<16x1xf32>
      %32 = arith.addf %30, %31 : vector<16x1xf32>
      %33 = math.rsqrt %32 : vector<16x1xf32>
      %34 = vector.broadcast %23 : vector<16x1xf32> to vector<16x32xf32>
      %35 = arith.subf %19, %34 : vector<16x32xf32>
      %36 = vector.broadcast %33 : vector<16x1xf32> to vector<16x32xf32>
      %37 = arith.mulf %35, %36 : vector<16x32xf32>
      %c0_21 = arith.constant 0 : index
      %c0_22 = arith.constant 0 : index
      %38 = vector.load %arg6[%c0_21, %c0_22] : memref<1x32xf32, #tpu.memory_space<vmem>>, vector<1x32xf32>
      %39 = vector.broadcast %38 : vector<1x32xf32> to vector<16x32xf32>
      %40 = arith.mulf %37, %39 : vector<16x32xf32>
      %c0_23 = arith.constant 0 : index
      %c0_24 = arith.constant 0 : index
      %41 = vector.load %arg7[%c0_23, %c0_24] : memref<1x32xf32, #tpu.memory_space<vmem>>, vector<1x32xf32>
      %42 = vector.broadcast %41 : vector<1x32xf32> to vector<16x32xf32>
      %43 = arith.addf %40, %42 : vector<16x32xf32>
      %c0_25 = arith.constant 0 : index
      %c0_26 = arith.constant 0 : index
      %44 = vector.load %arg8[%c0_25, %c0_26] : memref<16x32xf32, #tpu.memory_space<vmem>>, vector<16x32xf32>
      tpu.vector_store %arg8[%c0_25, %c0_26], %43 {strides = array<i32>} : memref<16x32xf32, #tpu.memory_space<vmem>>, vector<16x32xf32>,
    } else {
    }
    return
  }
  func.func @transform_0(%arg0: i32, %arg1: i32) -> (i32, i32) {
    %c0_i32 = arith.constant 0 : i32
    return %arg0, %arg1 : i32, i32
  }
  func.func @transform_1(%arg0: i32, %arg1: i32) -> (i32, i32) {
    %c0_i32 = arith.constant 0 : i32
    %c0_i32_0 = arith.constant 0 : i32
    return %arg1, %c0_i32 : i32, i32
  }
  func.func @transform_2(%arg0: i32, %arg1: i32) -> (i32, i32) {
    %c0_i32 = arith.constant 0 : i32
    %c0_i32_0 = arith.constant 0 : i32
    %c0_i32_1 = arith.constant 0 : i32
    return %c0_i32, %c0_i32_0 : i32, i32
  }
  func.func @transform_3(%arg0: i32, %arg1: i32) -> (i32, i32) {
    %c0_i32 = arith.constant 0 : i32
    %c0_i32_0 = arith.constant 0 : i32
    return %arg0, %c0_i32 : i32, i32
  }
  func.func @transform_4(%arg0: i32, %arg1: i32) -> (i32, i32) {
    %c0_i32 = arith.constant 0 : i32
    %c0_i32_0 = arith.constant 0 : i32
    %c0_i32_1 = arith.constant 0 : i32
    return %c0_i32, %c0_i32_0 : i32, i32
  }
  func.func @transform_5(%arg0: i32, %arg1: i32) -> (i32, i32) {
    %c0_i32 = arith.constant 0 : i32
    %c0_i32_0 = arith.constant 0 : i32
    %c0_i32_1 = arith.constant 0 : i32
    return %c0_i32, %c0_i32_0 : i32, i32
  }
  func.func @transform_6(%arg0: i32, %arg1: i32) -> (i32, i32) {
    %c0_i32 = arith.constant 0 : i32
    %c0_i32_0 = arith.constant 0 : i32
    return %arg0, %c0_i32 : i32, i32
  }
}

module attributes {stable_mosaic.version = 11 : i64} {
  func.func @_linear_kernel(%arg0: i32, %arg1: i32, %arg2: i32, %arg3: memref<16x32xf32, #tpu.memory_space<vmem>>, %arg4: memref<32x32xf32, #tpu.memory_space<vmem>>, %arg5: memref<1x32xf32, #tpu.memory_space<vmem>>, %arg6: memref<16x32xf32, #tpu.memory_space<vmem>>, %arg7: memref<16x32xf32, #tpu.memory_space<vmem>>) attributes {dimension_semantics = [#tpu.dimension_semantics<parallel>, #tpu.dimension_semantics<parallel>, #tpu.dimension_semantics<arbitrary>], iteration_bounds = array<i64: 1, 1, 1>, scalar_prefetch = 0 : i64, scratch_operands = 1 : i64, tpu.core_type = #tpu.core_type<tc>, window_params = [{transform_indices = @transform_0, window_bounds = array<i64: 16, 32>}, {transform_indices = @transform_1, window_bounds = array<i64: 32, 32>}, {transform_indices = @transform_2, window_bounds = array<i64: 1, 32>}, {transform_indices = @transform_3, window_bounds = array<i64: 16, 32>}]} {
    %c0_i32 = arith.constant 0 : i32
    %0 = arith.cmpi eq, %arg2, %c0_i32 : i32
    %1 = arith.extui %0 : i1 to i32
    %c0_i32_0 = arith.constant 0 : i32
    %2 = arith.cmpi ne, %1, %c0_i32_0 : i32
    scf.if %2 {
      %cst_10 = arith.constant 0.000000e+00 : f32
      %14 = vector.broadcast %cst_10 : f32 to vector<16x32xf32>
      %c0_11 = arith.constant 0 : index
      %c0_12 = arith.constant 0 : index
      %15 = vector.load %arg7[%c0_11, %c0_12] : memref<16x32xf32, #tpu.memory_space<vmem>>, vector<16x32xf32>
      tpu.vector_store %arg7[%c0_11, %c0_12], %14 {strides = array<i32>} : memref<16x32xf32, #tpu.memory_space<vmem>>, vector<16x32xf32>,
    } else {
    }
    %c0 = arith.constant 0 : index
    %c0_1 = arith.constant 0 : index
    %3 = vector.load %arg7[%c0, %c0_1] : memref<16x32xf32, #tpu.memory_space<vmem>>, vector<16x32xf32>
    %c0_2 = arith.constant 0 : index
    %c0_3 = arith.constant 0 : index
    %4 = vector.load %arg3[%c0_2, %c0_3] : memref<16x32xf32, #tpu.memory_space<vmem>>, vector<16x32xf32>
    %5 = arith.truncf %4 : vector<16x32xf32> to vector<16x32xbf16>
    %c0_4 = arith.constant 0 : index
    %c0_5 = arith.constant 0 : index
    %6 = vector.load %arg4[%c0_4, %c0_5] : memref<32x32xf32, #tpu.memory_space<vmem>>, vector<32x32xf32>
    %7 = arith.truncf %6 : vector<32x32xf32> to vector<32x32xbf16>
    %cst = arith.constant dense<0.000000e+00> : vector<16x32xf32>
    %8 = tpu.matmul %5, %7, %cst {dimension_numbers = #tpu.dot_dimension_numbers<[1], [0], [0], [1], [0, 0, 1, 1], [], []>} : vector<16x32xbf16>, vector<32x32xbf16>, vector<16x32xf32> -> vector<16x32xf32>
    %9 = arith.addf %3, %8 : vector<16x32xf32>
    %c0_6 = arith.constant 0 : index
    %c0_7 = arith.constant 0 : index
    %10 = vector.load %arg7[%c0_6, %c0_7] : memref<16x32xf32, #tpu.memory_space<vmem>>, vector<16x32xf32>
    tpu.vector_store %arg7[%c0_6, %c0_7], %9 {strides = array<i32>} : memref<16x32xf32, #tpu.memory_space<vmem>>, vector<16x32xf32>,
    %c0_i32_8 = arith.constant 0 : i32
    %11 = arith.cmpi eq, %arg2, %c0_i32_8 : i32
    %12 = arith.extui %11 : i1 to i32
    %c0_i32_9 = arith.constant 0 : i32
    %13 = arith.cmpi ne, %12, %c0_i32_9 : i32
    scf.if %13 {
      %c0_10 = arith.constant 0 : index
      %c0_11 = arith.constant 0 : index
      %14 = vector.load %arg7[%c0_10, %c0_11] : memref<16x32xf32, #tpu.memory_space<vmem>>, vector<16x32xf32>
      %c0_12 = arith.constant 0 : index
      %c0_13 = arith.constant 0 : index
      %15 = vector.load %arg5[%c0_12, %c0_13] : memref<1x32xf32, #tpu.memory_space<vmem>>, vector<1x32xf32>
      %16 = vector.broadcast %15 : vector<1x32xf32> to vector<16x32xf32>
      %17 = arith.addf %14, %16 : vector<16x32xf32>
      %c0_14 = arith.constant 0 : index
      %c0_15 = arith.constant 0 : index
      %18 = vector.load %arg6[%c0_14, %c0_15] : memref<16x32xf32, #tpu.memory_space<vmem>>, vector<16x32xf32>
      tpu.vector_store %arg6[%c0_14, %c0_15], %17 {strides = array<i32>} : memref<16x32xf32, #tpu.memory_space<vmem>>, vector<16x32xf32>,
    } else {
    }
    return
  }
  func.func @transform_0(%arg0: i32, %arg1: i32, %arg2: i32) -> (i32, i32) {
    %c0_i32 = arith.constant 0 : i32
    return %arg0, %arg2 : i32, i32
  }
  func.func @transform_1(%arg0: i32, %arg1: i32, %arg2: i32) -> (i32, i32) {
    %c0_i32 = arith.constant 0 : i32
    return %arg2, %arg1 : i32, i32
  }
  func.func @transform_2(%arg0: i32, %arg1: i32, %arg2: i32) -> (i32, i32) {
    %c0_i32 = arith.constant 0 : i32
    %c0_i32_0 = arith.constant 0 : i32
    return %c0_i32, %arg1 : i32, i32
  }
  func.func @transform_3(%arg0: i32, %arg1: i32, %arg2: i32) -> (i32, i32) {
    %c0_i32 = arith.constant 0 : i32
    return %arg0, %arg1 : i32, i32
  }
}

module attributes {stable_mosaic.version = 11 : i64} {
  func.func @_linear_kernel(%arg0: i32, %arg1: i32, %arg2: i32, %arg3: memref<16x32xf32, #tpu.memory_space<vmem>>, %arg4: memref<32x64xf32, #tpu.memory_space<vmem>>, %arg5: memref<1x64xf32, #tpu.memory_space<vmem>>, %arg6: memref<16x64xf32, #tpu.memory_space<vmem>>, %arg7: memref<16x64xf32, #tpu.memory_space<vmem>>) attributes {dimension_semantics = [#tpu.dimension_semantics<parallel>, #tpu.dimension_semantics<parallel>, #tpu.dimension_semantics<arbitrary>], iteration_bounds = array<i64: 1, 1, 1>, scalar_prefetch = 0 : i64, scratch_operands = 1 : i64, tpu.core_type = #tpu.core_type<tc>, window_params = [{transform_indices = @transform_0, window_bounds = array<i64: 16, 32>}, {transform_indices = @transform_1, window_bounds = array<i64: 32, 64>}, {transform_indices = @transform_2, window_bounds = array<i64: 1, 64>}, {transform_indices = @transform_3, window_bounds = array<i64: 16, 64>}]} {
    %c0_i32 = arith.constant 0 : i32
    %0 = arith.cmpi eq, %arg2, %c0_i32 : i32
    %1 = arith.extui %0 : i1 to i32
    %c0_i32_0 = arith.constant 0 : i32
    %2 = arith.cmpi ne, %1, %c0_i32_0 : i32
    scf.if %2 {
      %cst_10 = arith.constant 0.000000e+00 : f32
      %14 = vector.broadcast %cst_10 : f32 to vector<16x64xf32>
      %c0_11 = arith.constant 0 : index
      %c0_12 = arith.constant 0 : index
      %15 = vector.load %arg7[%c0_11, %c0_12] : memref<16x64xf32, #tpu.memory_space<vmem>>, vector<16x64xf32>
      tpu.vector_store %arg7[%c0_11, %c0_12], %14 {strides = array<i32>} : memref<16x64xf32, #tpu.memory_space<vmem>>, vector<16x64xf32>,
    } else {
    }
    %c0 = arith.constant 0 : index
    %c0_1 = arith.constant 0 : index
    %3 = vector.load %arg7[%c0, %c0_1] : memref<16x64xf32, #tpu.memory_space<vmem>>, vector<16x64xf32>
    %c0_2 = arith.constant 0 : index
    %c0_3 = arith.constant 0 : index
    %4 = vector.load %arg3[%c0_2, %c0_3] : memref<16x32xf32, #tpu.memory_space<vmem>>, vector<16x32xf32>
    %5 = arith.truncf %4 : vector<16x32xf32> to vector<16x32xbf16>
    %c0_4 = arith.constant 0 : index
    %c0_5 = arith.constant 0 : index
    %6 = vector.load %arg4[%c0_4, %c0_5] : memref<32x64xf32, #tpu.memory_space<vmem>>, vector<32x64xf32>
    %7 = arith.truncf %6 : vector<32x64xf32> to vector<32x64xbf16>
    %cst = arith.constant dense<0.000000e+00> : vector<16x64xf32>
    %8 = tpu.matmul %5, %7, %cst {dimension_numbers = #tpu.dot_dimension_numbers<[1], [0], [0], [1], [0, 0, 1, 1], [], []>} : vector<16x32xbf16>, vector<32x64xbf16>, vector<16x64xf32> -> vector<16x64xf32>
    %9 = arith.addf %3, %8 : vector<16x64xf32>
    %c0_6 = arith.constant 0 : index
    %c0_7 = arith.constant 0 : index
    %10 = vector.load %arg7[%c0_6, %c0_7] : memref<16x64xf32, #tpu.memory_space<vmem>>, vector<16x64xf32>
    tpu.vector_store %arg7[%c0_6, %c0_7], %9 {strides = array<i32>} : memref<16x64xf32, #tpu.memory_space<vmem>>, vector<16x64xf32>,
    %c0_i32_8 = arith.constant 0 : i32
    %11 = arith.cmpi eq, %arg2, %c0_i32_8 : i32
    %12 = arith.extui %11 : i1 to i32
    %c0_i32_9 = arith.constant 0 : i32
    %13 = arith.cmpi ne, %12, %c0_i32_9 : i32
    scf.if %13 {
      %c0_10 = arith.constant 0 : index
      %c0_11 = arith.constant 0 : index
      %14 = vector.load %arg7[%c0_10, %c0_11] : memref<16x64xf32, #tpu.memory_space<vmem>>, vector<16x64xf32>
      %c0_12 = arith.constant 0 : index
      %c0_13 = arith.constant 0 : index
      %15 = vector.load %arg5[%c0_12, %c0_13] : memref<1x64xf32, #tpu.memory_space<vmem>>, vector<1x64xf32>
      %16 = vector.broadcast %15 : vector<1x64xf32> to vector<16x64xf32>
      %17 = arith.addf %14, %16 : vector<16x64xf32>
      %cst_14 = arith.constant 0.000000e+00 : f32
      %18 = vector.broadcast %cst_14 : f32 to vector<16x64xf32>
      %19 = arith.maximumf %17, %18 : vector<16x64xf32>
      %c0_15 = arith.constant 0 : index
      %c0_16 = arith.constant 0 : index
      %20 = vector.load %arg6[%c0_15, %c0_16] : memref<16x64xf32, #tpu.memory_space<vmem>>, vector<16x64xf32>
      tpu.vector_store %arg6[%c0_15, %c0_16], %19 {strides = array<i32>} : memref<16x64xf32, #tpu.memory_space<vmem>>, vector<16x64xf32>,
    } else {
    }
    return
  }
  func.func @transform_0(%arg0: i32, %arg1: i32, %arg2: i32) -> (i32, i32) {
    %c0_i32 = arith.constant 0 : i32
    return %arg0, %arg2 : i32, i32
  }
  func.func @transform_1(%arg0: i32, %arg1: i32, %arg2: i32) -> (i32, i32) {
    %c0_i32 = arith.constant 0 : i32
    return %arg2, %arg1 : i32, i32
  }
  func.func @transform_2(%arg0: i32, %arg1: i32, %arg2: i32) -> (i32, i32) {
    %c0_i32 = arith.constant 0 : i32
    %c0_i32_0 = arith.constant 0 : i32
    return %c0_i32, %arg1 : i32, i32
  }
  func.func @transform_3(%arg0: i32, %arg1: i32, %arg2: i32) -> (i32, i32) {
    %c0_i32 = arith.constant 0 : i32
    return %arg0, %arg1 : i32, i32
  }
}

module attributes {stable_mosaic.version = 11 : i64} {
  func.func @_attn_kernel(%arg0: i32, %arg1: memref<4x8x16xf32, #tpu.memory_space<vmem>>, %arg2: memref<4x8x16xf32, #tpu.memory_space<vmem>>, %arg3: memref<4x8x16xf32, #tpu.memory_space<vmem>>, %arg4: memref<4x8x16xf32, #tpu.memory_space<vmem>>) attributes {dimension_semantics = [#tpu.dimension_semantics<parallel>], iteration_bounds = array<i64: 1>, scalar_prefetch = 0 : i64, scratch_operands = 0 : i64, tpu.core_type = #tpu.core_type<tc>, window_params = [{transform_indices = @transform_0, window_bounds = array<i64: 4, 8, 16>}, {transform_indices = @transform_1, window_bounds = array<i64: 4, 8, 16>}, {transform_indices = @transform_2, window_bounds = array<i64: 4, 8, 16>}, {transform_indices = @transform_3, window_bounds = array<i64: 4, 8, 16>}]} {
    %c0 = arith.constant 0 : index
    %c0_0 = arith.constant 0 : index
    %c0_1 = arith.constant 0 : index
    %0 = vector.load %arg1[%c0, %c0_0, %c0_1] : memref<4x8x16xf32, #tpu.memory_space<vmem>>, vector<4x8x16xf32>
    %1 = arith.truncf %0 : vector<4x8x16xf32> to vector<4x8x16xbf16>
    %c0_2 = arith.constant 0 : index
    %c0_3 = arith.constant 0 : index
    %c0_4 = arith.constant 0 : index
    %2 = vector.load %arg2[%c0_2, %c0_3, %c0_4] : memref<4x8x16xf32, #tpu.memory_space<vmem>>, vector<4x8x16xf32>
    %3 = arith.truncf %2 : vector<4x8x16xf32> to vector<4x8x16xbf16>
    "tpu.trace_start"() <{level = 10 : i32, message = "gqd,gkd->gqk"}> : () -> ()
    %cst = arith.constant dense<0.000000e+00> : vector<4x8x8xf32>
    %4 = tpu.matmul %1, %3, %cst {dimension_numbers = #tpu.dot_dimension_numbers<[2], [2], [1], [1], [0, 0, 0, 1, 1, 1], [0], [0]>} : vector<4x8x16xbf16>, vector<4x8x16xbf16>, vector<4x8x8xf32> -> vector<4x8x8xf32>
    "tpu.trace_stop"() : () -> ()
    %cst_5 = arith.constant 2.500000e-01 : f32
    %5 = vector.broadcast %cst_5 : f32 to vector<4x8x8xf32>
    %6 = arith.mulf %4, %5 : vector<4x8x8xf32>
    %cst_6 = arith.constant dense<0xFF800000> : vector<4x8xf32>
    %7 = vector.multi_reduction <maximumf>, %6, %cst_6 [2] : vector<4x8x8xf32> to vector<4x8xf32>
    %8 = vector.shape_cast %7 : vector<4x8xf32> to vector<4x8x1xf32>
    %9 = vector.broadcast %8 : vector<4x8x1xf32> to vector<4x8x8xf32>
    %10 = arith.subf %6, %9 : vector<4x8x8xf32>
    %11 = math.exp %10 : vector<4x8x8xf32>
    %cst_7 = arith.constant dense<0.000000e+00> : vector<4x8xf32>
    %12 = vector.multi_reduction <add>, %11, %cst_7 [2] : vector<4x8x8xf32> to vector<4x8xf32>
    %13 = vector.shape_cast %12 : vector<4x8xf32> to vector<4x8x1xf32>
    %14 = arith.truncf %11 : vector<4x8x8xf32> to vector<4x8x8xbf16>
    %c0_8 = arith.constant 0 : index
    %c0_9 = arith.constant 0 : index
    %c0_10 = arith.constant 0 : index
    %15 = vector.load %arg3[%c0_8, %c0_9, %c0_10] : memref<4x8x16xf32, #tpu.memory_space<vmem>>, vector<4x8x16xf32>
    %16 = arith.truncf %15 : vector<4x8x16xf32> to vector<4x8x16xbf16>
    "tpu.trace_start"() <{level = 10 : i32, message = "gqk,gkd->gqd"}> : () -> ()
    %cst_11 = arith.constant dense<0.000000e+00> : vector<4x8x16xf32>
    %17 = tpu.matmul %14, %16, %cst_11 {dimension_numbers = #tpu.dot_dimension_numbers<[2], [1], [1], [2], [0, 0, 0, 1, 1, 2], [0], [0]>} : vector<4x8x8xbf16>, vector<4x8x16xbf16>, vector<4x8x16xf32> -> vector<4x8x16xf32>
    "tpu.trace_stop"() : () -> ()
    %18 = tpu.reciprocal %13 {approx = true} : vector<4x8x1xf32> -> vector<4x8x1xf32>
    %19 = vector.broadcast %18 : vector<4x8x1xf32> to vector<4x8x16xf32>
    %20 = arith.mulf %17, %19 : vector<4x8x16xf32>
    %c0_12 = arith.constant 0 : index
    %c0_13 = arith.constant 0 : index
    %c0_14 = arith.constant 0 : index
    %21 = vector.load %arg4[%c0_12, %c0_13, %c0_14] : memref<4x8x16xf32, #tpu.memory_space<vmem>>, vector<4x8x16xf32>
    tpu.vector_store %arg4[%c0_12, %c0_13, %c0_14], %20 {strides = array<i32>} : memref<4x8x16xf32, #tpu.memory_space<vmem>>, vector<4x8x16xf32>,
    return
  }
  func.func @transform_0(%arg0: i32) -> (i32, i32, i32) {
    %c0_i32 = arith.constant 0 : i32
    %c0_i32_0 = arith.constant 0 : i32
    %c0_i32_1 = arith.constant 0 : i32
    return %arg0, %c0_i32, %c0_i32_0 : i32, i32, i32
  }
  func.func @transform_1(%arg0: i32) -> (i32, i32, i32) {
    %c0_i32 = arith.constant 0 : i32
    %c0_i32_0 = arith.constant 0 : i32
    %c0_i32_1 = arith.constant 0 : i32
    return %arg0, %c0_i32, %c0_i32_0 : i32, i32, i32
  }
  func.func @transform_2(%arg0: i32) -> (i32, i32, i32) {
    %c0_i32 = arith.constant 0 : i32
    %c0_i32_0 = arith.constant 0 : i32
    %c0_i32_1 = arith.constant 0 : i32
    return %arg0, %c0_i32, %c0_i32_0 : i32, i32, i32
  }
  func.func @transform_3(%arg0: i32) -> (i32, i32, i32) {
    %c0_i32 = arith.constant 0 : i32
    %c0_i32_0 = arith.constant 0 : i32
    %c0_i32_1 = arith.constant 0 : i32
    return %arg0, %c0_i32, %c0_i32_0 : i32, i32, i32
  }
}

module attributes {stable_mosaic.version = 11 : i64} {
  func.func @_layernorm_kernel(%arg0: i32, %arg1: memref<16x32xf32, #tpu.memory_space<vmem>>, %arg2: memref<1x32xf32, #tpu.memory_space<vmem>>, %arg3: memref<1x32xf32, #tpu.memory_space<vmem>>, %arg4: memref<16x32xf32, #tpu.memory_space<vmem>>) attributes {dimension_semantics = [#tpu.dimension_semantics<parallel>], iteration_bounds = array<i64: 1>, scalar_prefetch = 0 : i64, scratch_operands = 0 : i64, tpu.core_type = #tpu.core_type<tc>, window_params = [{transform_indices = @transform_0, window_bounds = array<i64: 16, 32>}, {pipeline_mode = #tpu.pipeline_mode<synchronous>, transform_indices = @transform_1, window_bounds = array<i64: 1, 32>}, {pipeline_mode = #tpu.pipeline_mode<synchronous>, transform_indices = @transform_2, window_bounds = array<i64: 1, 32>}, {transform_indices = @transform_3, window_bounds = array<i64: 16, 32>}]} {
    %c0 = arith.constant 0 : index
    %c0_0 = arith.constant 0 : index
    %0 = vector.load %arg1[%c0, %c0_0] : memref<16x32xf32, #tpu.memory_space<vmem>>, vector<16x32xf32>
    %cst = arith.constant dense<0.000000e+00> : vector<16xf32>
    %1 = vector.multi_reduction <add>, %0, %cst [1] : vector<16x32xf32> to vector<16xf32>
    %2 = vector.shape_cast %1 : vector<16xf32> to vector<16x1xf32>
    %cst_1 = arith.constant 3.200000e+01 : f32
    %3 = vector.broadcast %cst_1 : f32 to vector<16x1xf32>
    %4 = arith.divf %2, %3 : vector<16x1xf32>
    %5 = vector.broadcast %4 : vector<16x1xf32> to vector<16x32xf32>
    %6 = arith.subf %0, %5 : vector<16x32xf32>
    %7 = arith.mulf %6, %6 : vector<16x32xf32>
    %cst_2 = arith.constant dense<0.000000e+00> : vector<16xf32>
    %8 = vector.multi_reduction <add>, %7, %cst_2 [1] : vector<16x32xf32> to vector<16xf32>
    %9 = vector.shape_cast %8 : vector<16xf32> to vector<16x1xf32>
    %cst_3 = arith.constant 3.200000e+01 : f32
    %10 = vector.broadcast %cst_3 : f32 to vector<16x1xf32>
    %11 = arith.divf %9, %10 : vector<16x1xf32>
    %cst_4 = arith.constant 9.99999974E-6 : f32
    %12 = vector.broadcast %cst_4 : f32 to vector<16x1xf32>
    %13 = arith.addf %11, %12 : vector<16x1xf32>
    %14 = math.rsqrt %13 : vector<16x1xf32>
    %15 = vector.broadcast %4 : vector<16x1xf32> to vector<16x32xf32>
    %16 = arith.subf %0, %15 : vector<16x32xf32>
    %17 = vector.broadcast %14 : vector<16x1xf32> to vector<16x32xf32>
    %18 = arith.mulf %16, %17 : vector<16x32xf32>
    %c0_5 = arith.constant 0 : index
    %c0_6 = arith.constant 0 : index
    %19 = vector.load %arg2[%c0_5, %c0_6] : memref<1x32xf32, #tpu.memory_space<vmem>>, vector<1x32xf32>
    %20 = vector.broadcast %19 : vector<1x32xf32> to vector<16x32xf32>
    %21 = arith.mulf %18, %20 : vector<16x32xf32>
    %c0_7 = arith.constant 0 : index
    %c0_8 = arith.constant 0 : index
    %22 = vector.load %arg3[%c0_7, %c0_8] : memref<1x32xf32, #tpu.memory_space<vmem>>, vector<1x32xf32>
    %23 = vector.broadcast %22 : vector<1x32xf32> to vector<16x32xf32>
    %24 = arith.addf %21, %23 : vector<16x32xf32>
    %c0_9 = arith.constant 0 : index
    %c0_10 = arith.constant 0 : index
    %25 = vector.load %arg4[%c0_9, %c0_10] : memref<16x32xf32, #tpu.memory_space<vmem>>, vector<16x32xf32>
    tpu.vector_store %arg4[%c0_9, %c0_10], %24 {strides = array<i32>} : memref<16x32xf32, #tpu.memory_space<vmem>>, vector<16x32xf32>,
    return
  }
  func.func @transform_0(%arg0: i32) -> (i32, i32) {
    %c0_i32 = arith.constant 0 : i32
    %c0_i32_0 = arith.constant 0 : i32
    return %arg0, %c0_i32 : i32, i32
  }
  func.func @transform_1(%arg0: i32) -> (i32, i32) {
    %c0_i32 = arith.constant 0 : i32
    %c0_i32_0 = arith.constant 0 : i32
    %c0_i32_1 = arith.constant 0 : i32
    return %c0_i32, %c0_i32_0 : i32, i32
  }
  func.func @transform_2(%arg0: i32) -> (i32, i32) {
    %c0_i32 = arith.constant 0 : i32
    %c0_i32_0 = arith.constant 0 : i32
    %c0_i32_1 = arith.constant 0 : i32
    return %c0_i32, %c0_i32_0 : i32, i32
  }
  func.func @transform_3(%arg0: i32) -> (i32, i32) {
    %c0_i32 = arith.constant 0 : i32
    %c0_i32_0 = arith.constant 0 : i32
    return %arg0, %c0_i32 : i32, i32
  }
}

module attributes {stable_mosaic.version = 11 : i64} {
  func.func @_linear_res_ln_kernel(%arg0: i32, %arg1: i32, %arg2: memref<16x64xf32, #tpu.memory_space<vmem>>, %arg3: memref<64x32xf32, #tpu.memory_space<vmem>>, %arg4: memref<1x32xf32, #tpu.memory_space<vmem>>, %arg5: memref<16x32xf32, #tpu.memory_space<vmem>>, %arg6: memref<1x32xf32, #tpu.memory_space<vmem>>, %arg7: memref<1x32xf32, #tpu.memory_space<vmem>>, %arg8: memref<16x32xf32, #tpu.memory_space<vmem>>, %arg9: memref<16x32xf32, #tpu.memory_space<vmem>>) attributes {dimension_semantics = [#tpu.dimension_semantics<parallel>, #tpu.dimension_semantics<arbitrary>], iteration_bounds = array<i64: 1, 1>, scalar_prefetch = 0 : i64, scratch_operands = 1 : i64, tpu.core_type = #tpu.core_type<tc>, window_params = [{transform_indices = @transform_0, window_bounds = array<i64: 16, 64>}, {transform_indices = @transform_1, window_bounds = array<i64: 64, 32>}, {pipeline_mode = #tpu.pipeline_mode<synchronous>, transform_indices = @transform_2, window_bounds = array<i64: 1, 32>}, {transform_indices = @transform_3, window_bounds = array<i64: 16, 32>}, {pipeline_mode = #tpu.pipeline_mode<synchronous>, transform_indices = @transform_4, window_bounds = array<i64: 1, 32>}, {pipeline_mode = #tpu.pipeline_mode<synchronous>, transform_indices = @transform_5, window_bounds = array<i64: 1, 32>}, {transform_indices = @transform_6, window_bounds = array<i64: 16, 32>}]} {
    %c0_i32 = arith.constant 0 : i32
    %0 = arith.cmpi eq, %arg1, %c0_i32 : i32
    %1 = arith.extui %0 : i1 to i32
    %c0_i32_0 = arith.constant 0 : i32
    %2 = arith.cmpi ne, %1, %c0_i32_0 : i32
    scf.if %2 {
      %cst_10 = arith.constant 0.000000e+00 : f32
      %14 = vector.broadcast %cst_10 : f32 to vector<16x32xf32>
      %c0_11 = arith.constant 0 : index
      %c0_12 = arith.constant 0 : index
      %15 = vector.load %arg9[%c0_11, %c0_12] : memref<16x32xf32, #tpu.memory_space<vmem>>, vector<16x32xf32>
      tpu.vector_store %arg9[%c0_11, %c0_12], %14 {strides = array<i32>} : memref<16x32xf32, #tpu.memory_space<vmem>>, vector<16x32xf32>,
    } else {
    }
    %c0 = arith.constant 0 : index
    %c0_1 = arith.constant 0 : index
    %3 = vector.load %arg9[%c0, %c0_1] : memref<16x32xf32, #tpu.memory_space<vmem>>, vector<16x32xf32>
    %c0_2 = arith.constant 0 : index
    %c0_3 = arith.constant 0 : index
    %4 = vector.load %arg2[%c0_2, %c0_3] : memref<16x64xf32, #tpu.memory_space<vmem>>, vector<16x64xf32>
    %5 = arith.truncf %4 : vector<16x64xf32> to vector<16x64xbf16>
    %c0_4 = arith.constant 0 : index
    %c0_5 = arith.constant 0 : index
    %6 = vector.load %arg3[%c0_4, %c0_5] : memref<64x32xf32, #tpu.memory_space<vmem>>, vector<64x32xf32>
    %7 = arith.truncf %6 : vector<64x32xf32> to vector<64x32xbf16>
    %cst = arith.constant dense<0.000000e+00> : vector<16x32xf32>
    %8 = tpu.matmul %5, %7, %cst {dimension_numbers = #tpu.dot_dimension_numbers<[1], [0], [0], [1], [0, 0, 1, 1], [], []>} : vector<16x64xbf16>, vector<64x32xbf16>, vector<16x32xf32> -> vector<16x32xf32>
    %9 = arith.addf %3, %8 : vector<16x32xf32>
    %c0_6 = arith.constant 0 : index
    %c0_7 = arith.constant 0 : index
    %10 = vector.load %arg9[%c0_6, %c0_7] : memref<16x32xf32, #tpu.memory_space<vmem>>, vector<16x32xf32>
    tpu.vector_store %arg9[%c0_6, %c0_7], %9 {strides = array<i32>} : memref<16x32xf32, #tpu.memory_space<vmem>>, vector<16x32xf32>,
    %c0_i32_8 = arith.constant 0 : i32
    %11 = arith.cmpi eq, %arg1, %c0_i32_8 : i32
    %12 = arith.extui %11 : i1 to i32
    %c0_i32_9 = arith.constant 0 : i32
    %13 = arith.cmpi ne, %12, %c0_i32_9 : i32
    scf.if %13 {
      %c0_10 = arith.constant 0 : index
      %c0_11 = arith.constant 0 : index
      %14 = vector.load %arg9[%c0_10, %c0_11] : memref<16x32xf32, #tpu.memory_space<vmem>>, vector<16x32xf32>
      %c0_12 = arith.constant 0 : index
      %c0_13 = arith.constant 0 : index
      %15 = vector.load %arg4[%c0_12, %c0_13] : memref<1x32xf32, #tpu.memory_space<vmem>>, vector<1x32xf32>
      %16 = vector.broadcast %15 : vector<1x32xf32> to vector<16x32xf32>
      %17 = arith.addf %14, %16 : vector<16x32xf32>
      %c0_14 = arith.constant 0 : index
      %c0_15 = arith.constant 0 : index
      %18 = vector.load %arg5[%c0_14, %c0_15] : memref<16x32xf32, #tpu.memory_space<vmem>>, vector<16x32xf32>
      %19 = arith.addf %17, %18 : vector<16x32xf32>
      %cst_16 = arith.constant dense<0.000000e+00> : vector<16xf32>
      %20 = vector.multi_reduction <add>, %19, %cst_16 [1] : vector<16x32xf32> to vector<16xf32>
      %21 = vector.shape_cast %20 : vector<16xf32> to vector<16x1xf32>
      %cst_17 = arith.constant 3.200000e+01 : f32
      %22 = vector.broadcast %cst_17 : f32 to vector<16x1xf32>
      %23 = arith.divf %21, %22 : vector<16x1xf32>
      %24 = vector.broadcast %23 : vector<16x1xf32> to vector<16x32xf32>
      %25 = arith.subf %19, %24 : vector<16x32xf32>
      %26 = arith.mulf %25, %25 : vector<16x32xf32>
      %cst_18 = arith.constant dense<0.000000e+00> : vector<16xf32>
      %27 = vector.multi_reduction <add>, %26, %cst_18 [1] : vector<16x32xf32> to vector<16xf32>
      %28 = vector.shape_cast %27 : vector<16xf32> to vector<16x1xf32>
      %cst_19 = arith.constant 3.200000e+01 : f32
      %29 = vector.broadcast %cst_19 : f32 to vector<16x1xf32>
      %30 = arith.divf %28, %29 : vector<16x1xf32>
      %cst_20 = arith.constant 9.99999974E-6 : f32
      %31 = vector.broadcast %cst_20 : f32 to vector<16x1xf32>
      %32 = arith.addf %30, %31 : vector<16x1xf32>
      %33 = math.rsqrt %32 : vector<16x1xf32>
      %34 = vector.broadcast %23 : vector<16x1xf32> to vector<16x32xf32>
      %35 = arith.subf %19, %34 : vector<16x32xf32>
      %36 = vector.broadcast %33 : vector<16x1xf32> to vector<16x32xf32>
      %37 = arith.mulf %35, %36 : vector<16x32xf32>
      %c0_21 = arith.constant 0 : index
      %c0_22 = arith.constant 0 : index
      %38 = vector.load %arg6[%c0_21, %c0_22] : memref<1x32xf32, #tpu.memory_space<vmem>>, vector<1x32xf32>
      %39 = vector.broadcast %38 : vector<1x32xf32> to vector<16x32xf32>
      %40 = arith.mulf %37, %39 : vector<16x32xf32>
      %c0_23 = arith.constant 0 : index
      %c0_24 = arith.constant 0 : index
      %41 = vector.load %arg7[%c0_23, %c0_24] : memref<1x32xf32, #tpu.memory_space<vmem>>, vector<1x32xf32>
      %42 = vector.broadcast %41 : vector<1x32xf32> to vector<16x32xf32>
      %43 = arith.addf %40, %42 : vector<16x32xf32>
      %c0_25 = arith.constant 0 : index
      %c0_26 = arith.constant 0 : index
      %44 = vector.load %arg8[%c0_25, %c0_26] : memref<16x32xf32, #tpu.memory_space<vmem>>, vector<16x32xf32>
      tpu.vector_store %arg8[%c0_25, %c0_26], %43 {strides = array<i32>} : memref<16x32xf32, #tpu.memory_space<vmem>>, vector<16x32xf32>,
    } else {
    }
    return
  }
  func.func @transform_0(%arg0: i32, %arg1: i32) -> (i32, i32) {
    %c0_i32 = arith.constant 0 : i32
    return %arg0, %arg1 : i32, i32
  }
  func.func @transform_1(%arg0: i32, %arg1: i32) -> (i32, i32) {
    %c0_i32 = arith.constant 0 : i32
    %c0_i32_0 = arith.constant 0 : i32
    return %arg1, %c0_i32 : i32, i32
  }
  func.func @transform_2(%arg0: i32, %arg1: i32) -> (i32, i32) {
    %c0_i32 = arith.constant 0 : i32
    %c0_i32_0 = arith.constant 0 : i32
    %c0_i32_1 = arith.constant 0 : i32
    return %c0_i32, %c0_i32_0 : i32, i32
  }
  func.func @transform_3(%arg0: i32, %arg1: i32) -> (i32, i32) {
    %c0_i32 = arith.constant 0 : i32
    %c0_i32_0 = arith.constant 0 : i32
    return %arg0, %c0_i32 : i32, i32
  }
  func.func @transform_4(%arg0: i32, %arg1: i32) -> (i32, i32) {
    %c0_i32 = arith.constant 0 : i32
    %c0_i32_0 = arith.constant 0 : i32
    %c0_i32_1 = arith.constant 0 : i32
    return %c0_i32, %c0_i32_0 : i32, i32
  }
  func.func @transform_5(%arg0: i32, %arg1: i32) -> (i32, i32) {
    %c0_i32 = arith.constant 0 : i32
    %c0_i32_0 = arith.constant 0 : i32
    %c0_i32_1 = arith.constant 0 : i32
    return %c0_i32, %c0_i32_0 : i32, i32
  }
  func.func @transform_6(%arg0: i32, %arg1: i32) -> (i32, i32) {
    %c0_i32 = arith.constant 0 : i32
    %c0_i32_0 = arith.constant 0 : i32
    return %arg0, %c0_i32 : i32, i32
  }
}

module attributes {stable_mosaic.version = 11 : i64} {
  func.func @_linear_kernel(%arg0: i32, %arg1: i32, %arg2: i32, %arg3: memref<16x32xf32, #tpu.memory_space<vmem>>, %arg4: memref<32x64xf32, #tpu.memory_space<vmem>>, %arg5: memref<1x64xf32, #tpu.memory_space<vmem>>, %arg6: memref<16x64xf32, #tpu.memory_space<vmem>>, %arg7: memref<16x64xf32, #tpu.memory_space<vmem>>) attributes {dimension_semantics = [#tpu.dimension_semantics<parallel>, #tpu.dimension_semantics<parallel>, #tpu.dimension_semantics<arbitrary>], iteration_bounds = array<i64: 1, 1, 1>, scalar_prefetch = 0 : i64, scratch_operands = 1 : i64, tpu.core_type = #tpu.core_type<tc>, window_params = [{transform_indices = @transform_0, window_bounds = array<i64: 16, 32>}, {transform_indices = @transform_1, window_bounds = array<i64: 32, 64>}, {transform_indices = @transform_2, window_bounds = array<i64: 1, 64>}, {transform_indices = @transform_3, window_bounds = array<i64: 16, 64>}]} {
    %c0_i32 = arith.constant 0 : i32
    %0 = arith.cmpi eq, %arg2, %c0_i32 : i32
    %1 = arith.extui %0 : i1 to i32
    %c0_i32_0 = arith.constant 0 : i32
    %2 = arith.cmpi ne, %1, %c0_i32_0 : i32
    scf.if %2 {
      %cst_10 = arith.constant 0.000000e+00 : f32
      %14 = vector.broadcast %cst_10 : f32 to vector<16x64xf32>
      %c0_11 = arith.constant 0 : index
      %c0_12 = arith.constant 0 : index
      %15 = vector.load %arg7[%c0_11, %c0_12] : memref<16x64xf32, #tpu.memory_space<vmem>>, vector<16x64xf32>
      tpu.vector_store %arg7[%c0_11, %c0_12], %14 {strides = array<i32>} : memref<16x64xf32, #tpu.memory_space<vmem>>, vector<16x64xf32>,
    } else {
    }
    %c0 = arith.constant 0 : index
    %c0_1 = arith.constant 0 : index
    %3 = vector.load %arg7[%c0, %c0_1] : memref<16x64xf32, #tpu.memory_space<vmem>>, vector<16x64xf32>
    %c0_2 = arith.constant 0 : index
    %c0_3 = arith.constant 0 : index
    %4 = vector.load %arg3[%c0_2, %c0_3] : memref<16x32xf32, #tpu.memory_space<vmem>>, vector<16x32xf32>
    %5 = arith.truncf %4 : vector<16x32xf32> to vector<16x32xbf16>
    %c0_4 = arith.constant 0 : index
    %c0_5 = arith.constant 0 : index
    %6 = vector.load %arg4[%c0_4, %c0_5] : memref<32x64xf32, #tpu.memory_space<vmem>>, vector<32x64xf32>
    %7 = arith.truncf %6 : vector<32x64xf32> to vector<32x64xbf16>
    %cst = arith.constant dense<0.000000e+00> : vector<16x64xf32>
    %8 = tpu.matmul %5, %7, %cst {dimension_numbers = #tpu.dot_dimension_numbers<[1], [0], [0], [1], [0, 0, 1, 1], [], []>} : vector<16x32xbf16>, vector<32x64xbf16>, vector<16x64xf32> -> vector<16x64xf32>
    %9 = arith.addf %3, %8 : vector<16x64xf32>
    %c0_6 = arith.constant 0 : index
    %c0_7 = arith.constant 0 : index
    %10 = vector.load %arg7[%c0_6, %c0_7] : memref<16x64xf32, #tpu.memory_space<vmem>>, vector<16x64xf32>
    tpu.vector_store %arg7[%c0_6, %c0_7], %9 {strides = array<i32>} : memref<16x64xf32, #tpu.memory_space<vmem>>, vector<16x64xf32>,
    %c0_i32_8 = arith.constant 0 : i32
    %11 = arith.cmpi eq, %arg2, %c0_i32_8 : i32
    %12 = arith.extui %11 : i1 to i32
    %c0_i32_9 = arith.constant 0 : i32
    %13 = arith.cmpi ne, %12, %c0_i32_9 : i32
    scf.if %13 {
      %c0_10 = arith.constant 0 : index
      %c0_11 = arith.constant 0 : index
      %14 = vector.load %arg7[%c0_10, %c0_11] : memref<16x64xf32, #tpu.memory_space<vmem>>, vector<16x64xf32>
      %c0_12 = arith.constant 0 : index
      %c0_13 = arith.constant 0 : index
      %15 = vector.load %arg5[%c0_12, %c0_13] : memref<1x64xf32, #tpu.memory_space<vmem>>, vector<1x64xf32>
      %16 = vector.broadcast %15 : vector<1x64xf32> to vector<16x64xf32>
      %17 = arith.addf %14, %16 : vector<16x64xf32>
      %c0_14 = arith.constant 0 : index
      %c0_15 = arith.constant 0 : index
      %18 = vector.load %arg6[%c0_14, %c0_15] : memref<16x64xf32, #tpu.memory_space<vmem>>, vector<16x64xf32>
      tpu.vector_store %arg6[%c0_14, %c0_15], %17 {strides = array<i32>} : memref<16x64xf32, #tpu.memory_space<vmem>>, vector<16x64xf32>,
    } else {
    }
    return
  }
  func.func @transform_0(%arg0: i32, %arg1: i32, %arg2: i32) -> (i32, i32) {
    %c0_i32 = arith.constant 0 : i32
    return %arg0, %arg2 : i32, i32
  }
  func.func @transform_1(%arg0: i32, %arg1: i32, %arg2: i32) -> (i32, i32) {
    %c0_i32 = arith.constant 0 : i32
    return %arg2, %arg1 : i32, i32
  }
  func.func @transform_2(%arg0: i32, %arg1: i32, %arg2: i32) -> (i32, i32) {
    %c0_i32 = arith.constant 0 : i32
    %c0_i32_0 = arith.constant 0 : i32
    return %c0_i32, %arg1 : i32, i32
  }
  func.func @transform_3(%arg0: i32, %arg1: i32, %arg2: i32) -> (i32, i32) {
    %c0_i32 = arith.constant 0 : i32
    return %arg0, %arg1 : i32, i32
  }
}

module attributes {stable_mosaic.version = 11 : i64} {
  func.func @_linear_kernel(%arg0: i32, %arg1: i32, %arg2: i32, %arg3: memref<16x32xf32, #tpu.memory_space<vmem>>, %arg4: memref<32x128xf32, #tpu.memory_space<vmem>>, %arg5: memref<1x128xf32, #tpu.memory_space<vmem>>, %arg6: memref<16x128xf32, #tpu.memory_space<vmem>>, %arg7: memref<16x128xf32, #tpu.memory_space<vmem>>) attributes {dimension_semantics = [#tpu.dimension_semantics<parallel>, #tpu.dimension_semantics<parallel>, #tpu.dimension_semantics<arbitrary>], iteration_bounds = array<i64: 1, 1, 1>, scalar_prefetch = 0 : i64, scratch_operands = 1 : i64, tpu.core_type = #tpu.core_type<tc>, window_params = [{transform_indices = @transform_0, window_bounds = array<i64: 16, 32>}, {transform_indices = @transform_1, window_bounds = array<i64: 32, 128>}, {transform_indices = @transform_2, window_bounds = array<i64: 1, 128>}, {transform_indices = @transform_3, window_bounds = array<i64: 16, 128>}]} {
    %c0_i32 = arith.constant 0 : i32
    %0 = arith.cmpi eq, %arg2, %c0_i32 : i32
    %1 = arith.extui %0 : i1 to i32
    %c0_i32_0 = arith.constant 0 : i32
    %2 = arith.cmpi ne, %1, %c0_i32_0 : i32
    scf.if %2 {
      %cst_10 = arith.constant 0.000000e+00 : f32
      %14 = vector.broadcast %cst_10 : f32 to vector<16x128xf32>
      %c0_11 = arith.constant 0 : index
      %c0_12 = arith.constant 0 : index
      %15 = vector.load %arg7[%c0_11, %c0_12] : memref<16x128xf32, #tpu.memory_space<vmem>>, vector<16x128xf32>
      tpu.vector_store %arg7[%c0_11, %c0_12], %14 {strides = array<i32>} : memref<16x128xf32, #tpu.memory_space<vmem>>, vector<16x128xf32>,
    } else {
    }
    %c0 = arith.constant 0 : index
    %c0_1 = arith.constant 0 : index
    %3 = vector.load %arg7[%c0, %c0_1] : memref<16x128xf32, #tpu.memory_space<vmem>>, vector<16x128xf32>
    %c0_2 = arith.constant 0 : index
    %c0_3 = arith.constant 0 : index
    %4 = vector.load %arg3[%c0_2, %c0_3] : memref<16x32xf32, #tpu.memory_space<vmem>>, vector<16x32xf32>
    %5 = arith.truncf %4 : vector<16x32xf32> to vector<16x32xbf16>
    %c0_4 = arith.constant 0 : index
    %c0_5 = arith.constant 0 : index
    %6 = vector.load %arg4[%c0_4, %c0_5] : memref<32x128xf32, #tpu.memory_space<vmem>>, vector<32x128xf32>
    %7 = arith.truncf %6 : vector<32x128xf32> to vector<32x128xbf16>
    %cst = arith.constant dense<0.000000e+00> : vector<16x128xf32>
    %8 = tpu.matmul %5, %7, %cst {dimension_numbers = #tpu.dot_dimension_numbers<[1], [0], [0], [1], [0, 0, 1, 1], [], []>} : vector<16x32xbf16>, vector<32x128xbf16>, vector<16x128xf32> -> vector<16x128xf32>
    %9 = arith.addf %3, %8 : vector<16x128xf32>
    %c0_6 = arith.constant 0 : index
    %c0_7 = arith.constant 0 : index
    %10 = vector.load %arg7[%c0_6, %c0_7] : memref<16x128xf32, #tpu.memory_space<vmem>>, vector<16x128xf32>
    tpu.vector_store %arg7[%c0_6, %c0_7], %9 {strides = array<i32>} : memref<16x128xf32, #tpu.memory_space<vmem>>, vector<16x128xf32>,
    %c0_i32_8 = arith.constant 0 : i32
    %11 = arith.cmpi eq, %arg2, %c0_i32_8 : i32
    %12 = arith.extui %11 : i1 to i32
    %c0_i32_9 = arith.constant 0 : i32
    %13 = arith.cmpi ne, %12, %c0_i32_9 : i32
    scf.if %13 {
      %c0_10 = arith.constant 0 : index
      %c0_11 = arith.constant 0 : index
      %14 = vector.load %arg7[%c0_10, %c0_11] : memref<16x128xf32, #tpu.memory_space<vmem>>, vector<16x128xf32>
      %c0_12 = arith.constant 0 : index
      %c0_13 = arith.constant 0 : index
      %15 = vector.load %arg5[%c0_12, %c0_13] : memref<1x128xf32, #tpu.memory_space<vmem>>, vector<1x128xf32>
      %16 = vector.broadcast %15 : vector<1x128xf32> to vector<16x128xf32>
      %17 = arith.addf %14, %16 : vector<16x128xf32>
      %c0_14 = arith.constant 0 : index
      %c0_15 = arith.constant 0 : index
      %18 = vector.load %arg6[%c0_14, %c0_15] : memref<16x128xf32, #tpu.memory_space<vmem>>, vector<16x128xf32>
      tpu.vector_store %arg6[%c0_14, %c0_15], %17 {strides = array<i32>} : memref<16x128xf32, #tpu.memory_space<vmem>>, vector<16x128xf32>,
    } else {
    }
    return
  }
  func.func @transform_0(%arg0: i32, %arg1: i32, %arg2: i32) -> (i32, i32) {
    %c0_i32 = arith.constant 0 : i32
    return %arg0, %arg2 : i32, i32
  }
  func.func @transform_1(%arg0: i32, %arg1: i32, %arg2: i32) -> (i32, i32) {
    %c0_i32 = arith.constant 0 : i32
    return %arg2, %arg1 : i32, i32
  }
  func.func @transform_2(%arg0: i32, %arg1: i32, %arg2: i32) -> (i32, i32) {
    %c0_i32 = arith.constant 0 : i32
    %c0_i32_0 = arith.constant 0 : i32
    return %c0_i32, %arg1 : i32, i32
  }
  func.func @transform_3(%arg0: i32, %arg1: i32, %arg2: i32) -> (i32, i32) {
    %c0_i32 = arith.constant 0 : i32
    return %arg0, %arg1 : i32, i32
  }
}

</mosaic_0001>

<llo_original>
// kernel: tf_s2s_forward.61
$region0: #{tf_s2s_forward.61}
  #allocation0 [shape = 'u32[]', space=smem, size = 0x4, offset = 0x4, fixed_abs, tag = 'smem constant byte address 0x4 - core index']
  #allocation1 [shape = 'u32[144,128]{1,0:T(1,128)}', space=vmem, size = 0x12000, scoped, tag = 'internal scratch']
  #allocation2 [shape = 'f32[16,96]{1,0:T(8,128)}', space=vmem, size = 0x2000, scoped, tag = 'scratch operand']
  %s0 = inlined_call_operand.vmem [shape: f32[16,32], index: 0, kind: input, shape index: {}]
  %s1 = inlined_call_operand.vmem [shape: f32[32,96], index: 1, kind: input, shape index: {}]
  %s2 = inlined_call_operand.vmem [shape: f32[1,96], index: 2, kind: input, shape index: {}]
  %s3 = inlined_call_operand.vmem [shape: f32[16,96], index: 3, kind: output, shape index: {}]
  %s4 = sld [smem:[#allocation0]]
  $region30: #{tf_s2s_forward.61} parent=0
    _
  %s6 = ssub.s32 1, %s4
  %s7 = scalar_select 0, %s6, %s4
  // Predicated region
  $region2: #{tf_s2s_forward.61} parent=0 // pred_check
    _
  $region3: #{tf_s2s_forward.61} parent=0 // pred_check_branch
    %9 = sbr.rel (0) target = $region5
  $region4: #{tf_s2s_forward.61} parent=0 // pred_region
    _
  $region5: #{tf_s2s_forward.61} parent=0 // pred_fallthru
    _
  // Predicated region
  $region6: #{tf_s2s_forward.61} parent=0 // pred_check
    _
  $region7: #{tf_s2s_forward.61} parent=0 // pred_check_branch
    %11 = sbr.rel (0) target = $region9
  $region8: #{tf_s2s_forward.61} parent=0 // pred_region
    _
  $region9: #{tf_s2s_forward.61} parent=0 // pred_fallthru
    _
  // Predicated region
  $region10: #{tf_s2s_forward.61} parent=0 // pred_check
    _
  $region11: #{tf_s2s_forward.61} parent=0 // pred_check_branch
    %13 = sbr.rel (0) target = $region13
  $region12: #{tf_s2s_forward.61} parent=0 // pred_region
    _
  $region13: #{tf_s2s_forward.61} parent=0 // pred_fallthru
    _
  %p15 = scmp.eq.s32.totalorder 0, 0
  // Predicated region
  $region14: #{tf_s2s_forward.61} parent=0 // pred_check
    %p16 = pneg %p15
  $region15: #{tf_s2s_forward.61} parent=0 // pred_check_branch
    %18 = sbr.rel (%p16) target = $region17
  $region16: #{tf_s2s_forward.61} parent=0 // pred_region
    %vm19 = vcmask 785408
    %20 = vst.msk [vmem:[#allocation2] sm:$0xff] %vm19, 0.0
    %21 = vst.msk [vmem:[#allocation2 + $0x8] sm:$0xff] %vm19, 0.0
  $region17: #{tf_s2s_forward.61} parent=0 // pred_fallthru
    _
  %v22 = vld [vmem:[#allocation2] sm:$0xff]
  %v23 = vld [vmem:[#allocation2 + $0x8] sm:$0xff]
  %v24 = vld [vmem:[%s0] sm:$0xff]
  %v25 = vld [vmem:[%s0 + $0x8] sm:$0xff]
  %v26 = vpack.c.bf16 %v25, %v24
  %v27 = vld [vmem:[%s1] sm:$0xff]
  %v28 = vld [vmem:[%s1 + $0x8] sm:$0xff]
  %v29 = vld [vmem:[%s1 + $0x10] sm:$0xff]
  %v30 = vld [vmem:[%s1 + $0x18] sm:$0xff]
  %v31 = vpack.c.bf16 %v28, %v27
  %v32 = vpack.c.bf16 %v30, %v29
  %vm33 = vcmask 261120
  %v35 = vsel %vm33, %v26, 0
  %37 = vmatprep.subr.bf16.mxu0 0
  %38 = vmatpush1.bf16.msra.mxu0 %v31
  %39 = vmatprep.subr.bf16.mxu0 0
  %40 = vmatpush1.bf16.msra.mxu0 %v32
  %41 = vmatprep.subr.bf16.mxu0 0
  %42 = vmatpush1.bf16.msra.mxu0 0
  %43 = vmatprep.subr.bf16.mxu0 0
  %44 = vmatpush1.bf16.msra.mxu0 0
  %45 = vmatprep.subr.bf16.mxu0 0
  %46 = vmatpush1.bf16.msra.mxu0 0
  %47 = vmatprep.subr.bf16.mxu0 0
  %48 = vmatpush1.bf16.msra.mxu0 0
  %49 = vmatprep.subr.bf16.mxu0 0
  %50 = vmatpush1.bf16.msra.mxu0 0
  %51 = vmatprep.subr.bf16.mxu0 0
  %52 = vmatpush1.bf16.msra.mxu0 0
  %53 = vmatprep.subr.bf16.mxu0 0
  %54 = vmatpush1.bf16.msra.mxu0 0
  %55 = vmatprep.subr.bf16.mxu0 0
  %56 = vmatpush1.bf16.msra.mxu0 0
  %57 = vmatprep.subr.bf16.mxu0 0
  %58 = vmatpush1.bf16.msra.mxu0 0
  %59 = vmatprep.subr.bf16.mxu0 0
  %60 = vmatpush1.bf16.msra.mxu0 0
  %61 = vmatprep.subr.bf16.mxu0 0
  %62 = vmatpush1.bf16.msra.mxu0 0
  %63 = vmatprep.subr.bf16.mxu0 0
  %64 = vmatpush1.bf16.msra.mxu0 0
  %65 = vmatprep.subr.bf16.mxu0 0
  %66 = vmatpush1.bf16.msra.mxu0 0
  %67 = vmatprep.subr.bf16.mxu0 0
  %68 = vmatpush1.bf16.msra.mxu0 0
  %69 = vmatprep.mubr.bf16.mxu0 0
  %70 = vmatmul.mubr.bf16.gmra.mrb[0].mxu0 %v35
  %v71 = vpop.f32.mrb[0].mxu0
  %v72 = vadd.f32 0.0, %v71
  %v73 = vpop.f32.mrb[0].mxu0
  %v74 = vpop.f32.mrb[0].mxu0
  %v75 = vadd.f32 0.0, %v74
  %v76 = vpop.f32.mrb[0].mxu0
  %77 = vdwg.mxu0
  %v78 = vadd.f32 %v22, %v72
  %v79 = vadd.f32 %v23, %v75
  %vm80 = vcmask 785408
  %81 = vst.msk [vmem:[#allocation2] sm:$0xff] %vm80, %v78
  %82 = vst.msk [vmem:[#allocation2 + $0x8] sm:$0xff] %vm80, %v79
  // Predicated region
  $region18: #{tf_s2s_forward.61} parent=0 // pred_check
    %p83 = pneg %p15
  $region19: #{tf_s2s_forward.61} parent=0 // pred_check_branch
    %85 = sbr.rel (%p83) target = $region21
  $region20: #{tf_s2s_forward.61} parent=0 // pred_region
    %v86 = vld [vmem:[#allocation2] sm:$0xff]
    %v87 = vld [vmem:[#allocation2 + $0x8] sm:$0xff]
    %v88 = vld [vmem:[%s2] sm:$0x1]
    %v90 = vlaneseq
    %v91 = vshrl.u32 %v90, 7
    %v92 = vsub.s32 0, %v91
    %v93 = vrot.slane %v88, %v92
    %v95 = vadd.f32 %v86, %v93
    %v96 = vadd.f32 %v87, %v93
    %97 = vst.msk [vmem:[%s3] sm:$0xff] %vm80, %v95
    %98 = vst.msk [vmem:[%s3 + $0x8] sm:$0xff] %vm80, %v96
  $region21: #{tf_s2s_forward.61} parent=0 // pred_fallthru
    _
  // Predicated region
  $region22: #{tf_s2s_forward.61} parent=0 // pred_check
    _
  $region23: #{tf_s2s_forward.61} parent=0 // pred_check_branch
    %100 = sbr.rel (0) target = $region25
  $region24: #{tf_s2s_forward.61} parent=0 // pred_region
    _
  $region25: #{tf_s2s_forward.61} parent=0 // pred_fallthru
    _
  // Predicated region
  $region26: #{tf_s2s_forward.61} parent=0 // pred_check
    _
  $region27: #{tf_s2s_forward.61} parent=0 // pred_check_branch
    %102 = sbr.rel (0) target = $region29
  $region28: #{tf_s2s_forward.61} parent=0 // pred_region
    _
  $region29: #{tf_s2s_forward.61} parent=0 // pred_fallthru
    _

// kernel: tf_s2s_forward.63
$region0: #{tf_s2s_forward.63}
  #allocation0 [shape = 'u32[]', space=smem, size = 0x4, offset = 0x4, fixed_abs, tag = 'smem constant byte address 0x4 - core index']
  #allocation1 [shape = 'u32[144,128]{1,0:T(1,128)}', space=vmem, size = 0x12000, scoped, tag = 'internal scratch']
  #allocation2 [shape = 'f32[16,32]{1,0:T(8,128)}', space=vmem, size = 0x2000, scoped, tag = 'scratch operand']
  %s0 = inlined_call_operand.vmem [shape: f32[16,32], index: 0, kind: input, shape index: {}]
  %s1 = inlined_call_operand.vmem [shape: f32[32,32], index: 1, kind: input, shape index: {}]
  %s2 = inlined_call_operand.vmem [shape: f32[1,32], index: 2, kind: input, shape index: {}]
  %s3 = inlined_call_operand.vmem [shape: f32[16,32], index: 3, kind: input, shape index: {}]
  %s4 = inlined_call_operand.vmem [shape: f32[1,32], index: 4, kind: input, shape index: {}]
  %s5 = inlined_call_operand.vmem [shape: f32[1,32], index: 5, kind: input, shape index: {}]
  %s6 = inlined_call_operand.vmem [shape: f32[16,32], index: 6, kind: output, shape index: {}]
  %s7 = sld [smem:[#allocation0]]
  $region42: #{tf_s2s_forward.63} parent=0
    _
  %s9 = ssub.s32 1, %s7
  %s10 = scalar_select 0, %s9, %s7
  // Predicated region
  $region2: #{tf_s2s_forward.63} parent=0 // pred_check
    _
  $region3: #{tf_s2s_forward.63} parent=0 // pred_check_branch
    %12 = sbr.rel (0) target = $region5
  $region4: #{tf_s2s_forward.63} parent=0 // pred_region
    _
  $region5: #{tf_s2s_forward.63} parent=0 // pred_fallthru
    _
  // Predicated region
  $region6: #{tf_s2s_forward.63} parent=0 // pred_check
    _
  $region7: #{tf_s2s_forward.63} parent=0 // pred_check_branch
    %14 = sbr.rel (0) target = $region9
  $region8: #{tf_s2s_forward.63} parent=0 // pred_region
    _
  $region9: #{tf_s2s_forward.63} parent=0 // pred_fallthru
    _
  // Predicated region
  $region10: #{tf_s2s_forward.63} parent=0 // pred_check
    _
  $region11: #{tf_s2s_forward.63} parent=0 // pred_check_branch
    %16 = sbr.rel (0) target = $region13
  $region12: #{tf_s2s_forward.63} parent=0 // pred_region
    _
  $region13: #{tf_s2s_forward.63} parent=0 // pred_fallthru
    _
  // Predicated region
  $region14: #{tf_s2s_forward.63} parent=0 // pred_check
    _
  $region15: #{tf_s2s_forward.63} parent=0 // pred_check_branch
    %18 = sbr.rel (0) target = $region17
  $region16: #{tf_s2s_forward.63} parent=0 // pred_region
    _
  $region17: #{tf_s2s_forward.63} parent=0 // pred_fallthru
    _
  // Predicated region
  $region18: #{tf_s2s_forward.63} parent=0 // pred_check
    _
  $region19: #{tf_s2s_forward.63} parent=0 // pred_check_branch
    %20 = sbr.rel (0) target = $region21
  $region20: #{tf_s2s_forward.63} parent=0 // pred_region
    _
  $region21: #{tf_s2s_forward.63} parent=0 // pred_fallthru
    _
  // Predicated region
  $region22: #{tf_s2s_forward.63} parent=0 // pred_check
    _
  $region23: #{tf_s2s_forward.63} parent=0 // pred_check_branch
    %22 = sbr.rel (0) target = $region25
  $region24: #{tf_s2s_forward.63} parent=0 // pred_region
    _
  $region25: #{tf_s2s_forward.63} parent=0 // pred_fallthru
    _
  %p24 = scmp.eq.s32.totalorder 0, 0
  // Predicated region
  $region26: #{tf_s2s_forward.63} parent=0 // pred_check
    %p25 = pneg %p24
  $region27: #{tf_s2s_forward.63} parent=0 // pred_check_branch
    %27 = sbr.rel (%p25) target = $region29
  $region28: #{tf_s2s_forward.63} parent=0 // pred_region
    %vm28 = vcmask 261120
    %29 = vst.msk [vmem:[#allocation2] sm:$0xff] %vm28, 0.0
    %30 = vst.msk [vmem:[#allocation2 + $0x8] sm:$0xff] %vm28, 0.0
  $region29: #{tf_s2s_forward.63} parent=0 // pred_fallthru
    _
  %v31 = vld [vmem:[#allocation2] sm:$0xff]
  %v32 = vld [vmem:[#allocation2 + $0x8] sm:$0xff]
  %v33 = vld [vmem:[%s0] sm:$0xff]
  %v34 = vld [vmem:[%s0 + $0x8] sm:$0xff]
  %v35 = vpack.c.bf16 %v34, %v33
  %v36 = vld [vmem:[%s1] sm:$0xff]
  %v37 = vld [vmem:[%s1 + $0x8] sm:$0xff]
  %v38 = vld [vmem:[%s1 + $0x10] sm:$0xff]
  %v39 = vld [vmem:[%s1 + $0x18] sm:$0xff]
  %v40 = vpack.c.bf16 %v37, %v36
  %v41 = vpack.c.bf16 %v39, %v38
  %vm42 = vcmask 261120
  %v44 = vsel %vm42, %v35, 0
  %46 = vmatprep.subr.bf16.mxu0 0
  %47 = vmatpush1.bf16.msra.mxu0 %v40
  %48 = vmatprep.subr.bf16.mxu0 0
  %49 = vmatpush1.bf16.msra.mxu0 %v41
  %50 = vmatprep.subr.bf16.mxu0 0
  %51 = vmatpush1.bf16.msra.mxu0 0
  %52 = vmatprep.subr.bf16.mxu0 0
  %53 = vmatpush1.bf16.msra.mxu0 0
  %54 = vmatprep.subr.bf16.mxu0 0
  %55 = vmatpush1.bf16.msra.mxu0 0
  %56 = vmatprep.subr.bf16.mxu0 0
  %57 = vmatpush1.bf16.msra.mxu0 0
  %58 = vmatprep.subr.bf16.mxu0 0
  %59 = vmatpush1.bf16.msra.mxu0 0
  %60 = vmatprep.subr.bf16.mxu0 0
  %61 = vmatpush1.bf16.msra.mxu0 0
  %62 = vmatprep.subr.bf16.mxu0 0
  %63 = vmatpush1.bf16.msra.mxu0 0
  %64 = vmatprep.subr.bf16.mxu0 0
  %65 = vmatpush1.bf16.msra.mxu0 0
  %66 = vmatprep.subr.bf16.mxu0 0
  %67 = vmatpush1.bf16.msra.mxu0 0
  %68 = vmatprep.subr.bf16.mxu0 0
  %69 = vmatpush1.bf16.msra.mxu0 0
  %70 = vmatprep.subr.bf16.mxu0 0
  %71 = vmatpush1.bf16.msra.mxu0 0
  %72 = vmatprep.subr.bf16.mxu0 0
  %73 = vmatpush1.bf16.msra.mxu0 0
  %74 = vmatprep.subr.bf16.mxu0 0
  %75 = vmatpush1.bf16.msra.mxu0 0
  %76 = vmatprep.subr.bf16.mxu0 0
  %77 = vmatpush1.bf16.msra.mxu0 0
  %78 = vmatprep.mubr.bf16.mxu0 0
  %79 = vmatmul.mubr.bf16.gmra.mrb[0].mxu0 %v44
  %v80 = vpop.f32.mrb[0].mxu0
  %v81 = vadd.f32 0.0, %v80
  %v82 = vpop.f32.mrb[0].mxu0
  %v83 = vpop.f32.mrb[0].mxu0
  %v84 = vadd.f32 0.0, %v83
  %v85 = vpop.f32.mrb[0].mxu0
  %86 = vdwg.mxu0
  %v87 = vadd.f32 %v31, %v81
  %v88 = vadd.f32 %v32, %v84
  %89 = vst.msk [vmem:[#allocation2] sm:$0xff] %vm42, %v87
  %90 = vst.msk [vmem:[#allocation2 + $0x8] sm:$0xff] %vm42, %v88
  // Predicated region
  $region30: #{tf_s2s_forward.63} parent=0 // pred_check
    %p91 = pneg %p24
  $region31: #{tf_s2s_forward.63} parent=0 // pred_check_branch
    %93 = sbr.rel (%p91) target = $region33
  $region32: #{tf_s2s_forward.63} parent=0 // pred_region
    %v94 = vld [vmem:[#allocation2] sm:$0xff]
    %v95 = vld [vmem:[#allocation2 + $0x8] sm:$0xff]
    %v96 = vld [vmem:[%s2] sm:$0x1]
    %v98 = vlaneseq
    %v99 = vshrl.u32 %v98, 7
    %v100 = vsub.s32 0, %v99
    %v101 = vrot.slane %v96, %v100
    %v103 = vadd.f32 %v94, %v101
    %v104 = vadd.f32 %v95, %v101
    %v105 = vld [vmem:[%s3] sm:$0xff]
    %v106 = vld [vmem:[%s3 + $0x8] sm:$0xff]
    %v107 = vadd.f32 %v103, %v105
    %v108 = vadd.f32 %v104, %v106
    %v109 = vsel %vm42, %v107, 0.0
    %110 = vadd.xlane.f32.xlu0 %v109
    %v111 = vpop.xlane.xlu0 %110
    %v112 = vsel %vm42, %v108, 0.0
    %113 = vadd.xlane.f32.xlu0 %v112
    %v114 = vpop.xlane.xlu0 %113
    %v115 = vrcp.pop 32.0
    %v116 = vmul.f32 %v111, %v115
    %v117 = vmul.f32 %v114, %v115
    %v118 = vsub.f32 %v107, %v116
    %v119 = vsub.f32 %v108, %v117
    %v120 = vmul.f32 %v118, %v118
    %v121 = vmul.f32 %v119, %v119
    %v122 = vsel %vm42, %v120, 0.0
    %123 = vadd.xlane.f32.xlu0 %v122
    %v124 = vpop.xlane.xlu0 %123
    %v125 = vsel %vm42, %v121, 0.0
    %126 = vadd.xlane.f32.xlu0 %v125
    %v127 = vpop.xlane.xlu0 %126
    %v128 = vmul.f32 %v124, %v115
    %v129 = vmul.f32 %v127, %v115
    %v130 = vadd.f32 %v128, 1e-05
    %v131 = vadd.f32 %v129, 1e-05
    %v132 = vrsqrt.pop %v130
    %v133 = vrsqrt.pop %v131
    %v134 = vmul.f32 %v118, %v132
    %v135 = vmul.f32 %v119, %v133
    %v136 = vld [vmem:[%s4] sm:$0x1]
    %v138 = vlaneseq
    %v139 = vshrl.u32 %v138, 7
    %v140 = vsub.s32 0, %v139
    %v141 = vrot.slane %v136, %v140
    %v143 = vmul.f32 %v134, %v141
    %v144 = vmul.f32 %v135, %v141
    %v145 = vld [vmem:[%s5] sm:$0x1]
    %v147 = vlaneseq
    %v148 = vshrl.u32 %v147, 7
    %v149 = vsub.s32 0, %v148
    %v150 = vrot.slane %v145, %v149
    %v152 = vadd.f32 %v143, %v150
    %v153 = vadd.f32 %v144, %v150
    %154 = vst.msk [vmem:[%s6] sm:$0xff] %vm42, %v152
    %155 = vst.msk [vmem:[%s6 + $0x8] sm:$0xff] %vm42, %v153
  $region33: #{tf_s2s_forward.63} parent=0 // pred_fallthru
    _
  // Predicated region
  $region34: #{tf_s2s_forward.63} parent=0 // pred_check
    _
  $region35: #{tf_s2s_forward.63} parent=0 // pred_check_branch
    %157 = sbr.rel (0) target = $region37
  $region36: #{tf_s2s_forward.63} parent=0 // pred_region
    _
  $region37: #{tf_s2s_forward.63} parent=0 // pred_fallthru
    _
  // Predicated region
  $region38: #{tf_s2s_forward.63} parent=0 // pred_check
    _
  $region39: #{tf_s2s_forward.63} parent=0 // pred_check_branch
    %159 = sbr.rel (0) target = $region41
  $region40: #{tf_s2s_forward.63} parent=0 // pred_region
    _
  $region41: #{tf_s2s_forward.63} parent=0 // pred_fallthru
    _

// kernel: tf_s2s_forward.64
$region0: #{tf_s2s_forward.64}
  #allocation0 [shape = 'u32[]', space=smem, size = 0x4, offset = 0x4, fixed_abs, tag = 'smem constant byte address 0x4 - core index']
  #allocation1 [shape = 'u32[144,128]{1,0:T(1,128)}', space=vmem, size = 0x12000, scoped, tag = 'internal scratch']
  #allocation2 [shape = 'f32[16,32]{1,0:T(8,128)}', space=vmem, size = 0x2000, scoped, tag = 'scratch operand']
  %s0 = inlined_call_operand.vmem [shape: f32[16,32], index: 0, kind: input, shape index: {}]
  %s1 = inlined_call_operand.vmem [shape: f32[32,32], index: 1, kind: input, shape index: {}]
  %s2 = inlined_call_operand.vmem [shape: f32[1,32], index: 2, kind: input, shape index: {}]
  %s3 = inlined_call_operand.vmem [shape: f32[16,32], index: 3, kind: output, shape index: {}]
  %s4 = sld [smem:[#allocation0]]
  $region30: #{tf_s2s_forward.64} parent=0
    _
  %s6 = ssub.s32 1, %s4
  %s7 = scalar_select 0, %s6, %s4
  // Predicated region
  $region2: #{tf_s2s_forward.64} parent=0 // pred_check
    _
  $region3: #{tf_s2s_forward.64} parent=0 // pred_check_branch
    %9 = sbr.rel (0) target = $region5
  $region4: #{tf_s2s_forward.64} parent=0 // pred_region
    _
  $region5: #{tf_s2s_forward.64} parent=0 // pred_fallthru
    _
  // Predicated region
  $region6: #{tf_s2s_forward.64} parent=0 // pred_check
    _
  $region7: #{tf_s2s_forward.64} parent=0 // pred_check_branch
    %11 = sbr.rel (0) target = $region9
  $region8: #{tf_s2s_forward.64} parent=0 // pred_region
    _
  $region9: #{tf_s2s_forward.64} parent=0 // pred_fallthru
    _
  // Predicated region
  $region10: #{tf_s2s_forward.64} parent=0 // pred_check
    _
  $region11: #{tf_s2s_forward.64} parent=0 // pred_check_branch
    %13 = sbr.rel (0) target = $region13
  $region12: #{tf_s2s_forward.64} parent=0 // pred_region
    _
  $region13: #{tf_s2s_forward.64} parent=0 // pred_fallthru
    _
  %p15 = scmp.eq.s32.totalorder 0, 0
  // Predicated region
  $region14: #{tf_s2s_forward.64} parent=0 // pred_check
    %p16 = pneg %p15
  $region15: #{tf_s2s_forward.64} parent=0 // pred_check_branch
    %18 = sbr.rel (%p16) target = $region17
  $region16: #{tf_s2s_forward.64} parent=0 // pred_region
    %vm19 = vcmask 261120
    %20 = vst.msk [vmem:[#allocation2] sm:$0xff] %vm19, 0.0
    %21 = vst.msk [vmem:[#allocation2 + $0x8] sm:$0xff] %vm19, 0.0
  $region17: #{tf_s2s_forward.64} parent=0 // pred_fallthru
    _
  %v22 = vld [vmem:[#allocation2] sm:$0xff]
  %v23 = vld [vmem:[#allocation2 + $0x8] sm:$0xff]
  %v24 = vld [vmem:[%s0] sm:$0xff]
  %v25 = vld [vmem:[%s0 + $0x8] sm:$0xff]
  %v26 = vpack.c.bf16 %v25, %v24
  %v27 = vld [vmem:[%s1] sm:$0xff]
  %v28 = vld [vmem:[%s1 + $0x8] sm:$0xff]
  %v29 = vld [vmem:[%s1 + $0x10] sm:$0xff]
  %v30 = vld [vmem:[%s1 + $0x18] sm:$0xff]
  %v31 = vpack.c.bf16 %v28, %v27
  %v32 = vpack.c.bf16 %v30, %v29
  %vm33 = vcmask 261120
  %v35 = vsel %vm33, %v26, 0
  %37 = vmatprep.subr.bf16.mxu0 0
  %38 = vmatpush1.bf16.msra.mxu0 %v31
  %39 = vmatprep.subr.bf16.mxu0 0
  %40 = vmatpush1.bf16.msra.mxu0 %v32
  %41 = vmatprep.subr.bf16.mxu0 0
  %42 = vmatpush1.bf16.msra.mxu0 0
  %43 = vmatprep.subr.bf16.mxu0 0
  %44 = vmatpush1.bf16.msra.mxu0 0
  %45 = vmatprep.subr.bf16.mxu0 0
  %46 = vmatpush1.bf16.msra.mxu0 0
  %47 = vmatprep.subr.bf16.mxu0 0
  %48 = vmatpush1.bf16.msra.mxu0 0
  %49 = vmatprep.subr.bf16.mxu0 0
  %50 = vmatpush1.bf16.msra.mxu0 0
  %51 = vmatprep.subr.bf16.mxu0 0
  %52 = vmatpush1.bf16.msra.mxu0 0
  %53 = vmatprep.subr.bf16.mxu0 0
  %54 = vmatpush1.bf16.msra.mxu0 0
  %55 = vmatprep.subr.bf16.mxu0 0
  %56 = vmatpush1.bf16.msra.mxu0 0
  %57 = vmatprep.subr.bf16.mxu0 0
  %58 = vmatpush1.bf16.msra.mxu0 0
  %59 = vmatprep.subr.bf16.mxu0 0
  %60 = vmatpush1.bf16.msra.mxu0 0
  %61 = vmatprep.subr.bf16.mxu0 0
  %62 = vmatpush1.bf16.msra.mxu0 0
  %63 = vmatprep.subr.bf16.mxu0 0
  %64 = vmatpush1.bf16.msra.mxu0 0
  %65 = vmatprep.subr.bf16.mxu0 0
  %66 = vmatpush1.bf16.msra.mxu0 0
  %67 = vmatprep.subr.bf16.mxu0 0
  %68 = vmatpush1.bf16.msra.mxu0 0
  %69 = vmatprep.mubr.bf16.mxu0 0
  %70 = vmatmul.mubr.bf16.gmra.mrb[0].mxu0 %v35
  %v71 = vpop.f32.mrb[0].mxu0
  %v72 = vadd.f32 0.0, %v71
  %v73 = vpop.f32.mrb[0].mxu0
  %v74 = vpop.f32.mrb[0].mxu0
  %v75 = vadd.f32 0.0, %v74
  %v76 = vpop.f32.mrb[0].mxu0
  %77 = vdwg.mxu0
  %v78 = vadd.f32 %v22, %v72
  %v79 = vadd.f32 %v23, %v75
  %80 = vst.msk [vmem:[#allocation2] sm:$0xff] %vm33, %v78
  %81 = vst.msk [vmem:[#allocation2 + $0x8] sm:$0xff] %vm33, %v79
  // Predicated region
  $region18: #{tf_s2s_forward.64} parent=0 // pred_check
    %p82 = pneg %p15
  $region19: #{tf_s2s_forward.64} parent=0 // pred_check_branch
    %84 = sbr.rel (%p82) target = $region21
  $region20: #{tf_s2s_forward.64} parent=0 // pred_region
    %v85 = vld [vmem:[#allocation2] sm:$0xff]
    %v86 = vld [vmem:[#allocation2 + $0x8] sm:$0xff]
    %v87 = vld [vmem:[%s2] sm:$0x1]
    %v89 = vlaneseq
    %v90 = vshrl.u32 %v89, 7
    %v91 = vsub.s32 0, %v90
    %v92 = vrot.slane %v87, %v91
    %v94 = vadd.f32 %v85, %v92
    %v95 = vadd.f32 %v86, %v92
    %96 = vst.msk [vmem:[%s3] sm:$0xff] %vm33, %v94
    %97 = vst.msk [vmem:[%s3 + $0x8] sm:$0xff] %vm33, %v95
  $region21: #{tf_s2s_forward.64} parent=0 // pred_fallthru
    _
  // Predicated region
  $region22: #{tf_s2s_forward.64} parent=0 // pred_check
    _
  $region23: #{tf_s2s_forward.64} parent=0 // pred_check_branch
    %99 = sbr.rel (0) target = $region25
  $region24: #{tf_s2s_forward.64} parent=0 // pred_region
    _
  $region25: #{tf_s2s_forward.64} parent=0 // pred_fallthru
    _
  // Predicated region
  $region26: #{tf_s2s_forward.64} parent=0 // pred_check
    _
  $region27: #{tf_s2s_forward.64} parent=0 // pred_check_branch
    %101 = sbr.rel (0) target = $region29
  $region28: #{tf_s2s_forward.64} parent=0 // pred_region
    _
  $region29: #{tf_s2s_forward.64} parent=0 // pred_fallthru
    _

// kernel: tf_s2s_forward.62
$region0: #{tf_s2s_forward.62}
  #allocation0 [shape = 'u32[]', space=smem, size = 0x4, offset = 0x4, fixed_abs, tag = 'smem constant byte address 0x4 - core index']
  #allocation1 [shape = 'u32[144,128]{1,0:T(1,128)}', space=vmem, size = 0x12000, scoped, tag = 'internal scratch']
  %s0 = inlined_call_operand.vmem [shape: f32[4,8,16], index: 0, kind: input, shape index: {}]
  %s1 = inlined_call_operand.vmem [shape: f32[4,8,16], index: 1, kind: input, shape index: {}]
  %s2 = inlined_call_operand.vmem [shape: f32[4,8,16], index: 2, kind: input, shape index: {}]
  %s3 = inlined_call_operand.vmem [shape: f32[4,8,16], index: 3, kind: output, shape index: {}]
  %s4 = sld [smem:[#allocation0]]
  $region22: #{tf_s2s_forward.62} parent=0
    _
  %s6 = ssub.s32 1, %s4
  %s7 = scalar_select 0, %s6, %s4
  // Predicated region
  $region2: #{tf_s2s_forward.62} parent=0 // pred_check
    _
  $region3: #{tf_s2s_forward.62} parent=0 // pred_check_branch
    %9 = sbr.rel (0) target = $region5
  $region4: #{tf_s2s_forward.62} parent=0 // pred_region
    _
  $region5: #{tf_s2s_forward.62} parent=0 // pred_fallthru
    _
  // Predicated region
  $region6: #{tf_s2s_forward.62} parent=0 // pred_check
    _
  $region7: #{tf_s2s_forward.62} parent=0 // pred_check_branch
    %11 = sbr.rel (0) target = $region9
  $region8: #{tf_s2s_forward.62} parent=0 // pred_region
    _
  $region9: #{tf_s2s_forward.62} parent=0 // pred_fallthru
    _
  // Predicated region
  $region10: #{tf_s2s_forward.62} parent=0 // pred_check
    _
  $region11: #{tf_s2s_forward.62} parent=0 // pred_check_branch
    %13 = sbr.rel (0) target = $region13
  $region12: #{tf_s2s_forward.62} parent=0 // pred_region
    _
  $region13: #{tf_s2s_forward.62} parent=0 // pred_fallthru
    _
  %v15 = vld [vmem:[%s0] sm:$0xff]
  %v16 = vld [vmem:[%s0 + $0x8] sm:$0xff]
  %v17 = vld [vmem:[%s0 + $0x10] sm:$0xff]
  %v18 = vld [vmem:[%s0 + $0x18] sm:$0xff]
  %v19 = vpack.c.bf16 %v15, %v15
  %v20 = vpack.c.bf16 %v16, %v16
  %v21 = vpack.c.bf16 %v17, %v17
  %v22 = vpack.c.bf16 %v18, %v18
  %v23 = vld [vmem:[%s1] sm:$0xff]
  %v24 = vld [vmem:[%s1 + $0x8] sm:$0xff]
  %v25 = vld [vmem:[%s1 + $0x10] sm:$0xff]
  %v26 = vld [vmem:[%s1 + $0x18] sm:$0xff]
  %v27 = vpack.c.bf16 %v23, %v23
  %v28 = vpack.c.bf16 %v24, %v24
  %v29 = vpack.c.bf16 %v25, %v25
  %v30 = vpack.c.bf16 %v26, %v26
  %vm31 = vcmask 130048
  %v33 = vsel %vm31, %v19, 0
  %v36 = vsel %vm31, %v27, 0
  %38 = vmatprep.subr.bf16.mxu0 0
  %39 = vmatpush1.bf16.xpose.msra.mxu0 %v36
  %40 = vmatprep.subr.bf16.mxu0 0
  %41 = vmatpush1.bf16.xpose.msra.mxu0 0
  %42 = vmatprep.subr.bf16.mxu0 0
  %43 = vmatpush1.bf16.xpose.msra.mxu0 0
  %44 = vmatprep.subr.bf16.mxu0 0
  %45 = vmatpush1.bf16.xpose.msra.mxu0 0
  %46 = vmatprep.subr.bf16.mxu0 0
  %47 = vmatpush1.bf16.xpose.msra.mxu0 0
  %48 = vmatprep.subr.bf16.mxu0 0
  %49 = vmatpush1.bf16.xpose.msra.mxu0 0
  %50 = vmatprep.subr.bf16.mxu0 0
  %51 = vmatpush1.bf16.xpose.msra.mxu0 0
  %52 = vmatprep.subr.bf16.mxu0 0
  %53 = vmatpush1.bf16.xpose.msra.mxu0 0
  %54 = vmatprep.subr.bf16.mxu0 0
  %55 = vmatpush1.bf16.xpose.msra.mxu0 0
  %56 = vmatprep.subr.bf16.mxu0 0
  %57 = vmatpush1.bf16.xpose.msra.mxu0 0
  %58 = vmatprep.subr.bf16.mxu0 0
  %59 = vmatpush1.bf16.xpose.msra.mxu0 0
  %60 = vmatprep.subr.bf16.mxu0 0
  %61 = vmatpush1.bf16.xpose.msra.mxu0 0
  %62 = vmatprep.subr.bf16.mxu0 0
  %63 = vmatpush1.bf16.xpose.msra.mxu0 0
  %64 = vmatprep.subr.bf16.mxu0 0
  %65 = vmatpush1.bf16.xpose.msra.mxu0 0
  %66 = vmatprep.subr.bf16.mxu0 0
  %67 = vmatpush1.bf16.xpose.msra.mxu0 0
  %68 = vmatprep.subr.bf16.mxu0 0
  %69 = vmatpush1.bf16.xpose.msra.mxu0 0
  %70 = vmatprep.mubr.bf16.mxu0 0
  %71 = vmatmul.mubr.bf16.gmra.mrb[0].mxu0 %v33
  %v72 = vpop.f32.mrb[0].mxu0
  %v73 = vadd.f32 0.0, %v72
  %v74 = vpop.f32.mrb[0].mxu0
  %v75 = vpop.f32.mrb[0].mxu0
  %v76 = vpop.f32.mrb[0].mxu0
  %77 = vdwg.mxu0
  %v79 = vsel %vm31, %v20, 0
  %v82 = vsel %vm31, %v28, 0
  %84 = vmatprep.subr.bf16.mxu0 0
  %85 = vmatpush1.bf16.xpose.msra.mxu0 %v82
  %86 = vmatprep.subr.bf16.mxu0 0
  %87 = vmatpush1.bf16.xpose.msra.mxu0 0
  %88 = vmatprep.subr.bf16.mxu0 0
  %89 = vmatpush1.bf16.xpose.msra.mxu0 0
  %90 = vmatprep.subr.bf16.mxu0 0
  %91 = vmatpush1.bf16.xpose.msra.mxu0 0
  %92 = vmatprep.subr.bf16.mxu0 0
  %93 = vmatpush1.bf16.xpose.msra.mxu0 0
  %94 = vmatprep.subr.bf16.mxu0 0
  %95 = vmatpush1.bf16.xpose.msra.mxu0 0
  %96 = vmatprep.subr.bf16.mxu0 0
  %97 = vmatpush1.bf16.xpose.msra.mxu0 0
  %98 = vmatprep.subr.bf16.mxu0 0
  %99 = vmatpush1.bf16.xpose.msra.mxu0 0
  %100 = vmatprep.subr.bf16.mxu0 0
  %101 = vmatpush1.bf16.xpose.msra.mxu0 0
  %102 = vmatprep.subr.bf16.mxu0 0
  %103 = vmatpush1.bf16.xpose.msra.mxu0 0
  %104 = vmatprep.subr.bf16.mxu0 0
  %105 = vmatpush1.bf16.xpose.msra.mxu0 0
  %106 = vmatprep.subr.bf16.mxu0 0
  %107 = vmatpush1.bf16.xpose.msra.mxu0 0
  %108 = vmatprep.subr.bf16.mxu0 0
  %109 = vmatpush1.bf16.xpose.msra.mxu0 0
  %110 = vmatprep.subr.bf16.mxu0 0
  %111 = vmatpush1.bf16.xpose.msra.mxu0 0
  %112 = vmatprep.subr.bf16.mxu0 0
  %113 = vmatpush1.bf16.xpose.msra.mxu0 0
  %114 = vmatprep.subr.bf16.mxu0 0
  %115 = vmatpush1.bf16.xpose.msra.mxu0 0
  %116 = vmatprep.mubr.bf16.mxu0 0
  %117 = vmatmul.mubr.bf16.gmra.mrb[0].mxu0 %v79
  %v118 = vpop.f32.mrb[0].mxu0
  %v119 = vadd.f32 0.0, %v118
  %v120 = vpop.f32.mrb[0].mxu0
  %v121 = vpop.f32.mrb[0].mxu0
  %v122 = vpop.f32.mrb[0].mxu0
  %123 = vdwg.mxu0
  %v125 = vsel %vm31, %v21, 0
  %v128 = vsel %vm31, %v29, 0
  %130 = vmatprep.subr.bf16.mxu0 0
  %131 = vmatpush1.bf16.xpose.msra.mxu0 %v128
  %132 = vmatprep.subr.bf16.mxu0 0
  %133 = vmatpush1.bf16.xpose.msra.mxu0 0
  %134 = vmatprep.subr.bf16.mxu0 0
  %135 = vmatpush1.bf16.xpose.msra.mxu0 0
  %136 = vmatprep.subr.bf16.mxu0 0
  %137 = vmatpush1.bf16.xpose.msra.mxu0 0
  %138 = vmatprep.subr.bf16.mxu0 0
  %139 = vmatpush1.bf16.xpose.msra.mxu0 0
  %140 = vmatprep.subr.bf16.mxu0 0
  %141 = vmatpush1.bf16.xpose.msra.mxu0 0
  %142 = vmatprep.subr.bf16.mxu0 0
  %143 = vmatpush1.bf16.xpose.msra.mxu0 0
  %144 = vmatprep.subr.bf16.mxu0 0
  %145 = vmatpush1.bf16.xpose.msra.mxu0 0
  %146 = vmatprep.subr.bf16.mxu0 0
  %147 = vmatpush1.bf16.xpose.msra.mxu0 0
  %148 = vmatprep.subr.bf16.mxu0 0
  %149 = vmatpush1.bf16.xpose.msra.mxu0 0
  %150 = vmatprep.subr.bf16.mxu0 0
  %151 = vmatpush1.bf16.xpose.msra.mxu0 0
  %152 = vmatprep.subr.bf16.mxu0 0
  %153 = vmatpush1.bf16.xpose.msra.mxu0 0
  %154 = vmatprep.subr.bf16.mxu0 0
  %155 = vmatpush1.bf16.xpose.msra.mxu0 0
  %156 = vmatprep.subr.bf16.mxu0 0
  %157 = vmatpush1.bf16.xpose.msra.mxu0 0
  %158 = vmatprep.subr.bf16.mxu0 0
  %159 = vmatpush1.bf16.xpose.msra.mxu0 0
  %160 = vmatprep.subr.bf16.mxu0 0
  %161 = vmatpush1.bf16.xpose.msra.mxu0 0
  %162 = vmatprep.mubr.bf16.mxu0 0
  %163 = vmatmul.mubr.bf16.gmra.mrb[0].mxu0 %v125
  %v164 = vpop.f32.mrb[0].mxu0
  %v165 = vadd.f32 0.0, %v164
  %v166 = vpop.f32.mrb[0].mxu0
  %v167 = vpop.f32.mrb[0].mxu0
  %v168 = vpop.f32.mrb[0].mxu0
  %169 = vdwg.mxu0
  %v171 = vsel %vm31, %v22, 0
  %v174 = vsel %vm31, %v30, 0
  %176 = vmatprep.subr.bf16.mxu0 0
  %177 = vmatpush1.bf16.xpose.msra.mxu0 %v174
  %178 = vmatprep.subr.bf16.mxu0 0
  %179 = vmatpush1.bf16.xpose.msra.mxu0 0
  %180 = vmatprep.subr.bf16.mxu0 0
  %181 = vmatpush1.bf16.xpose.msra.mxu0 0
  %182 = vmatprep.subr.bf16.mxu0 0
  %183 = vmatpush1.bf16.xpose.msra.mxu0 0
  %184 = vmatprep.subr.bf16.mxu0 0
  %185 = vmatpush1.bf16.xpose.msra.mxu0 0
  %186 = vmatprep.subr.bf16.mxu0 0
  %187 = vmatpush1.bf16.xpose.msra.mxu0 0
  %188 = vmatprep.subr.bf16.mxu0 0
  %189 = vmatpush1.bf16.xpose.msra.mxu0 0
  %190 = vmatprep.subr.bf16.mxu0 0
  %191 = vmatpush1.bf16.xpose.msra.mxu0 0
  %192 = vmatprep.subr.bf16.mxu0 0
  %193 = vmatpush1.bf16.xpose.msra.mxu0 0
  %194 = vmatprep.subr.bf16.mxu0 0
  %195 = vmatpush1.bf16.xpose.msra.mxu0 0
  %196 = vmatprep.subr.bf16.mxu0 0
  %197 = vmatpush1.bf16.xpose.msra.mxu0 0
  %198 = vmatprep.subr.bf16.mxu0 0
  %199 = vmatpush1.bf16.xpose.msra.mxu0 0
  %200 = vmatprep.subr.bf16.mxu0 0
  %201 = vmatpush1.bf16.xpose.msra.mxu0 0
  %202 = vmatprep.subr.bf16.mxu0 0
  %203 = vmatpush1.bf16.xpose.msra.mxu0 0
  %204 = vmatprep.subr.bf16.mxu0 0
  %205 = vmatpush1.bf16.xpose.msra.mxu0 0
  %206 = vmatprep.subr.bf16.mxu0 0
  %207 = vmatpush1.bf16.xpose.msra.mxu0 0
  %208 = vmatprep.mubr.bf16.mxu0 0
  %209 = vmatmul.mubr.bf16.gmra.mrb[0].mxu0 %v171
  %v210 = vpop.f32.mrb[0].mxu0
  %v211 = vadd.f32 0.0, %v210
  %v212 = vpop.f32.mrb[0].mxu0
  %v213 = vpop.f32.mrb[0].mxu0
  %v214 = vpop.f32.mrb[0].mxu0
  %215 = vdwg.mxu0
  %v216 = vmul.f32 %v73, 0.25
  %v217 = vmul.f32 %v119, 0.25
  %v218 = vmul.f32 %v165, 0.25
  %v219 = vmul.f32 %v211, 0.25
  %v220 = vlaneseq
  %v221 = vshrl.u32 %v220, 7
  %v222 = vlaneseq
  %v223 = vand.u32 %v222, 127
  %vm224 = vcmp.le.s32.totalorder %v223, %v221
  %v225 = vsel %vm224, %v216, -1e+30
  %v226 = vsel %vm224, %v217, -1e+30
  %v227 = vsel %vm224, %v218, -1e+30
  %v228 = vsel %vm224, %v219, -1e+30
  %vm229 = vcmask 64512
  %v230 = vsel %vm229, %v225, -inf
  %231 = vmax.xlane.f32.xlu0 %v230
  %v232 = vpop.xlane.xlu0 %231
  %v233 = vsel %vm229, %v226, -inf
  %234 = vmax.xlane.f32.xlu0 %v233
  %v235 = vpop.xlane.xlu0 %234
  %v236 = vsel %vm229, %v227, -inf
  %237 = vmax.xlane.f32.xlu0 %v236
  %v238 = vpop.xlane.xlu0 %237
  %v239 = vsel %vm229, %v228, -inf
  %240 = vmax.xlane.f32.xlu0 %v239
  %v241 = vpop.xlane.xlu0 %240
  %v242 = vsub.f32 %v225, %v232
  %v243 = vsub.f32 %v226, %v235
  %v244 = vsub.f32 %v227, %v238
  %v245 = vsub.f32 %v228, %v241
  %v246 = vmul.f32 %v242, 1.442695
  %v247 = vpow.pop %v246
  %v248 = vmul.f32 %v243, 1.442695
  %v249 = vpow.pop %v248
  %v250 = vmul.f32 %v244, 1.442695
  %v251 = vpow.pop %v250
  %v252 = vmul.f32 %v245, 1.442695
  %v253 = vpow.pop %v252
  %v254 = vsel %vm229, %v247, 0.0
  %255 = vadd.xlane.f32.xlu0 %v254
  %v256 = vpop.xlane.xlu0 %255
  %v257 = vsel %vm229, %v249, 0.0
  %258 = vadd.xlane.f32.xlu0 %v257
  %v259 = vpop.xlane.xlu0 %258
  %v260 = vsel %vm229, %v251, 0.0
  %261 = vadd.xlane.f32.xlu0 %v260
  %v262 = vpop.xlane.xlu0 %261
  %v263 = vsel %vm229, %v253, 0.0
  %264 = vadd.xlane.f32.xlu0 %v263
  %v265 = vpop.xlane.xlu0 %264
  %v266 = vpack.c.bf16 %v247, %v247
  %v267 = vpack.c.bf16 %v249, %v249
  %v268 = vpack.c.bf16 %v251, %v251
  %v269 = vpack.c.bf16 %v253, %v253
  %v270 = vld [vmem:[%s2] sm:$0xff]
  %v271 = vld [vmem:[%s2 + $0x8] sm:$0xff]
  %v272 = vld [vmem:[%s2 + $0x10] sm:$0xff]
  %v273 = vld [vmem:[%s2 + $0x18] sm:$0xff]
  %v274 = vpack.c.bf16 %v270, %v270
  %v275 = vpack.c.bf16 %v271, %v271
  %v276 = vpack.c.bf16 %v272, %v272
  %v277 = vpack.c.bf16 %v273, %v273
  %v279 = vsel %vm229, %v266, 0
  %vm281 = vcmask 1043456
  %v283 = vsel %vm281, %v274, 0
  %285 = vmatprep.subr.bf16.mxu0 0
  %286 = vmatpush1.bf16.msra.mxu0 %v283
  %287 = vmatprep.subr.bf16.mxu0 0
  %288 = vmatpush1.bf16.msra.mxu0 0
  %289 = vmatprep.subr.bf16.mxu0 0
  %290 = vmatpush1.bf16.msra.mxu0 0
  %291 = vmatprep.subr.bf16.mxu0 0
  %292 = vmatpush1.bf16.msra.mxu0 0
  %293 = vmatprep.subr.bf16.mxu0 0
  %294 = vmatpush1.bf16.msra.mxu0 0
  %295 = vmatprep.subr.bf16.mxu0 0
  %296 = vmatpush1.bf16.msra.mxu0 0
  %297 = vmatprep.subr.bf16.mxu0 0
  %298 = vmatpush1.bf16.msra.mxu0 0
  %299 = vmatprep.subr.bf16.mxu0 0
  %300 = vmatpush1.bf16.msra.mxu0 0
  %301 = vmatprep.subr.bf16.mxu0 0
  %302 = vmatpush1.bf16.msra.mxu0 0
  %303 = vmatprep.subr.bf16.mxu0 0
  %304 = vmatpush1.bf16.msra.mxu0 0
  %305 = vmatprep.subr.bf16.mxu0 0
  %306 = vmatpush1.bf16.msra.mxu0 0
  %307 = vmatprep.subr.bf16.mxu0 0
  %308 = vmatpush1.bf16.msra.mxu0 0
  %309 = vmatprep.subr.bf16.mxu0 0
  %310 = vmatpush1.bf16.msra.mxu0 0
  %311 = vmatprep.subr.bf16.mxu0 0
  %312 = vmatpush1.bf16.msra.mxu0 0
  %313 = vmatprep.subr.bf16.mxu0 0
  %314 = vmatpush1.bf16.msra.mxu0 0
  %315 = vmatprep.subr.bf16.mxu0 0
  %316 = vmatpush1.bf16.msra.mxu0 0
  %317 = vmatprep.mubr.bf16.mxu0 0
  %318 = vmatmul.mubr.bf16.gmra.mrb[0].mxu0 %v279
  %v319 = vpop.f32.mrb[0].mxu0
  %v320 = vadd.f32 0.0, %v319
  %v321 = vpop.f32.mrb[0].mxu0
  %v322 = vpop.f32.mrb[0].mxu0
  %v323 = vpop.f32.mrb[0].mxu0
  %324 = vdwg.mxu0
  %v326 = vsel %vm229, %v267, 0
  %v329 = vsel %vm281, %v275, 0
  %331 = vmatprep.subr.bf16.mxu0 0
  %332 = vmatpush1.bf16.msra.mxu0 %v329
  %333 = vmatprep.subr.bf16.mxu0 0
  %334 = vmatpush1.bf16.msra.mxu0 0
  %335 = vmatprep.subr.bf16.mxu0 0
  %336 = vmatpush1.bf16.msra.mxu0 0
  %337 = vmatprep.subr.bf16.mxu0 0
  %338 = vmatpush1.bf16.msra.mxu0 0
  %339 = vmatprep.subr.bf16.mxu0 0
  %340 = vmatpush1.bf16.msra.mxu0 0
  %341 = vmatprep.subr.bf16.mxu0 0
  %342 = vmatpush1.bf16.msra.mxu0 0
  %343 = vmatprep.subr.bf16.mxu0 0
  %344 = vmatpush1.bf16.msra.mxu0 0
  %345 = vmatprep.subr.bf16.mxu0 0
  %346 = vmatpush1.bf16.msra.mxu0 0
  %347 = vmatprep.subr.bf16.mxu0 0
  %348 = vmatpush1.bf16.msra.mxu0 0
  %349 = vmatprep.subr.bf16.mxu0 0
  %350 = vmatpush1.bf16.msra.mxu0 0
  %351 = vmatprep.subr.bf16.mxu0 0
  %352 = vmatpush1.bf16.msra.mxu0 0
  %353 = vmatprep.subr.bf16.mxu0 0
  %354 = vmatpush1.bf16.msra.mxu0 0
  %355 = vmatprep.subr.bf16.mxu0 0
  %356 = vmatpush1.bf16.msra.mxu0 0
  %357 = vmatprep.subr.bf16.mxu0 0
  %358 = vmatpush1.bf16.msra.mxu0 0
  %359 = vmatprep.subr.bf16.mxu0 0
  %360 = vmatpush1.bf16.msra.mxu0 0
  %361 = vmatprep.subr.bf16.mxu0 0
  %362 = vmatpush1.bf16.msra.mxu0 0
  %363 = vmatprep.mubr.bf16.mxu0 0
  %364 = vmatmul.mubr.bf16.gmra.mrb[0].mxu0 %v326
  %v365 = vpop.f32.mrb[0].mxu0
  %v366 = vadd.f32 0.0, %v365
  %v367 = vpop.f32.mrb[0].mxu0
  %v368 = vpop.f32.mrb[0].mxu0
  %v369 = vpop.f32.mrb[0].mxu0
  %370 = vdwg.mxu0
  %v372 = vsel %vm229, %v268, 0
  %v375 = vsel %vm281, %v276, 0
  %377 = vmatprep.subr.bf16.mxu0 0
  %378 = vmatpush1.bf16.msra.mxu0 %v375
  %379 = vmatprep.subr.bf16.mxu0 0
  %380 = vmatpush1.bf16.msra.mxu0 0
  %381 = vmatprep.subr.bf16.mxu0 0
  %382 = vmatpush1.bf16.msra.mxu0 0
  %383 = vmatprep.subr.bf16.mxu0 0
  %384 = vmatpush1.bf16.msra.mxu0 0
  %385 = vmatprep.subr.bf16.mxu0 0
  %386 = vmatpush1.bf16.msra.mxu0 0
  %387 = vmatprep.subr.bf16.mxu0 0
  %388 = vmatpush1.bf16.msra.mxu0 0
  %389 = vmatprep.subr.bf16.mxu0 0
  %390 = vmatpush1.bf16.msra.mxu0 0
  %391 = vmatprep.subr.bf16.mxu0 0
  %392 = vmatpush1.bf16.msra.mxu0 0
  %393 = vmatprep.subr.bf16.mxu0 0
  %394 = vmatpush1.bf16.msra.mxu0 0
  %395 = vmatprep.subr.bf16.mxu0 0
  %396 = vmatpush1.bf16.msra.mxu0 0
  %397 = vmatprep.subr.bf16.mxu0 0
  %398 = vmatpush1.bf16.msra.mxu0 0
  %399 = vmatprep.subr.bf16.mxu0 0
  %400 = vmatpush1.bf16.msra.mxu0 0
  %401 = vmatprep.subr.bf16.mxu0 0
  %402 = vmatpush1.bf16.msra.mxu0 0
  %403 = vmatprep.subr.bf16.mxu0 0
  %404 = vmatpush1.bf16.msra.mxu0 0
  %405 = vmatprep.subr.bf16.mxu0 0
  %406 = vmatpush1.bf16.msra.mxu0 0
  %407 = vmatprep.subr.bf16.mxu0 0
  %408 = vmatpush1.bf16.msra.mxu0 0
  %409 = vmatprep.mubr.bf16.mxu0 0
  %410 = vmatmul.mubr.bf16.gmra.mrb[0].mxu0 %v372
  %v411 = vpop.f32.mrb[0].mxu0
  %v412 = vadd.f32 0.0, %v411
  %v413 = vpop.f32.mrb[0].mxu0
  %v414 = vpop.f32.mrb[0].mxu0
  %v415 = vpop.f32.mrb[0].mxu0
  %416 = vdwg.mxu0
  %v418 = vsel %vm229, %v269, 0
  %v421 = vsel %vm281, %v277, 0
  %423 = vmatprep.subr.bf16.mxu0 0
  %424 = vmatpush1.bf16.msra.mxu0 %v421
  %425 = vmatprep.subr.bf16.mxu0 0
  %426 = vmatpush1.bf16.msra.mxu0 0
  %427 = vmatprep.subr.bf16.mxu0 0
  %428 = vmatpush1.bf16.msra.mxu0 0
  %429 = vmatprep.subr.bf16.mxu0 0
  %430 = vmatpush1.bf16.msra.mxu0 0
  %431 = vmatprep.subr.bf16.mxu0 0
  %432 = vmatpush1.bf16.msra.mxu0 0
  %433 = vmatprep.subr.bf16.mxu0 0
  %434 = vmatpush1.bf16.msra.mxu0 0
  %435 = vmatprep.subr.bf16.mxu0 0
  %436 = vmatpush1.bf16.msra.mxu0 0
  %437 = vmatprep.subr.bf16.mxu0 0
  %438 = vmatpush1.bf16.msra.mxu0 0
  %439 = vmatprep.subr.bf16.mxu0 0
  %440 = vmatpush1.bf16.msra.mxu0 0
  %441 = vmatprep.subr.bf16.mxu0 0
  %442 = vmatpush1.bf16.msra.mxu0 0
  %443 = vmatprep.subr.bf16.mxu0 0
  %444 = vmatpush1.bf16.msra.mxu0 0
  %445 = vmatprep.subr.bf16.mxu0 0
  %446 = vmatpush1.bf16.msra.mxu0 0
  %447 = vmatprep.subr.bf16.mxu0 0
  %448 = vmatpush1.bf16.msra.mxu0 0
  %449 = vmatprep.subr.bf16.mxu0 0
  %450 = vmatpush1.bf16.msra.mxu0 0
  %451 = vmatprep.subr.bf16.mxu0 0
  %452 = vmatpush1.bf16.msra.mxu0 0
  %453 = vmatprep.subr.bf16.mxu0 0
  %454 = vmatpush1.bf16.msra.mxu0 0
  %455 = vmatprep.mubr.bf16.mxu0 0
  %456 = vmatmul.mubr.bf16.gmra.mrb[0].mxu0 %v418
  %v457 = vpop.f32.mrb[0].mxu0
  %v458 = vadd.f32 0.0, %v457
  %v459 = vpop.f32.mrb[0].mxu0
  %v460 = vpop.f32.mrb[0].mxu0
  %v461 = vpop.f32.mrb[0].mxu0
  %462 = vdwg.mxu0
  %v463 = vrcp.pop %v256
  %v464 = vrcp.pop %v259
  %v465 = vrcp.pop %v262
  %v466 = vrcp.pop %v265
  %v467 = vmul.f32 %v320, %v463
  %v468 = vmul.f32 %v366, %v464
  %v469 = vmul.f32 %v412, %v465
  %v470 = vmul.f32 %v458, %v466
  %471 = vst.msk [vmem:[%s3] sm:$0xff] %vm31, %v467
  %472 = vst.msk [vmem:[%s3 + $0x8] sm:$0xff] %vm31, %v468
  %473 = vst.msk [vmem:[%s3 + $0x10] sm:$0xff] %vm31, %v469
  %474 = vst.msk [vmem:[%s3 + $0x18] sm:$0xff] %vm31, %v470
  // Predicated region
  $region14: #{tf_s2s_forward.62} parent=0 // pred_check
    _
  $region15: #{tf_s2s_forward.62} parent=0 // pred_check_branch
    %476 = sbr.rel (0) target = $region17
  $region16: #{tf_s2s_forward.62} parent=0 // pred_region
    _
  $region17: #{tf_s2s_forward.62} parent=0 // pred_fallthru
    _
  // Predicated region
  $region18: #{tf_s2s_forward.62} parent=0 // pred_check
    _
  $region19: #{tf_s2s_forward.62} parent=0 // pred_check_branch
    %478 = sbr.rel (0) target = $region21
  $region20: #{tf_s2s_forward.62} parent=0 // pred_region
    _
  $region21: #{tf_s2s_forward.62} parent=0 // pred_fallthru
    _

// kernel: tf_s2s_forward.48
$region0: #{tf_s2s_forward.48}
  #allocation0 [shape = 'u32[]', space=smem, size = 0x4, offset = 0x4, fixed_abs, tag = 'smem constant byte address 0x4 - core index']
  #allocation1 [shape = 'u32[144,128]{1,0:T(1,128)}', space=vmem, size = 0x12000, scoped, tag = 'internal scratch']
  #allocation2 [shape = 'f32[16,64]{1,0:T(8,128)}', space=vmem, size = 0x2000, scoped, tag = 'scratch operand']
  %s0 = inlined_call_operand.vmem [shape: f32[16,32], index: 0, kind: input, shape index: {}]
  %s1 = inlined_call_operand.vmem [shape: f32[32,64], index: 1, kind: input, shape index: {}]
  %s2 = inlined_call_operand.vmem [shape: f32[1,64], index: 2, kind: input, shape index: {}]
  %s3 = inlined_call_operand.vmem [shape: f32[16,64], index: 3, kind: output, shape index: {}]
  %s4 = sld [smem:[#allocation0]]
  $region30: #{tf_s2s_forward.48} parent=0
    _
  %s6 = ssub.s32 1, %s4
  %s7 = scalar_select 0, %s6, %s4
  // Predicated region
  $region2: #{tf_s2s_forward.48} parent=0 // pred_check
    _
  $region3: #{tf_s2s_forward.48} parent=0 // pred_check_branch
    %9 = sbr.rel (0) target = $region5
  $region4: #{tf_s2s_forward.48} parent=0 // pred_region
    _
  $region5: #{tf_s2s_forward.48} parent=0 // pred_fallthru
    _
  // Predicated region
  $region6: #{tf_s2s_forward.48} parent=0 // pred_check
    _
  $region7: #{tf_s2s_forward.48} parent=0 // pred_check_branch
    %11 = sbr.rel (0) target = $region9
  $region8: #{tf_s2s_forward.48} parent=0 // pred_region
    _
  $region9: #{tf_s2s_forward.48} parent=0 // pred_fallthru
    _
  // Predicated region
  $region10: #{tf_s2s_forward.48} parent=0 // pred_check
    _
  $region11: #{tf_s2s_forward.48} parent=0 // pred_check_branch
    %13 = sbr.rel (0) target = $region13
  $region12: #{tf_s2s_forward.48} parent=0 // pred_region
    _
  $region13: #{tf_s2s_forward.48} parent=0 // pred_fallthru
    _
  %p15 = scmp.eq.s32.totalorder 0, 0
  // Predicated region
  $region14: #{tf_s2s_forward.48} parent=0 // pred_check
    %p16 = pneg %p15
  $region15: #{tf_s2s_forward.48} parent=0 // pred_check_branch
    %18 = sbr.rel (%p16) target = $region17
  $region16: #{tf_s2s_forward.48} parent=0 // pred_region
    %vm19 = vcmask 523264
    %20 = vst.msk [vmem:[#allocation2] sm:$0xff] %vm19, 0.0
    %21 = vst.msk [vmem:[#allocation2 + $0x8] sm:$0xff] %vm19, 0.0
  $region17: #{tf_s2s_forward.48} parent=0 // pred_fallthru
    _
  %v22 = vld [vmem:[#allocation2] sm:$0xff]
  %v23 = vld [vmem:[#allocation2 + $0x8] sm:$0xff]
  %v24 = vld [vmem:[%s0] sm:$0xff]
  %v25 = vld [vmem:[%s0 + $0x8] sm:$0xff]
  %v26 = vpack.c.bf16 %v25, %v24
  %v27 = vld [vmem:[%s1] sm:$0xff]
  %v28 = vld [vmem:[%s1 + $0x8] sm:$0xff]
  %v29 = vld [vmem:[%s1 + $0x10] sm:$0xff]
  %v30 = vld [vmem:[%s1 + $0x18] sm:$0xff]
  %v31 = vpack.c.bf16 %v28, %v27
  %v32 = vpack.c.bf16 %v30, %v29
  %vm33 = vcmask 261120
  %v35 = vsel %vm33, %v26, 0
  %37 = vmatprep.subr.bf16.mxu0 0
  %38 = vmatpush1.bf16.msra.mxu0 %v31
  %39 = vmatprep.subr.bf16.mxu0 0
  %40 = vmatpush1.bf16.msra.mxu0 %v32
  %41 = vmatprep.subr.bf16.mxu0 0
  %42 = vmatpush1.bf16.msra.mxu0 0
  %43 = vmatprep.subr.bf16.mxu0 0
  %44 = vmatpush1.bf16.msra.mxu0 0
  %45 = vmatprep.subr.bf16.mxu0 0
  %46 = vmatpush1.bf16.msra.mxu0 0
  %47 = vmatprep.subr.bf16.mxu0 0
  %48 = vmatpush1.bf16.msra.mxu0 0
  %49 = vmatprep.subr.bf16.mxu0 0
  %50 = vmatpush1.bf16.msra.mxu0 0
  %51 = vmatprep.subr.bf16.mxu0 0
  %52 = vmatpush1.bf16.msra.mxu0 0
  %53 = vmatprep.subr.bf16.mxu0 0
  %54 = vmatpush1.bf16.msra.mxu0 0
  %55 = vmatprep.subr.bf16.mxu0 0
  %56 = vmatpush1.bf16.msra.mxu0 0
  %57 = vmatprep.subr.bf16.mxu0 0
  %58 = vmatpush1.bf16.msra.mxu0 0
  %59 = vmatprep.subr.bf16.mxu0 0
  %60 = vmatpush1.bf16.msra.mxu0 0
  %61 = vmatprep.subr.bf16.mxu0 0
  %62 = vmatpush1.bf16.msra.mxu0 0
  %63 = vmatprep.subr.bf16.mxu0 0
  %64 = vmatpush1.bf16.msra.mxu0 0
  %65 = vmatprep.subr.bf16.mxu0 0
  %66 = vmatpush1.bf16.msra.mxu0 0
  %67 = vmatprep.subr.bf16.mxu0 0
  %68 = vmatpush1.bf16.msra.mxu0 0
  %69 = vmatprep.mubr.bf16.mxu0 0
  %70 = vmatmul.mubr.bf16.gmra.mrb[0].mxu0 %v35
  %v71 = vpop.f32.mrb[0].mxu0
  %v72 = vadd.f32 0.0, %v71
  %v73 = vpop.f32.mrb[0].mxu0
  %v74 = vpop.f32.mrb[0].mxu0
  %v75 = vadd.f32 0.0, %v74
  %v76 = vpop.f32.mrb[0].mxu0
  %77 = vdwg.mxu0
  %v78 = vadd.f32 %v22, %v72
  %v79 = vadd.f32 %v23, %v75
  %vm80 = vcmask 523264
  %81 = vst.msk [vmem:[#allocation2] sm:$0xff] %vm80, %v78
  %82 = vst.msk [vmem:[#allocation2 + $0x8] sm:$0xff] %vm80, %v79
  // Predicated region
  $region18: #{tf_s2s_forward.48} parent=0 // pred_check
    %p83 = pneg %p15
  $region19: #{tf_s2s_forward.48} parent=0 // pred_check_branch
    %85 = sbr.rel (%p83) target = $region21
  $region20: #{tf_s2s_forward.48} parent=0 // pred_region
    %v86 = vld [vmem:[#allocation2] sm:$0xff]
    %v87 = vld [vmem:[#allocation2 + $0x8] sm:$0xff]
    %v88 = vld [vmem:[%s2] sm:$0x1]
    %v90 = vlaneseq
    %v91 = vshrl.u32 %v90, 7
    %v92 = vsub.s32 0, %v91
    %v93 = vrot.slane %v88, %v92
    %v95 = vadd.f32 %v86, %v93
    %v96 = vadd.f32 %v87, %v93
    %v97 = vmax.f32 %v95, 0.0
    %v98 = vmax.f32 %v96, 0.0
    %99 = vst.msk [vmem:[%s3] sm:$0xff] %vm80, %v97
    %100 = vst.msk [vmem:[%s3 + $0x8] sm:$0xff] %vm80, %v98
  $region21: #{tf_s2s_forward.48} parent=0 // pred_fallthru
    _
  // Predicated region
  $region22: #{tf_s2s_forward.48} parent=0 // pred_check
    _
  $region23: #{tf_s2s_forward.48} parent=0 // pred_check_branch
    %102 = sbr.rel (0) target = $region25
  $region24: #{tf_s2s_forward.48} parent=0 // pred_region
    _
  $region25: #{tf_s2s_forward.48} parent=0 // pred_fallthru
    _
  // Predicated region
  $region26: #{tf_s2s_forward.48} parent=0 // pred_check
    _
  $region27: #{tf_s2s_forward.48} parent=0 // pred_check_branch
    %104 = sbr.rel (0) target = $region29
  $region28: #{tf_s2s_forward.48} parent=0 // pred_region
    _
  $region29: #{tf_s2s_forward.48} parent=0 // pred_fallthru
    _

// kernel: tf_s2s_forward.60
$region0: #{tf_s2s_forward.60}
  #allocation0 [shape = 'u32[]', space=smem, size = 0x4, offset = 0x4, fixed_abs, tag = 'smem constant byte address 0x4 - core index']
  #allocation1 [shape = 'u32[144,128]{1,0:T(1,128)}', space=vmem, size = 0x12000, scoped, tag = 'internal scratch']
  %s0 = inlined_call_operand.vmem [shape: f32[16,32], index: 0, kind: input, shape index: {}]
  %s1 = inlined_call_operand.vmem [shape: f32[1,32], index: 1, kind: input, shape index: {}]
  %s2 = inlined_call_operand.vmem [shape: f32[1,32], index: 2, kind: input, shape index: {}]
  %s3 = inlined_call_operand.vmem [shape: f32[16,32], index: 3, kind: output, shape index: {}]
  %s4 = sld [smem:[#allocation0]]
  $region22: #{tf_s2s_forward.60} parent=0
    _
  %s6 = ssub.s32 1, %s4
  %s7 = scalar_select 0, %s6, %s4
  // Predicated region
  $region2: #{tf_s2s_forward.60} parent=0 // pred_check
    _
  $region3: #{tf_s2s_forward.60} parent=0 // pred_check_branch
    %9 = sbr.rel (0) target = $region5
  $region4: #{tf_s2s_forward.60} parent=0 // pred_region
    _
  $region5: #{tf_s2s_forward.60} parent=0 // pred_fallthru
    _
  // Predicated region
  $region6: #{tf_s2s_forward.60} parent=0 // pred_check
    _
  $region7: #{tf_s2s_forward.60} parent=0 // pred_check_branch
    %11 = sbr.rel (0) target = $region9
  $region8: #{tf_s2s_forward.60} parent=0 // pred_region
    _
  $region9: #{tf_s2s_forward.60} parent=0 // pred_fallthru
    _
  // Predicated region
  $region10: #{tf_s2s_forward.60} parent=0 // pred_check
    _
  $region11: #{tf_s2s_forward.60} parent=0 // pred_check_branch
    %13 = sbr.rel (0) target = $region13
  $region12: #{tf_s2s_forward.60} parent=0 // pred_region
    _
  $region13: #{tf_s2s_forward.60} parent=0 // pred_fallthru
    _
  %v14 = vld [vmem:[%s0] sm:$0xff]
  %v15 = vld [vmem:[%s0 + $0x8] sm:$0xff]
  %vm16 = vcmask 261120
  %v17 = vsel %vm16, %v14, 0.0
  %18 = vadd.xlane.f32.xlu0 %v17
  %v19 = vpop.xlane.xlu0 %18
  %v20 = vsel %vm16, %v15, 0.0
  %21 = vadd.xlane.f32.xlu0 %v20
  %v22 = vpop.xlane.xlu0 %21
  %v23 = vrcp.pop 32.0
  %v24 = vmul.f32 %v19, %v23
  %v25 = vmul.f32 %v22, %v23
  %v26 = vsub.f32 %v14, %v24
  %v27 = vsub.f32 %v15, %v25
  %v28 = vmul.f32 %v26, %v26
  %v29 = vmul.f32 %v27, %v27
  %v30 = vsel %vm16, %v28, 0.0
  %31 = vadd.xlane.f32.xlu0 %v30
  %v32 = vpop.xlane.xlu0 %31
  %v33 = vsel %vm16, %v29, 0.0
  %34 = vadd.xlane.f32.xlu0 %v33
  %v35 = vpop.xlane.xlu0 %34
  %v36 = vmul.f32 %v32, %v23
  %v37 = vmul.f32 %v35, %v23
  %v38 = vadd.f32 %v36, 1e-05
  %v39 = vadd.f32 %v37, 1e-05
  %v40 = vrsqrt.pop %v38
  %v41 = vrsqrt.pop %v39
  %v42 = vmul.f32 %v26, %v40
  %v43 = vmul.f32 %v27, %v41
  %v44 = vld [vmem:[%s1] sm:$0x1]
  %v46 = vlaneseq
  %v47 = vshrl.u32 %v46, 7
  %v48 = vsub.s32 0, %v47
  %v49 = vrot.slane %v44, %v48
  %v51 = vmul.f32 %v42, %v49
  %v52 = vmul.f32 %v43, %v49
  %v53 = vld [vmem:[%s2] sm:$0x1]
  %v55 = vlaneseq
  %v56 = vshrl.u32 %v55, 7
  %v57 = vsub.s32 0, %v56
  %v58 = vrot.slane %v53, %v57
  %v60 = vadd.f32 %v51, %v58
  %v61 = vadd.f32 %v52, %v58
  %62 = vst.msk [vmem:[%s3] sm:$0xff] %vm16, %v60
  %63 = vst.msk [vmem:[%s3 + $0x8] sm:$0xff] %vm16, %v61
  // Predicated region
  $region14: #{tf_s2s_forward.60} parent=0 // pred_check
    _
  $region15: #{tf_s2s_forward.60} parent=0 // pred_check_branch
    %65 = sbr.rel (0) target = $region17
  $region16: #{tf_s2s_forward.60} parent=0 // pred_region
    _
  $region17: #{tf_s2s_forward.60} parent=0 // pred_fallthru
    _
  // Predicated region
  $region18: #{tf_s2s_forward.60} parent=0 // pred_check
    _
  $region19: #{tf_s2s_forward.60} parent=0 // pred_check_branch
    %67 = sbr.rel (0) target = $region21
  $region20: #{tf_s2s_forward.60} parent=0 // pred_region
    _
  $region21: #{tf_s2s_forward.60} parent=0 // pred_fallthru
    _

// kernel: tf_s2s_forward.46
$region0: #{tf_s2s_forward.46}
  #allocation0 [shape = 'u32[]', space=smem, size = 0x4, offset = 0x4, fixed_abs, tag = 'smem constant byte address 0x4 - core index']
  #allocation1 [shape = 'u32[144,128]{1,0:T(1,128)}', space=vmem, size = 0x12000, scoped, tag = 'internal scratch']
  %s0 = inlined_call_operand.vmem [shape: f32[4,8,16], index: 0, kind: input, shape index: {}]
  %s1 = inlined_call_operand.vmem [shape: f32[4,8,16], index: 1, kind: input, shape index: {}]
  %s2 = inlined_call_operand.vmem [shape: f32[4,8,16], index: 2, kind: input, shape index: {}]
  %s3 = inlined_call_operand.vmem [shape: f32[4,8,16], index: 3, kind: output, shape index: {}]
  %s4 = sld [smem:[#allocation0]]
  $region22: #{tf_s2s_forward.46} parent=0
    _
  %s6 = ssub.s32 1, %s4
  %s7 = scalar_select 0, %s6, %s4
  // Predicated region
  $region2: #{tf_s2s_forward.46} parent=0 // pred_check
    _
  $region3: #{tf_s2s_forward.46} parent=0 // pred_check_branch
    %9 = sbr.rel (0) target = $region5
  $region4: #{tf_s2s_forward.46} parent=0 // pred_region
    _
  $region5: #{tf_s2s_forward.46} parent=0 // pred_fallthru
    _
  // Predicated region
  $region6: #{tf_s2s_forward.46} parent=0 // pred_check
    _
  $region7: #{tf_s2s_forward.46} parent=0 // pred_check_branch
    %11 = sbr.rel (0) target = $region9
  $region8: #{tf_s2s_forward.46} parent=0 // pred_region
    _
  $region9: #{tf_s2s_forward.46} parent=0 // pred_fallthru
    _
  // Predicated region
  $region10: #{tf_s2s_forward.46} parent=0 // pred_check
    _
  $region11: #{tf_s2s_forward.46} parent=0 // pred_check_branch
    %13 = sbr.rel (0) target = $region13
  $region12: #{tf_s2s_forward.46} parent=0 // pred_region
    _
  $region13: #{tf_s2s_forward.46} parent=0 // pred_fallthru
    _
  %v15 = vld [vmem:[%s0] sm:$0xff]
  %v16 = vld [vmem:[%s0 + $0x8] sm:$0xff]
  %v17 = vld [vmem:[%s0 + $0x10] sm:$0xff]
  %v18 = vld [vmem:[%s0 + $0x18] sm:$0xff]
  %v19 = vpack.c.bf16 %v15, %v15
  %v20 = vpack.c.bf16 %v16, %v16
  %v21 = vpack.c.bf16 %v17, %v17
  %v22 = vpack.c.bf16 %v18, %v18
  %v23 = vld [vmem:[%s1] sm:$0xff]
  %v24 = vld [vmem:[%s1 + $0x8] sm:$0xff]
  %v25 = vld [vmem:[%s1 + $0x10] sm:$0xff]
  %v26 = vld [vmem:[%s1 + $0x18] sm:$0xff]
  %v27 = vpack.c.bf16 %v23, %v23
  %v28 = vpack.c.bf16 %v24, %v24
  %v29 = vpack.c.bf16 %v25, %v25
  %v30 = vpack.c.bf16 %v26, %v26
  %vm31 = vcmask 130048
  %v33 = vsel %vm31, %v19, 0
  %v36 = vsel %vm31, %v27, 0
  %38 = vmatprep.subr.bf16.mxu0 0
  %39 = vmatpush1.bf16.xpose.msra.mxu0 %v36
  %40 = vmatprep.subr.bf16.mxu0 0
  %41 = vmatpush1.bf16.xpose.msra.mxu0 0
  %42 = vmatprep.subr.bf16.mxu0 0
  %43 = vmatpush1.bf16.xpose.msra.mxu0 0
  %44 = vmatprep.subr.bf16.mxu0 0
  %45 = vmatpush1.bf16.xpose.msra.mxu0 0
  %46 = vmatprep.subr.bf16.mxu0 0
  %47 = vmatpush1.bf16.xpose.msra.mxu0 0
  %48 = vmatprep.subr.bf16.mxu0 0
  %49 = vmatpush1.bf16.xpose.msra.mxu0 0
  %50 = vmatprep.subr.bf16.mxu0 0
  %51 = vmatpush1.bf16.xpose.msra.mxu0 0
  %52 = vmatprep.subr.bf16.mxu0 0
  %53 = vmatpush1.bf16.xpose.msra.mxu0 0
  %54 = vmatprep.subr.bf16.mxu0 0
  %55 = vmatpush1.bf16.xpose.msra.mxu0 0
  %56 = vmatprep.subr.bf16.mxu0 0
  %57 = vmatpush1.bf16.xpose.msra.mxu0 0
  %58 = vmatprep.subr.bf16.mxu0 0
  %59 = vmatpush1.bf16.xpose.msra.mxu0 0
  %60 = vmatprep.subr.bf16.mxu0 0
  %61 = vmatpush1.bf16.xpose.msra.mxu0 0
  %62 = vmatprep.subr.bf16.mxu0 0
  %63 = vmatpush1.bf16.xpose.msra.mxu0 0
  %64 = vmatprep.subr.bf16.mxu0 0
  %65 = vmatpush1.bf16.xpose.msra.mxu0 0
  %66 = vmatprep.subr.bf16.mxu0 0
  %67 = vmatpush1.bf16.xpose.msra.mxu0 0
  %68 = vmatprep.subr.bf16.mxu0 0
  %69 = vmatpush1.bf16.xpose.msra.mxu0 0
  %70 = vmatprep.mubr.bf16.mxu0 0
  %71 = vmatmul.mubr.bf16.gmra.mrb[0].mxu0 %v33
  %v72 = vpop.f32.mrb[0].mxu0
  %v73 = vadd.f32 0.0, %v72
  %v74 = vpop.f32.mrb[0].mxu0
  %v75 = vpop.f32.mrb[0].mxu0
  %v76 = vpop.f32.mrb[0].mxu0
  %77 = vdwg.mxu0
  %v79 = vsel %vm31, %v20, 0
  %v82 = vsel %vm31, %v28, 0
  %84 = vmatprep.subr.bf16.mxu0 0
  %85 = vmatpush1.bf16.xpose.msra.mxu0 %v82
  %86 = vmatprep.subr.bf16.mxu0 0
  %87 = vmatpush1.bf16.xpose.msra.mxu0 0
  %88 = vmatprep.subr.bf16.mxu0 0
  %89 = vmatpush1.bf16.xpose.msra.mxu0 0
  %90 = vmatprep.subr.bf16.mxu0 0
  %91 = vmatpush1.bf16.xpose.msra.mxu0 0
  %92 = vmatprep.subr.bf16.mxu0 0
  %93 = vmatpush1.bf16.xpose.msra.mxu0 0
  %94 = vmatprep.subr.bf16.mxu0 0
  %95 = vmatpush1.bf16.xpose.msra.mxu0 0
  %96 = vmatprep.subr.bf16.mxu0 0
  %97 = vmatpush1.bf16.xpose.msra.mxu0 0
  %98 = vmatprep.subr.bf16.mxu0 0
  %99 = vmatpush1.bf16.xpose.msra.mxu0 0
  %100 = vmatprep.subr.bf16.mxu0 0
  %101 = vmatpush1.bf16.xpose.msra.mxu0 0
  %102 = vmatprep.subr.bf16.mxu0 0
  %103 = vmatpush1.bf16.xpose.msra.mxu0 0
  %104 = vmatprep.subr.bf16.mxu0 0
  %105 = vmatpush1.bf16.xpose.msra.mxu0 0
  %106 = vmatprep.subr.bf16.mxu0 0
  %107 = vmatpush1.bf16.xpose.msra.mxu0 0
  %108 = vmatprep.subr.bf16.mxu0 0
  %109 = vmatpush1.bf16.xpose.msra.mxu0 0
  %110 = vmatprep.subr.bf16.mxu0 0
  %111 = vmatpush1.bf16.xpose.msra.mxu0 0
  %112 = vmatprep.subr.bf16.mxu0 0
  %113 = vmatpush1.bf16.xpose.msra.mxu0 0
  %114 = vmatprep.subr.bf16.mxu0 0
  %115 = vmatpush1.bf16.xpose.msra.mxu0 0
  %116 = vmatprep.mubr.bf16.mxu0 0
  %117 = vmatmul.mubr.bf16.gmra.mrb[0].mxu0 %v79
  %v118 = vpop.f32.mrb[0].mxu0
  %v119 = vadd.f32 0.0, %v118
  %v120 = vpop.f32.mrb[0].mxu0
  %v121 = vpop.f32.mrb[0].mxu0
  %v122 = vpop.f32.mrb[0].mxu0
  %123 = vdwg.mxu0
  %v125 = vsel %vm31, %v21, 0
  %v128 = vsel %vm31, %v29, 0
  %130 = vmatprep.subr.bf16.mxu0 0
  %131 = vmatpush1.bf16.xpose.msra.mxu0 %v128
  %132 = vmatprep.subr.bf16.mxu0 0
  %133 = vmatpush1.bf16.xpose.msra.mxu0 0
  %134 = vmatprep.subr.bf16.mxu0 0
  %135 = vmatpush1.bf16.xpose.msra.mxu0 0
  %136 = vmatprep.subr.bf16.mxu0 0
  %137 = vmatpush1.bf16.xpose.msra.mxu0 0
  %138 = vmatprep.subr.bf16.mxu0 0
  %139 = vmatpush1.bf16.xpose.msra.mxu0 0
  %140 = vmatprep.subr.bf16.mxu0 0
  %141 = vmatpush1.bf16.xpose.msra.mxu0 0
  %142 = vmatprep.subr.bf16.mxu0 0
  %143 = vmatpush1.bf16.xpose.msra.mxu0 0
  %144 = vmatprep.subr.bf16.mxu0 0
  %145 = vmatpush1.bf16.xpose.msra.mxu0 0
  %146 = vmatprep.subr.bf16.mxu0 0
  %147 = vmatpush1.bf16.xpose.msra.mxu0 0
  %148 = vmatprep.subr.bf16.mxu0 0
  %149 = vmatpush1.bf16.xpose.msra.mxu0 0
  %150 = vmatprep.subr.bf16.mxu0 0
  %151 = vmatpush1.bf16.xpose.msra.mxu0 0
  %152 = vmatprep.subr.bf16.mxu0 0
  %153 = vmatpush1.bf16.xpose.msra.mxu0 0
  %154 = vmatprep.subr.bf16.mxu0 0
  %155 = vmatpush1.bf16.xpose.msra.mxu0 0
  %156 = vmatprep.subr.bf16.mxu0 0
  %157 = vmatpush1.bf16.xpose.msra.mxu0 0
  %158 = vmatprep.subr.bf16.mxu0 0
  %159 = vmatpush1.bf16.xpose.msra.mxu0 0
  %160 = vmatprep.subr.bf16.mxu0 0
  %161 = vmatpush1.bf16.xpose.msra.mxu0 0
  %162 = vmatprep.mubr.bf16.mxu0 0
  %163 = vmatmul.mubr.bf16.gmra.mrb[0].mxu0 %v125
  %v164 = vpop.f32.mrb[0].mxu0
  %v165 = vadd.f32 0.0, %v164
  %v166 = vpop.f32.mrb[0].mxu0
  %v167 = vpop.f32.mrb[0].mxu0
  %v168 = vpop.f32.mrb[0].mxu0
  %169 = vdwg.mxu0
  %v171 = vsel %vm31, %v22, 0
  %v174 = vsel %vm31, %v30, 0
  %176 = vmatprep.subr.bf16.mxu0 0
  %177 = vmatpush1.bf16.xpose.msra.mxu0 %v174
  %178 = vmatprep.subr.bf16.mxu0 0
  %179 = vmatpush1.bf16.xpose.msra.mxu0 0
  %180 = vmatprep.subr.bf16.mxu0 0
  %181 = vmatpush1.bf16.xpose.msra.mxu0 0
  %182 = vmatprep.subr.bf16.mxu0 0
  %183 = vmatpush1.bf16.xpose.msra.mxu0 0
  %184 = vmatprep.subr.bf16.mxu0 0
  %185 = vmatpush1.bf16.xpose.msra.mxu0 0
  %186 = vmatprep.subr.bf16.mxu0 0
  %187 = vmatpush1.bf16.xpose.msra.mxu0 0
  %188 = vmatprep.subr.bf16.mxu0 0
  %189 = vmatpush1.bf16.xpose.msra.mxu0 0
  %190 = vmatprep.subr.bf16.mxu0 0
  %191 = vmatpush1.bf16.xpose.msra.mxu0 0
  %192 = vmatprep.subr.bf16.mxu0 0
  %193 = vmatpush1.bf16.xpose.msra.mxu0 0
  %194 = vmatprep.subr.bf16.mxu0 0
  %195 = vmatpush1.bf16.xpose.msra.mxu0 0
  %196 = vmatprep.subr.bf16.mxu0 0
  %197 = vmatpush1.bf16.xpose.msra.mxu0 0
  %198 = vmatprep.subr.bf16.mxu0 0
  %199 = vmatpush1.bf16.xpose.msra.mxu0 0
  %200 = vmatprep.subr.bf16.mxu0 0
  %201 = vmatpush1.bf16.xpose.msra.mxu0 0
  %202 = vmatprep.subr.bf16.mxu0 0
  %203 = vmatpush1.bf16.xpose.msra.mxu0 0
  %204 = vmatprep.subr.bf16.mxu0 0
  %205 = vmatpush1.bf16.xpose.msra.mxu0 0
  %206 = vmatprep.subr.bf16.mxu0 0
  %207 = vmatpush1.bf16.xpose.msra.mxu0 0
  %208 = vmatprep.mubr.bf16.mxu0 0
  %209 = vmatmul.mubr.bf16.gmra.mrb[0].mxu0 %v171
  %v210 = vpop.f32.mrb[0].mxu0
  %v211 = vadd.f32 0.0, %v210
  %v212 = vpop.f32.mrb[0].mxu0
  %v213 = vpop.f32.mrb[0].mxu0
  %v214 = vpop.f32.mrb[0].mxu0
  %215 = vdwg.mxu0
  %v216 = vmul.f32 %v73, 0.25
  %v217 = vmul.f32 %v119, 0.25
  %v218 = vmul.f32 %v165, 0.25
  %v219 = vmul.f32 %v211, 0.25
  %vm220 = vcmask 64512
  %v221 = vsel %vm220, %v216, -inf
  %222 = vmax.xlane.f32.xlu0 %v221
  %v223 = vpop.xlane.xlu0 %222
  %v224 = vsel %vm220, %v217, -inf
  %225 = vmax.xlane.f32.xlu0 %v224
  %v226 = vpop.xlane.xlu0 %225
  %v227 = vsel %vm220, %v218, -inf
  %228 = vmax.xlane.f32.xlu0 %v227
  %v229 = vpop.xlane.xlu0 %228
  %v230 = vsel %vm220, %v219, -inf
  %231 = vmax.xlane.f32.xlu0 %v230
  %v232 = vpop.xlane.xlu0 %231
  %v233 = vsub.f32 %v216, %v223
  %v234 = vsub.f32 %v217, %v226
  %v235 = vsub.f32 %v218, %v229
  %v236 = vsub.f32 %v219, %v232
  %v237 = vmul.f32 %v233, 1.442695
  %v238 = vpow.pop %v237
  %v239 = vmul.f32 %v234, 1.442695
  %v240 = vpow.pop %v239
  %v241 = vmul.f32 %v235, 1.442695
  %v242 = vpow.pop %v241
  %v243 = vmul.f32 %v236, 1.442695
  %v244 = vpow.pop %v243
  %v245 = vsel %vm220, %v238, 0.0
  %246 = vadd.xlane.f32.xlu0 %v245
  %v247 = vpop.xlane.xlu0 %246
  %v248 = vsel %vm220, %v240, 0.0
  %249 = vadd.xlane.f32.xlu0 %v248
  %v250 = vpop.xlane.xlu0 %249
  %v251 = vsel %vm220, %v242, 0.0
  %252 = vadd.xlane.f32.xlu0 %v251
  %v253 = vpop.xlane.xlu0 %252
  %v254 = vsel %vm220, %v244, 0.0
  %255 = vadd.xlane.f32.xlu0 %v254
  %v256 = vpop.xlane.xlu0 %255
  %v257 = vpack.c.bf16 %v238, %v238
  %v258 = vpack.c.bf16 %v240, %v240
  %v259 = vpack.c.bf16 %v242, %v242
  %v260 = vpack.c.bf16 %v244, %v244
  %v261 = vld [vmem:[%s2] sm:$0xff]
  %v262 = vld [vmem:[%s2 + $0x8] sm:$0xff]
  %v263 = vld [vmem:[%s2 + $0x10] sm:$0xff]
  %v264 = vld [vmem:[%s2 + $0x18] sm:$0xff]
  %v265 = vpack.c.bf16 %v261, %v261
  %v266 = vpack.c.bf16 %v262, %v262
  %v267 = vpack.c.bf16 %v263, %v263
  %v268 = vpack.c.bf16 %v264, %v264
  %v270 = vsel %vm220, %v257, 0
  %vm272 = vcmask 1043456
  %v274 = vsel %vm272, %v265, 0
  %276 = vmatprep.subr.bf16.mxu0 0
  %277 = vmatpush1.bf16.msra.mxu0 %v274
  %278 = vmatprep.subr.bf16.mxu0 0
  %279 = vmatpush1.bf16.msra.mxu0 0
  %280 = vmatprep.subr.bf16.mxu0 0
  %281 = vmatpush1.bf16.msra.mxu0 0
  %282 = vmatprep.subr.bf16.mxu0 0
  %283 = vmatpush1.bf16.msra.mxu0 0
  %284 = vmatprep.subr.bf16.mxu0 0
  %285 = vmatpush1.bf16.msra.mxu0 0
  %286 = vmatprep.subr.bf16.mxu0 0
  %287 = vmatpush1.bf16.msra.mxu0 0
  %288 = vmatprep.subr.bf16.mxu0 0
  %289 = vmatpush1.bf16.msra.mxu0 0
  %290 = vmatprep.subr.bf16.mxu0 0
  %291 = vmatpush1.bf16.msra.mxu0 0
  %292 = vmatprep.subr.bf16.mxu0 0
  %293 = vmatpush1.bf16.msra.mxu0 0
  %294 = vmatprep.subr.bf16.mxu0 0
  %295 = vmatpush1.bf16.msra.mxu0 0
  %296 = vmatprep.subr.bf16.mxu0 0
  %297 = vmatpush1.bf16.msra.mxu0 0
  %298 = vmatprep.subr.bf16.mxu0 0
  %299 = vmatpush1.bf16.msra.mxu0 0
  %300 = vmatprep.subr.bf16.mxu0 0
  %301 = vmatpush1.bf16.msra.mxu0 0
  %302 = vmatprep.subr.bf16.mxu0 0
  %303 = vmatpush1.bf16.msra.mxu0 0
  %304 = vmatprep.subr.bf16.mxu0 0
  %305 = vmatpush1.bf16.msra.mxu0 0
  %306 = vmatprep.subr.bf16.mxu0 0
  %307 = vmatpush1.bf16.msra.mxu0 0
  %308 = vmatprep.mubr.bf16.mxu0 0
  %309 = vmatmul.mubr.bf16.gmra.mrb[0].mxu0 %v270
  %v310 = vpop.f32.mrb[0].mxu0
  %v311 = vadd.f32 0.0, %v310
  %v312 = vpop.f32.mrb[0].mxu0
  %v313 = vpop.f32.mrb[0].mxu0
  %v314 = vpop.f32.mrb[0].mxu0
  %315 = vdwg.mxu0
  %v317 = vsel %vm220, %v258, 0
  %v320 = vsel %vm272, %v266, 0
  %322 = vmatprep.subr.bf16.mxu0 0
  %323 = vmatpush1.bf16.msra.mxu0 %v320
  %324 = vmatprep.subr.bf16.mxu0 0
  %325 = vmatpush1.bf16.msra.mxu0 0
  %326 = vmatprep.subr.bf16.mxu0 0
  %327 = vmatpush1.bf16.msra.mxu0 0
  %328 = vmatprep.subr.bf16.mxu0 0
  %329 = vmatpush1.bf16.msra.mxu0 0
  %330 = vmatprep.subr.bf16.mxu0 0
  %331 = vmatpush1.bf16.msra.mxu0 0
  %332 = vmatprep.subr.bf16.mxu0 0
  %333 = vmatpush1.bf16.msra.mxu0 0
  %334 = vmatprep.subr.bf16.mxu0 0
  %335 = vmatpush1.bf16.msra.mxu0 0
  %336 = vmatprep.subr.bf16.mxu0 0
  %337 = vmatpush1.bf16.msra.mxu0 0
  %338 = vmatprep.subr.bf16.mxu0 0
  %339 = vmatpush1.bf16.msra.mxu0 0
  %340 = vmatprep.subr.bf16.mxu0 0
  %341 = vmatpush1.bf16.msra.mxu0 0
  %342 = vmatprep.subr.bf16.mxu0 0
  %343 = vmatpush1.bf16.msra.mxu0 0
  %344 = vmatprep.subr.bf16.mxu0 0
  %345 = vmatpush1.bf16.msra.mxu0 0
  %346 = vmatprep.subr.bf16.mxu0 0
  %347 = vmatpush1.bf16.msra.mxu0 0
  %348 = vmatprep.subr.bf16.mxu0 0
  %349 = vmatpush1.bf16.msra.mxu0 0
  %350 = vmatprep.subr.bf16.mxu0 0
  %351 = vmatpush1.bf16.msra.mxu0 0
  %352 = vmatprep.subr.bf16.mxu0 0
  %353 = vmatpush1.bf16.msra.mxu0 0
  %354 = vmatprep.mubr.bf16.mxu0 0
  %355 = vmatmul.mubr.bf16.gmra.mrb[0].mxu0 %v317
  %v356 = vpop.f32.mrb[0].mxu0
  %v357 = vadd.f32 0.0, %v356
  %v358 = vpop.f32.mrb[0].mxu0
  %v359 = vpop.f32.mrb[0].mxu0
  %v360 = vpop.f32.mrb[0].mxu0
  %361 = vdwg.mxu0
  %v363 = vsel %vm220, %v259, 0
  %v366 = vsel %vm272, %v267, 0
  %368 = vmatprep.subr.bf16.mxu0 0
  %369 = vmatpush1.bf16.msra.mxu0 %v366
  %370 = vmatprep.subr.bf16.mxu0 0
  %371 = vmatpush1.bf16.msra.mxu0 0
  %372 = vmatprep.subr.bf16.mxu0 0
  %373 = vmatpush1.bf16.msra.mxu0 0
  %374 = vmatprep.subr.bf16.mxu0 0
  %375 = vmatpush1.bf16.msra.mxu0 0
  %376 = vmatprep.subr.bf16.mxu0 0
  %377 = vmatpush1.bf16.msra.mxu0 0
  %378 = vmatprep.subr.bf16.mxu0 0
  %379 = vmatpush1.bf16.msra.mxu0 0
  %380 = vmatprep.subr.bf16.mxu0 0
  %381 = vmatpush1.bf16.msra.mxu0 0
  %382 = vmatprep.subr.bf16.mxu0 0
  %383 = vmatpush1.bf16.msra.mxu0 0
  %384 = vmatprep.subr.bf16.mxu0 0
  %385 = vmatpush1.bf16.msra.mxu0 0
  %386 = vmatprep.subr.bf16.mxu0 0
  %387 = vmatpush1.bf16.msra.mxu0 0
  %388 = vmatprep.subr.bf16.mxu0 0
  %389 = vmatpush1.bf16.msra.mxu0 0
  %390 = vmatprep.subr.bf16.mxu0 0
  %391 = vmatpush1.bf16.msra.mxu0 0
  %392 = vmatprep.subr.bf16.mxu0 0
  %393 = vmatpush1.bf16.msra.mxu0 0
  %394 = vmatprep.subr.bf16.mxu0 0
  %395 = vmatpush1.bf16.msra.mxu0 0
  %396 = vmatprep.subr.bf16.mxu0 0
  %397 = vmatpush1.bf16.msra.mxu0 0
  %398 = vmatprep.subr.bf16.mxu0 0
  %399 = vmatpush1.bf16.msra.mxu0 0
  %400 = vmatprep.mubr.bf16.mxu0 0
  %401 = vmatmul.mubr.bf16.gmra.mrb[0].mxu0 %v363
  %v402 = vpop.f32.mrb[0].mxu0
  %v403 = vadd.f32 0.0, %v402
  %v404 = vpop.f32.mrb[0].mxu0
  %v405 = vpop.f32.mrb[0].mxu0
  %v406 = vpop.f32.mrb[0].mxu0
  %407 = vdwg.mxu0
  %v409 = vsel %vm220, %v260, 0
  %v412 = vsel %vm272, %v268, 0
  %414 = vmatprep.subr.bf16.mxu0 0
  %415 = vmatpush1.bf16.msra.mxu0 %v412
  %416 = vmatprep.subr.bf16.mxu0 0
  %417 = vmatpush1.bf16.msra.mxu0 0
  %418 = vmatprep.subr.bf16.mxu0 0
  %419 = vmatpush1.bf16.msra.mxu0 0
  %420 = vmatprep.subr.bf16.mxu0 0
  %421 = vmatpush1.bf16.msra.mxu0 0
  %422 = vmatprep.subr.bf16.mxu0 0
  %423 = vmatpush1.bf16.msra.mxu0 0
  %424 = vmatprep.subr.bf16.mxu0 0
  %425 = vmatpush1.bf16.msra.mxu0 0
  %426 = vmatprep.subr.bf16.mxu0 0
  %427 = vmatpush1.bf16.msra.mxu0 0
  %428 = vmatprep.subr.bf16.mxu0 0
  %429 = vmatpush1.bf16.msra.mxu0 0
  %430 = vmatprep.subr.bf16.mxu0 0
  %431 = vmatpush1.bf16.msra.mxu0 0
  %432 = vmatprep.subr.bf16.mxu0 0
  %433 = vmatpush1.bf16.msra.mxu0 0
  %434 = vmatprep.subr.bf16.mxu0 0
  %435 = vmatpush1.bf16.msra.mxu0 0
  %436 = vmatprep.subr.bf16.mxu0 0
  %437 = vmatpush1.bf16.msra.mxu0 0
  %438 = vmatprep.subr.bf16.mxu0 0
  %439 = vmatpush1.bf16.msra.mxu0 0
  %440 = vmatprep.subr.bf16.mxu0 0
  %441 = vmatpush1.bf16.msra.mxu0 0
  %442 = vmatprep.subr.bf16.mxu0 0
  %443 = vmatpush1.bf16.msra.mxu0 0
  %444 = vmatprep.subr.bf16.mxu0 0
  %445 = vmatpush1.bf16.msra.mxu0 0
  %446 = vmatprep.mubr.bf16.mxu0 0
  %447 = vmatmul.mubr.bf16.gmra.mrb[0].mxu0 %v409
  %v448 = vpop.f32.mrb[0].mxu0
  %v449 = vadd.f32 0.0, %v448
  %v450 = vpop.f32.mrb[0].mxu0
  %v451 = vpop.f32.mrb[0].mxu0
  %v452 = vpop.f32.mrb[0].mxu0
  %453 = vdwg.mxu0
  %v454 = vrcp.pop %v247
  %v455 = vrcp.pop %v250
  %v456 = vrcp.pop %v253
  %v457 = vrcp.pop %v256
  %v458 = vmul.f32 %v311, %v454
  %v459 = vmul.f32 %v357, %v455
  %v460 = vmul.f32 %v403, %v456
  %v461 = vmul.f32 %v449, %v457
  %462 = vst.msk [vmem:[%s3] sm:$0xff] %vm31, %v458
  %463 = vst.msk [vmem:[%s3 + $0x8] sm:$0xff] %vm31, %v459
  %464 = vst.msk [vmem:[%s3 + $0x10] sm:$0xff] %vm31, %v460
  %465 = vst.msk [vmem:[%s3 + $0x18] sm:$0xff] %vm31, %v461
  // Predicated region
  $region14: #{tf_s2s_forward.46} parent=0 // pred_check
    _
  $region15: #{tf_s2s_forward.46} parent=0 // pred_check_branch
    %467 = sbr.rel (0) target = $region17
  $region16: #{tf_s2s_forward.46} parent=0 // pred_region
    _
  $region17: #{tf_s2s_forward.46} parent=0 // pred_fallthru
    _
  // Predicated region
  $region18: #{tf_s2s_forward.46} parent=0 // pred_check
    _
  $region19: #{tf_s2s_forward.46} parent=0 // pred_check_branch
    %469 = sbr.rel (0) target = $region21
  $region20: #{tf_s2s_forward.46} parent=0 // pred_region
    _
  $region21: #{tf_s2s_forward.46} parent=0 // pred_fallthru
    _

// kernel: tf_s2s_forward.49
$region0: #{tf_s2s_forward.49}
  #allocation0 [shape = 'u32[]', space=smem, size = 0x4, offset = 0x4, fixed_abs, tag = 'smem constant byte address 0x4 - core index']
  #allocation1 [shape = 'u32[144,128]{1,0:T(1,128)}', space=vmem, size = 0x12000, scoped, tag = 'internal scratch']
  #allocation2 [shape = 'f32[16,32]{1,0:T(8,128)}', space=vmem, size = 0x2000, scoped, tag = 'scratch operand']
  %s0 = inlined_call_operand.vmem [shape: f32[16,64], index: 0, kind: input, shape index: {}]
  %s1 = inlined_call_operand.vmem [shape: f32[64,32], index: 1, kind: input, shape index: {}]
  %s2 = inlined_call_operand.vmem [shape: f32[1,32], index: 2, kind: input, shape index: {}]
  %s3 = inlined_call_operand.vmem [shape: f32[16,32], index: 3, kind: input, shape index: {}]
  %s4 = inlined_call_operand.vmem [shape: f32[1,32], index: 4, kind: input, shape index: {}]
  %s5 = inlined_call_operand.vmem [shape: f32[1,32], index: 5, kind: input, shape index: {}]
  %s6 = inlined_call_operand.vmem [shape: f32[16,32], index: 6, kind: output, shape index: {}]
  %s7 = sld [smem:[#allocation0]]
  $region42: #{tf_s2s_forward.49} parent=0
    _
  %s9 = ssub.s32 1, %s7
  %s10 = scalar_select 0, %s9, %s7
  // Predicated region
  $region2: #{tf_s2s_forward.49} parent=0 // pred_check
    _
  $region3: #{tf_s2s_forward.49} parent=0 // pred_check_branch
    %12 = sbr.rel (0) target = $region5
  $region4: #{tf_s2s_forward.49} parent=0 // pred_region
    _
  $region5: #{tf_s2s_forward.49} parent=0 // pred_fallthru
    _
  // Predicated region
  $region6: #{tf_s2s_forward.49} parent=0 // pred_check
    _
  $region7: #{tf_s2s_forward.49} parent=0 // pred_check_branch
    %14 = sbr.rel (0) target = $region9
  $region8: #{tf_s2s_forward.49} parent=0 // pred_region
    _
  $region9: #{tf_s2s_forward.49} parent=0 // pred_fallthru
    _
  // Predicated region
  $region10: #{tf_s2s_forward.49} parent=0 // pred_check
    _
  $region11: #{tf_s2s_forward.49} parent=0 // pred_check_branch
    %16 = sbr.rel (0) target = $region13
  $region12: #{tf_s2s_forward.49} parent=0 // pred_region
    _
  $region13: #{tf_s2s_forward.49} parent=0 // pred_fallthru
    _
  // Predicated region
  $region14: #{tf_s2s_forward.49} parent=0 // pred_check
    _
  $region15: #{tf_s2s_forward.49} parent=0 // pred_check_branch
    %18 = sbr.rel (0) target = $region17
  $region16: #{tf_s2s_forward.49} parent=0 // pred_region
    _
  $region17: #{tf_s2s_forward.49} parent=0 // pred_fallthru
    _
  // Predicated region
  $region18: #{tf_s2s_forward.49} parent=0 // pred_check
    _
  $region19: #{tf_s2s_forward.49} parent=0 // pred_check_branch
    %20 = sbr.rel (0) target = $region21
  $region20: #{tf_s2s_forward.49} parent=0 // pred_region
    _
  $region21: #{tf_s2s_forward.49} parent=0 // pred_fallthru
    _
  // Predicated region
  $region22: #{tf_s2s_forward.49} parent=0 // pred_check
    _
  $region23: #{tf_s2s_forward.49} parent=0 // pred_check_branch
    %22 = sbr.rel (0) target = $region25
  $region24: #{tf_s2s_forward.49} parent=0 // pred_region
    _
  $region25: #{tf_s2s_forward.49} parent=0 // pred_fallthru
    _
  %p24 = scmp.eq.s32.totalorder 0, 0
  // Predicated region
  $region26: #{tf_s2s_forward.49} parent=0 // pred_check
    %p25 = pneg %p24
  $region27: #{tf_s2s_forward.49} parent=0 // pred_check_branch
    %27 = sbr.rel (%p25) target = $region29
  $region28: #{tf_s2s_forward.49} parent=0 // pred_region
    %vm28 = vcmask 261120
    %29 = vst.msk [vmem:[#allocation2] sm:$0xff] %vm28, 0.0
    %30 = vst.msk [vmem:[#allocation2 + $0x8] sm:$0xff] %vm28, 0.0
  $region29: #{tf_s2s_forward.49} parent=0 // pred_fallthru
    _
  %v31 = vld [vmem:[#allocation2] sm:$0xff]
  %v32 = vld [vmem:[#allocation2 + $0x8] sm:$0xff]
  %v33 = vld [vmem:[%s0] sm:$0xff]
  %v34 = vld [vmem:[%s0 + $0x8] sm:$0xff]
  %v35 = vpack.c.bf16 %v34, %v33
  %v36 = vld [vmem:[%s1] sm:$0xff]
  %v37 = vld [vmem:[%s1 + $0x8] sm:$0xff]
  %v38 = vld [vmem:[%s1 + $0x10] sm:$0xff]
  %v39 = vld [vmem:[%s1 + $0x18] sm:$0xff]
  %v40 = vld [vmem:[%s1 + $0x20] sm:$0xff]
  %v41 = vld [vmem:[%s1 + $0x28] sm:$0xff]
  %v42 = vld [vmem:[%s1 + $0x30] sm:$0xff]
  %v43 = vld [vmem:[%s1 + $0x38] sm:$0xff]
  %v44 = vpack.c.bf16 %v37, %v36
  %v45 = vpack.c.bf16 %v39, %v38
  %v46 = vpack.c.bf16 %v41, %v40
  %v47 = vpack.c.bf16 %v43, %v42
  %vm48 = vcmask 523264
  %v50 = vsel %vm48, %v35, 0
  %52 = vmatprep.subr.bf16.mxu0 0
  %53 = vmatpush1.bf16.msra.mxu0 %v44
  %54 = vmatprep.subr.bf16.mxu0 0
  %55 = vmatpush1.bf16.msra.mxu0 %v45
  %56 = vmatprep.subr.bf16.mxu0 0
  %57 = vmatpush1.bf16.msra.mxu0 %v46
  %58 = vmatprep.subr.bf16.mxu0 0
  %59 = vmatpush1.bf16.msra.mxu0 %v47
  %60 = vmatprep.subr.bf16.mxu0 0
  %61 = vmatpush1.bf16.msra.mxu0 0
  %62 = vmatprep.subr.bf16.mxu0 0
  %63 = vmatpush1.bf16.msra.mxu0 0
  %64 = vmatprep.subr.bf16.mxu0 0
  %65 = vmatpush1.bf16.msra.mxu0 0
  %66 = vmatprep.subr.bf16.mxu0 0
  %67 = vmatpush1.bf16.msra.mxu0 0
  %68 = vmatprep.subr.bf16.mxu0 0
  %69 = vmatpush1.bf16.msra.mxu0 0
  %70 = vmatprep.subr.bf16.mxu0 0
  %71 = vmatpush1.bf16.msra.mxu0 0
  %72 = vmatprep.subr.bf16.mxu0 0
  %73 = vmatpush1.bf16.msra.mxu0 0
  %74 = vmatprep.subr.bf16.mxu0 0
  %75 = vmatpush1.bf16.msra.mxu0 0
  %76 = vmatprep.subr.bf16.mxu0 0
  %77 = vmatpush1.bf16.msra.mxu0 0
  %78 = vmatprep.subr.bf16.mxu0 0
  %79 = vmatpush1.bf16.msra.mxu0 0
  %80 = vmatprep.subr.bf16.mxu0 0
  %81 = vmatpush1.bf16.msra.mxu0 0
  %82 = vmatprep.subr.bf16.mxu0 0
  %83 = vmatpush1.bf16.msra.mxu0 0
  %84 = vmatprep.mubr.bf16.mxu0 0
  %85 = vmatmul.mubr.bf16.gmra.mrb[0].mxu0 %v50
  %v86 = vpop.f32.mrb[0].mxu0
  %v87 = vadd.f32 0.0, %v86
  %v88 = vpop.f32.mrb[0].mxu0
  %v89 = vpop.f32.mrb[0].mxu0
  %v90 = vadd.f32 0.0, %v89
  %v91 = vpop.f32.mrb[0].mxu0
  %92 = vdwg.mxu0
  %v93 = vadd.f32 %v31, %v87
  %v94 = vadd.f32 %v32, %v90
  %vm95 = vcmask 261120
  %96 = vst.msk [vmem:[#allocation2] sm:$0xff] %vm95, %v93
  %97 = vst.msk [vmem:[#allocation2 + $0x8] sm:$0xff] %vm95, %v94
  // Predicated region
  $region30: #{tf_s2s_forward.49} parent=0 // pred_check
    %p98 = pneg %p24
  $region31: #{tf_s2s_forward.49} parent=0 // pred_check_branch
    %100 = sbr.rel (%p98) target = $region33
  $region32: #{tf_s2s_forward.49} parent=0 // pred_region
    %v101 = vld [vmem:[#allocation2] sm:$0xff]
    %v102 = vld [vmem:[#allocation2 + $0x8] sm:$0xff]
    %v103 = vld [vmem:[%s2] sm:$0x1]
    %v105 = vlaneseq
    %v106 = vshrl.u32 %v105, 7
    %v107 = vsub.s32 0, %v106
    %v108 = vrot.slane %v103, %v107
    %v110 = vadd.f32 %v101, %v108
    %v111 = vadd.f32 %v102, %v108
    %v112 = vld [vmem:[%s3] sm:$0xff]
    %v113 = vld [vmem:[%s3 + $0x8] sm:$0xff]
    %v114 = vadd.f32 %v110, %v112
    %v115 = vadd.f32 %v111, %v113
    %v116 = vsel %vm95, %v114, 0.0
    %117 = vadd.xlane.f32.xlu0 %v116
    %v118 = vpop.xlane.xlu0 %117
    %v119 = vsel %vm95, %v115, 0.0
    %120 = vadd.xlane.f32.xlu0 %v119
    %v121 = vpop.xlane.xlu0 %120
    %v122 = vrcp.pop 32.0
    %v123 = vmul.f32 %v118, %v122
    %v124 = vmul.f32 %v121, %v122
    %v125 = vsub.f32 %v114, %v123
    %v126 = vsub.f32 %v115, %v124
    %v127 = vmul.f32 %v125, %v125
    %v128 = vmul.f32 %v126, %v126
    %v129 = vsel %vm95, %v127, 0.0
    %130 = vadd.xlane.f32.xlu0 %v129
    %v131 = vpop.xlane.xlu0 %130
    %v132 = vsel %vm95, %v128, 0.0
    %133 = vadd.xlane.f32.xlu0 %v132
    %v134 = vpop.xlane.xlu0 %133
    %v135 = vmul.f32 %v131, %v122
    %v136 = vmul.f32 %v134, %v122
    %v137 = vadd.f32 %v135, 1e-05
    %v138 = vadd.f32 %v136, 1e-05
    %v139 = vrsqrt.pop %v137
    %v140 = vrsqrt.pop %v138
    %v141 = vmul.f32 %v125, %v139
    %v142 = vmul.f32 %v126, %v140
    %v143 = vld [vmem:[%s4] sm:$0x1]
    %v145 = vlaneseq
    %v146 = vshrl.u32 %v145, 7
    %v147 = vsub.s32 0, %v146
    %v148 = vrot.slane %v143, %v147
    %v150 = vmul.f32 %v141, %v148
    %v151 = vmul.f32 %v142, %v148
    %v152 = vld [vmem:[%s5] sm:$0x1]
    %v154 = vlaneseq
    %v155 = vshrl.u32 %v154, 7
    %v156 = vsub.s32 0, %v155
    %v157 = vrot.slane %v152, %v156
    %v159 = vadd.f32 %v150, %v157
    %v160 = vadd.f32 %v151, %v157
    %161 = vst.msk [vmem:[%s6] sm:$0xff] %vm95, %v159
    %162 = vst.msk [vmem:[%s6 + $0x8] sm:$0xff] %vm95, %v160
  $region33: #{tf_s2s_forward.49} parent=0 // pred_fallthru
    _
  // Predicated region
  $region34: #{tf_s2s_forward.49} parent=0 // pred_check
    _
  $region35: #{tf_s2s_forward.49} parent=0 // pred_check_branch
    %164 = sbr.rel (0) target = $region37
  $region36: #{tf_s2s_forward.49} parent=0 // pred_region
    _
  $region37: #{tf_s2s_forward.49} parent=0 // pred_fallthru
    _
  // Predicated region
  $region38: #{tf_s2s_forward.49} parent=0 // pred_check
    _
  $region39: #{tf_s2s_forward.49} parent=0 // pred_check_branch
    %166 = sbr.rel (0) target = $region41
  $region40: #{tf_s2s_forward.49} parent=0 // pred_region
    _
  $region41: #{tf_s2s_forward.49} parent=0 // pred_fallthru
    _

// kernel: tf_s2s_forward.65
$region0: #{tf_s2s_forward.65}
  #allocation0 [shape = 'u32[]', space=smem, size = 0x4, offset = 0x4, fixed_abs, tag = 'smem constant byte address 0x4 - core index']
  #allocation1 [shape = 'u32[144,128]{1,0:T(1,128)}', space=vmem, size = 0x12000, scoped, tag = 'internal scratch']
  #allocation2 [shape = 'f32[16,64]{1,0:T(8,128)}', space=vmem, size = 0x2000, scoped, tag = 'scratch operand']
  %s0 = inlined_call_operand.vmem [shape: f32[16,32], index: 0, kind: input, shape index: {}]
  %s1 = inlined_call_operand.vmem [shape: f32[32,64], index: 1, kind: input, shape index: {}]
  %s2 = inlined_call_operand.vmem [shape: f32[1,64], index: 2, kind: input, shape index: {}]
  %s3 = inlined_call_operand.vmem [shape: f32[16,64], index: 3, kind: output, shape index: {}]
  %s4 = sld [smem:[#allocation0]]
  $region30: #{tf_s2s_forward.65} parent=0
    _
  %s6 = ssub.s32 1, %s4
  %s7 = scalar_select 0, %s6, %s4
  // Predicated region
  $region2: #{tf_s2s_forward.65} parent=0 // pred_check
    _
  $region3: #{tf_s2s_forward.65} parent=0 // pred_check_branch
    %9 = sbr.rel (0) target = $region5
  $region4: #{tf_s2s_forward.65} parent=0 // pred_region
    _
  $region5: #{tf_s2s_forward.65} parent=0 // pred_fallthru
    _
  // Predicated region
  $region6: #{tf_s2s_forward.65} parent=0 // pred_check
    _
  $region7: #{tf_s2s_forward.65} parent=0 // pred_check_branch
    %11 = sbr.rel (0) target = $region9
  $region8: #{tf_s2s_forward.65} parent=0 // pred_region
    _
  $region9: #{tf_s2s_forward.65} parent=0 // pred_fallthru
    _
  // Predicated region
  $region10: #{tf_s2s_forward.65} parent=0 // pred_check
    _
  $region11: #{tf_s2s_forward.65} parent=0 // pred_check_branch
    %13 = sbr.rel (0) target = $region13
  $region12: #{tf_s2s_forward.65} parent=0 // pred_region
    _
  $region13: #{tf_s2s_forward.65} parent=0 // pred_fallthru
    _
  %p15 = scmp.eq.s32.totalorder 0, 0
  // Predicated region
  $region14: #{tf_s2s_forward.65} parent=0 // pred_check
    %p16 = pneg %p15
  $region15: #{tf_s2s_forward.65} parent=0 // pred_check_branch
    %18 = sbr.rel (%p16) target = $region17
  $region16: #{tf_s2s_forward.65} parent=0 // pred_region
    %vm19 = vcmask 523264
    %20 = vst.msk [vmem:[#allocation2] sm:$0xff] %vm19, 0.0
    %21 = vst.msk [vmem:[#allocation2 + $0x8] sm:$0xff] %vm19, 0.0
  $region17: #{tf_s2s_forward.65} parent=0 // pred_fallthru
    _
  %v22 = vld [vmem:[#allocation2] sm:$0xff]
  %v23 = vld [vmem:[#allocation2 + $0x8] sm:$0xff]
  %v24 = vld [vmem:[%s0] sm:$0xff]
  %v25 = vld [vmem:[%s0 + $0x8] sm:$0xff]
  %v26 = vpack.c.bf16 %v25, %v24
  %v27 = vld [vmem:[%s1] sm:$0xff]
  %v28 = vld [vmem:[%s1 + $0x8] sm:$0xff]
  %v29 = vld [vmem:[%s1 + $0x10] sm:$0xff]
  %v30 = vld [vmem:[%s1 + $0x18] sm:$0xff]
  %v31 = vpack.c.bf16 %v28, %v27
  %v32 = vpack.c.bf16 %v30, %v29
  %vm33 = vcmask 261120
  %v35 = vsel %vm33, %v26, 0
  %37 = vmatprep.subr.bf16.mxu0 0
  %38 = vmatpush1.bf16.msra.mxu0 %v31
  %39 = vmatprep.subr.bf16.mxu0 0
  %40 = vmatpush1.bf16.msra.mxu0 %v32
  %41 = vmatprep.subr.bf16.mxu0 0
  %42 = vmatpush1.bf16.msra.mxu0 0
  %43 = vmatprep.subr.bf16.mxu0 0
  %44 = vmatpush1.bf16.msra.mxu0 0
  %45 = vmatprep.subr.bf16.mxu0 0
  %46 = vmatpush1.bf16.msra.mxu0 0
  %47 = vmatprep.subr.bf16.mxu0 0
  %48 = vmatpush1.bf16.msra.mxu0 0
  %49 = vmatprep.subr.bf16.mxu0 0
  %50 = vmatpush1.bf16.msra.mxu0 0
  %51 = vmatprep.subr.bf16.mxu0 0
  %52 = vmatpush1.bf16.msra.mxu0 0
  %53 = vmatprep.subr.bf16.mxu0 0
  %54 = vmatpush1.bf16.msra.mxu0 0
  %55 = vmatprep.subr.bf16.mxu0 0
  %56 = vmatpush1.bf16.msra.mxu0 0
  %57 = vmatprep.subr.bf16.mxu0 0
  %58 = vmatpush1.bf16.msra.mxu0 0
  %59 = vmatprep.subr.bf16.mxu0 0
  %60 = vmatpush1.bf16.msra.mxu0 0
  %61 = vmatprep.subr.bf16.mxu0 0
  %62 = vmatpush1.bf16.msra.mxu0 0
  %63 = vmatprep.subr.bf16.mxu0 0
  %64 = vmatpush1.bf16.msra.mxu0 0
  %65 = vmatprep.subr.bf16.mxu0 0
  %66 = vmatpush1.bf16.msra.mxu0 0
  %67 = vmatprep.subr.bf16.mxu0 0
  %68 = vmatpush1.bf16.msra.mxu0 0
  %69 = vmatprep.mubr.bf16.mxu0 0
  %70 = vmatmul.mubr.bf16.gmra.mrb[0].mxu0 %v35
  %v71 = vpop.f32.mrb[0].mxu0
  %v72 = vadd.f32 0.0, %v71
  %v73 = vpop.f32.mrb[0].mxu0
  %v74 = vpop.f32.mrb[0].mxu0
  %v75 = vadd.f32 0.0, %v74
  %v76 = vpop.f32.mrb[0].mxu0
  %77 = vdwg.mxu0
  %v78 = vadd.f32 %v22, %v72
  %v79 = vadd.f32 %v23, %v75
  %vm80 = vcmask 523264
  %81 = vst.msk [vmem:[#allocation2] sm:$0xff] %vm80, %v78
  %82 = vst.msk [vmem:[#allocation2 + $0x8] sm:$0xff] %vm80, %v79
  // Predicated region
  $region18: #{tf_s2s_forward.65} parent=0 // pred_check
    %p83 = pneg %p15
  $region19: #{tf_s2s_forward.65} parent=0 // pred_check_branch
    %85 = sbr.rel (%p83) target = $region21
  $region20: #{tf_s2s_forward.65} parent=0 // pred_region
    %v86 = vld [vmem:[#allocation2] sm:$0xff]
    %v87 = vld [vmem:[#allocation2 + $0x8] sm:$0xff]
    %v88 = vld [vmem:[%s2] sm:$0x1]
    %v90 = vlaneseq
    %v91 = vshrl.u32 %v90, 7
    %v92 = vsub.s32 0, %v91
    %v93 = vrot.slane %v88, %v92
    %v95 = vadd.f32 %v86, %v93
    %v96 = vadd.f32 %v87, %v93
    %97 = vst.msk [vmem:[%s3] sm:$0xff] %vm80, %v95
    %98 = vst.msk [vmem:[%s3 + $0x8] sm:$0xff] %vm80, %v96
  $region21: #{tf_s2s_forward.65} parent=0 // pred_fallthru
    _
  // Predicated region
  $region22: #{tf_s2s_forward.65} parent=0 // pred_check
    _
  $region23: #{tf_s2s_forward.65} parent=0 // pred_check_branch
    %100 = sbr.rel (0) target = $region25
  $region24: #{tf_s2s_forward.65} parent=0 // pred_region
    _
  $region25: #{tf_s2s_forward.65} parent=0 // pred_fallthru
    _
  // Predicated region
  $region26: #{tf_s2s_forward.65} parent=0 // pred_check
    _
  $region27: #{tf_s2s_forward.65} parent=0 // pred_check_branch
    %102 = sbr.rel (0) target = $region29
  $region28: #{tf_s2s_forward.65} parent=0 // pred_region
    _
  $region29: #{tf_s2s_forward.65} parent=0 // pred_fallthru
    _

// kernel: tf_s2s_forward.89
$region0: #{tf_s2s_forward.89}
  #allocation0 [shape = 'u32[]', space=smem, size = 0x4, offset = 0x4, fixed_abs, tag = 'smem constant byte address 0x4 - core index']
  #allocation1 [shape = 'u32[144,128]{1,0:T(1,128)}', space=vmem, size = 0x12000, scoped, tag = 'internal scratch']
  #allocation2 [shape = 'f32[16,128]{1,0:T(8,128)}', space=vmem, size = 0x2000, scoped, tag = 'scratch operand']
  %s0 = inlined_call_operand.vmem [shape: f32[16,32], index: 0, kind: input, shape index: {}]
  %s1 = inlined_call_operand.vmem [shape: f32[32,128], index: 1, kind: input, shape index: {}]
  %s2 = inlined_call_operand.vmem [shape: f32[1,128], index: 2, kind: input, shape index: {}]
  %s3 = inlined_call_operand.vmem [shape: f32[16,128], index: 3, kind: output, shape index: {}]
  %s4 = sld [smem:[#allocation0]]
  $region30: #{tf_s2s_forward.89} parent=0
    _
  %s6 = ssub.s32 1, %s4
  %s7 = scalar_select 0, %s6, %s4
  // Predicated region
  $region2: #{tf_s2s_forward.89} parent=0 // pred_check
    _
  $region3: #{tf_s2s_forward.89} parent=0 // pred_check_branch
    %9 = sbr.rel (0) target = $region5
  $region4: #{tf_s2s_forward.89} parent=0 // pred_region
    _
  $region5: #{tf_s2s_forward.89} parent=0 // pred_fallthru
    _
  // Predicated region
  $region6: #{tf_s2s_forward.89} parent=0 // pred_check
    _
  $region7: #{tf_s2s_forward.89} parent=0 // pred_check_branch
    %11 = sbr.rel (0) target = $region9
  $region8: #{tf_s2s_forward.89} parent=0 // pred_region
    _
  $region9: #{tf_s2s_forward.89} parent=0 // pred_fallthru
    _
  // Predicated region
  $region10: #{tf_s2s_forward.89} parent=0 // pred_check
    _
  $region11: #{tf_s2s_forward.89} parent=0 // pred_check_branch
    %13 = sbr.rel (0) target = $region13
  $region12: #{tf_s2s_forward.89} parent=0 // pred_region
    _
  $region13: #{tf_s2s_forward.89} parent=0 // pred_fallthru
    _
  %p15 = scmp.eq.s32.totalorder 0, 0
  // Predicated region
  $region14: #{tf_s2s_forward.89} parent=0 // pred_check
    %p16 = pneg %p15
  $region15: #{tf_s2s_forward.89} parent=0 // pred_check_branch
    %18 = sbr.rel (%p16) target = $region17
  $region16: #{tf_s2s_forward.89} parent=0 // pred_region
    %19 = vst [vmem:[#allocation2] sm:$0xff] 0.0
    %20 = vst [vmem:[#allocation2 + $0x8] sm:$0xff] 0.0
  $region17: #{tf_s2s_forward.89} parent=0 // pred_fallthru
    _
  %v21 = vld [vmem:[#allocation2] sm:$0xff]
  %v22 = vld [vmem:[#allocation2 + $0x8] sm:$0xff]
  %v23 = vld [vmem:[%s0] sm:$0xff]
  %v24 = vld [vmem:[%s0 + $0x8] sm:$0xff]
  %v25 = vpack.c.bf16 %v24, %v23
  %v26 = vld [vmem:[%s1] sm:$0xff]
  %v27 = vld [vmem:[%s1 + $0x8] sm:$0xff]
  %v28 = vld [vmem:[%s1 + $0x10] sm:$0xff]
  %v29 = vld [vmem:[%s1 + $0x18] sm:$0xff]
  %v30 = vpack.c.bf16 %v27, %v26
  %v31 = vpack.c.bf16 %v29, %v28
  %vm32 = vcmask 261120
  %v34 = vsel %vm32, %v25, 0
  %36 = vmatprep.subr.bf16.mxu0 0
  %37 = vmatpush1.bf16.msra.mxu0 %v30
  %38 = vmatprep.subr.bf16.mxu0 0
  %39 = vmatpush1.bf16.msra.mxu0 %v31
  %40 = vmatprep.subr.bf16.mxu0 0
  %41 = vmatpush1.bf16.msra.mxu0 0
  %42 = vmatprep.subr.bf16.mxu0 0
  %43 = vmatpush1.bf16.msra.mxu0 0
  %44 = vmatprep.subr.bf16.mxu0 0
  %45 = vmatpush1.bf16.msra.mxu0 0
  %46 = vmatprep.subr.bf16.mxu0 0
  %47 = vmatpush1.bf16.msra.mxu0 0
  %48 = vmatprep.subr.bf16.mxu0 0
  %49 = vmatpush1.bf16.msra.mxu0 0
  %50 = vmatprep.subr.bf16.mxu0 0
  %51 = vmatpush1.bf16.msra.mxu0 0
  %52 = vmatprep.subr.bf16.mxu0 0
  %53 = vmatpush1.bf16.msra.mxu0 0
  %54 = vmatprep.subr.bf16.mxu0 0
  %55 = vmatpush1.bf16.msra.mxu0 0
  %56 = vmatprep.subr.bf16.mxu0 0
  %57 = vmatpush1.bf16.msra.mxu0 0
  %58 = vmatprep.subr.bf16.mxu0 0
  %59 = vmatpush1.bf16.msra.mxu0 0
  %60 = vmatprep.subr.bf16.mxu0 0
  %61 = vmatpush1.bf16.msra.mxu0 0
  %62 = vmatprep.subr.bf16.mxu0 0
  %63 = vmatpush1.bf16.msra.mxu0 0
  %64 = vmatprep.subr.bf16.mxu0 0
  %65 = vmatpush1.bf16.msra.mxu0 0
  %66 = vmatprep.subr.bf16.mxu0 0
  %67 = vmatpush1.bf16.msra.mxu0 0
  %68 = vmatprep.mubr.bf16.mxu0 0
  %69 = vmatmul.mubr.bf16.gmra.mrb[0].mxu0 %v34
  %v70 = vpop.f32.mrb[0].mxu0
  %v71 = vadd.f32 0.0, %v70
  %v72 = vpop.f32.mrb[0].mxu0
  %v73 = vpop.f32.mrb[0].mxu0
  %v74 = vadd.f32 0.0, %v73
  %v75 = vpop.f32.mrb[0].mxu0
  %76 = vdwg.mxu0
  %v77 = vadd.f32 %v21, %v71
  %v78 = vadd.f32 %v22, %v74
  %79 = vst [vmem:[#allocation2] sm:$0xff] %v77
  %80 = vst [vmem:[#allocation2 + $0x8] sm:$0xff] %v78
  // Predicated region
  $region18: #{tf_s2s_forward.89} parent=0 // pred_check
    %p81 = pneg %p15
  $region19: #{tf_s2s_forward.89} parent=0 // pred_check_branch
    %83 = sbr.rel (%p81) target = $region21
  $region20: #{tf_s2s_forward.89} parent=0 // pred_region
    %v84 = vld [vmem:[#allocation2] sm:$0xff]
    %v85 = vld [vmem:[#allocation2 + $0x8] sm:$0xff]
    %v86 = vld [vmem:[%s2] sm:$0x1]
    %v88 = vlaneseq
    %v89 = vshrl.u32 %v88, 7
    %v90 = vsub.s32 0, %v89
    %v91 = vrot.slane %v86, %v90
    %v93 = vadd.f32 %v84, %v91
    %v94 = vadd.f32 %v85, %v91
    %95 = vst [vmem:[%s3] sm:$0xff] %v93
    %96 = vst [vmem:[%s3 + $0x8] sm:$0xff] %v94
  $region21: #{tf_s2s_forward.89} parent=0 // pred_fallthru
    _
  // Predicated region
  $region22: #{tf_s2s_forward.89} parent=0 // pred_check
    _
  $region23: #{tf_s2s_forward.89} parent=0 // pred_check_branch
    %98 = sbr.rel (0) target = $region25
  $region24: #{tf_s2s_forward.89} parent=0 // pred_region
    _
  $region25: #{tf_s2s_forward.89} parent=0 // pred_fallthru
    _
  // Predicated region
  $region26: #{tf_s2s_forward.89} parent=0 // pred_check
    _
  $region27: #{tf_s2s_forward.89} parent=0 // pred_check_branch
    %100 = sbr.rel (0) target = $region29
  $region28: #{tf_s2s_forward.89} parent=0 // pred_region
    _
  $region29: #{tf_s2s_forward.89} parent=0 // pred_fallthru
    _

</llo_original>
